<compile_context>
chip_gen: v6e
topology: v6e:2x2x1
jax: 0.10.0
libtpu: 0.0.40
codegen_flags: <defaults>
</compile_context>

<pallas_src>
import math

import jax
import jax.numpy as jnp
from jax.experimental import pallas as pl

EPS = 1e-5          # PyTorch LayerNorm default eps
NEG = -1e30         # finite stand-in for -inf (exp underflows to exactly 0)
LANE = 128          # lane width for the lane-dense generator epilogue

LN_NAMES = ['enc_norm1', 'enc_norm2', 'enc_final',
            'dec_norm1', 'dec_norm2', 'dec_norm3', 'dec_final']


# ----------------------------- fused Pallas kernel ---------------------------

def _make_fused_kernel(E):
    def layer_norm(y, g, b):
        mu = jnp.mean(y, axis=-1, keepdims=True)
        d = y - mu
        var = jnp.mean(d * d, axis=-1, keepdims=True)
        return d * jax.lax.rsqrt(var + EPS) * g + b

    def kernel(src_ref, tgt_emb_ref, b_enc_ref, b_dsa_ref, b_dca_ref,
               w_se_ref, b_se_ref,
               wq_ref, bq_ref, wkv_ref, bkv_ref, wo_ref, bo_ref,
               ffn_w1_ref, ffn_b1_ref, ffn_w2_ref, ffn_b2_ref,
               ln_g_ref, ln_b_ref, gen_w_ref, gen_b_ref, out_ref):

        def mha(x_q, x_kv, idx, bias2d):
            # Projections: Q (scale pre-folded into Wq/bq) and fused K|V.
            q = jnp.dot(x_q, wq_ref[idx],
                        preferred_element_type=jnp.float32) + bq_ref[idx]
            kv = jnp.dot(x_kv, wkv_ref[idx],
                         preferred_element_type=jnp.float32) + bkv_ref[idx]
            k = kv[:, :E]
            v = kv[:, E:]
            # head_dim == 1: per-head scores are broadcast multiplies (pure VPU).
            # s: (n_q, n_kv, E); the block-diagonal (over batch) additive bias is
            # 2-D and broadcast over the head/lane axis.
            s = q[:, None, :] * k[None, :, :] + bias2d[:, :, None]
            m = jnp.maximum(jnp.max(s, axis=1, keepdims=True), NEG)
            p = jnp.exp(s - m)                                   # (n_q, n_kv, E)
            denom = jnp.maximum(jnp.sum(p, axis=1), 1e-30)       # (n_q, E)
            o = jnp.sum(p * v[None, :, :], axis=1)               # (n_q, E)
            o = o * pl.reciprocal(denom, approx=True)
            return jnp.dot(o, wo_ref[idx],
                           preferred_element_type=jnp.float32) + bo_ref[idx]

        def ffn(x, idx):
            h = jnp.dot(x, ffn_w1_ref[idx],
                        preferred_element_type=jnp.float32) + ffn_b1_ref[idx]
            h = jnp.maximum(h, 0.0)                              # relu
            return jnp.dot(h, ffn_w2_ref[idx],
                           preferred_element_type=jnp.float32) + ffn_b2_ref[idx]

        # ---- embeddings -----------------------------------------------------
        # src "embedding" = Linear(1, E): outer-product broadcast (pure VPU).
        src_emb = src_ref[...] * w_se_ref[...] + b_se_ref[...]   # (NS, E)
        tgt_emb = tgt_emb_ref[...]                               # (NT, E), gathered on host

        # ---- encoder layer (post-norm) + final encoder LayerNorm -------------
        x = src_emb
        x = layer_norm(x + mha(x, x, 0, b_enc_ref[...]), ln_g_ref[0], ln_b_ref[0])
        x = layer_norm(x + ffn(x, 0), ln_g_ref[1], ln_b_ref[1])
        memory = layer_norm(x, ln_g_ref[2], ln_b_ref[2])

        # ---- decoder layer (post-norm) + final decoder LayerNorm -------------
        y = tgt_emb
        y = layer_norm(y + mha(y, y, 1, b_dsa_ref[...]), ln_g_ref[3], ln_b_ref[3])
        y = layer_norm(y + mha(y, memory, 2, b_dca_ref[...]), ln_g_ref[4], ln_b_ref[4])
        y = layer_norm(y + ffn(y, 1), ln_g_ref[5], ln_b_ref[5])
        outs = layer_norm(y, ln_g_ref[6], ln_b_ref[6])

        # ---- generator (lane-dense: weights zero-padded to LANE outputs) -----
        out_ref[...] = (jnp.dot(outs, gen_w_ref[...],
                                preferred_element_type=jnp.float32) + gen_b_ref[...])

    return kernel


# ----------------------------- host-side glue --------------------------------

def _build_bias(attn_mask, key_padding_mask, N, Lq, Lk):
    """Additive attention bias, batch-flattened on both q and k axes.

    Returns (N*Lq, N*Lk) float32.  Off-(batch)-diagonal blocks are NEG so every
    query row attends over the full flattened key matrix while only its own
    batch element contributes."""
    per = jnp.zeros((N, Lq, Lk), jnp.float32)
    if attn_mask is not None:
        per = per + attn_mask.astype(jnp.float32)[None, :, :]
    if key_padding_mask is not None:
        per = per + jnp.where(key_padding_mask[:, None, :], NEG, 0.0)
    per = jnp.maximum(per, NEG)                 # -inf -> NEG (kernel stays inf-free)
    rows = []
    for n in range(N):
        blocks = [per[n] if m == n else jnp.full((Lq, Lk), NEG, jnp.float32)
                  for m in range(N)]
        rows.append(jnp.concatenate(blocks, axis=1))
    return jnp.concatenate(rows, axis=0)        # (N*Lq, N*Lk)


def seq2seq_forward(packed, src, trg, src_mask, tgt_mask,
                    src_padding_mask, tgt_padding_mask, memory_key_padding_mask,
                    *, output_dim):
    S, N, _ = src.shape
    T = trg.shape[0]
    E = packed['w_se'].shape[1]
    O_pad = packed['gen_w'].shape[1]

    # --- tiny one-time host prep: batch-major flatten, gather, mask biases ---
    src2 = jnp.transpose(src, (1, 0, 2)).reshape(N * S, 1).astype(jnp.float32)
    trg_flat = jnp.transpose(trg, (1, 0)).reshape(N * T)
    tgt_emb = jnp.take(packed['tgt_tab'], trg_flat, axis=0).astype(jnp.float32)
    b_enc = _build_bias(src_mask, src_padding_mask, N, S, S)
    b_dsa = _build_bias(tgt_mask, tgt_padding_mask, N, T, T)
    b_dca = _build_bias(None, memory_key_padding_mask, N, T, S)

    kernel = _make_fused_kernel(E)
    out = pl.pallas_call(
        kernel,
        out_shape=jax.ShapeDtypeStruct((N * T, O_pad), jnp.float32),
    )(src2, tgt_emb, b_enc, b_dsa, b_dca,
      packed['w_se'], packed['b_se'],
      packed['attn_wq'], packed['attn_bq'],
      packed['attn_wkv'], packed['attn_bkv'],
      packed['attn_wo'], packed['attn_bo'],
      packed['ffn_w1'], packed['ffn_b1'], packed['ffn_w2'], packed['ffn_b2'],
      packed['ln_g'], packed['ln_b'], packed['gen_w'], packed['gen_b'])

    out = out[:, :output_dim]                                  # drop lane padding
    return jnp.transpose(out.reshape(N, T, output_dim), (1, 0, 2))   # (T, N, O)


# ----------------------------- parameters ------------------------------------

def init_params(key, alphabet_size, output_dim, emb=8, ffdim=8):
    """Random weights in PyTorch layout (as they would come out of the nn.Module)."""
    vocab = alphabet_size + 1
    ks = iter(jax.random.split(key, 64))

    def w(shape, scale=0.1):
        return jax.random.normal(next(ks), shape, jnp.float32) * scale

    p = {}
    p['src_emb_w'] = w((emb, 1))            # nn.Linear(1, emb).weight
    p['src_emb_b'] = w((emb,))
    p['tgt_emb'] = w((vocab, emb), 1.0)     # nn.Embedding(vocab, emb).weight
    for pre in ['enc_sa', 'dec_sa', 'dec_ca']:
        p[pre + '_in_w'] = w((3 * emb, emb))
        p[pre + '_in_b'] = w((3 * emb,))
        p[pre + '_out_w'] = w((emb, emb))
        p[pre + '_out_b'] = w((emb,))
    for pre in ['enc', 'dec']:
        p[pre + '_lin1_w'] = w((ffdim, emb))
        p[pre + '_lin1_b'] = w((ffdim,))
        p[pre + '_lin2_w'] = w((emb, ffdim))
        p[pre + '_lin2_b'] = w((emb,))
    for name in LN_NAMES:
        p[name + '_g'] = jnp.ones((emb,), jnp.float32)
        p[name + '_b'] = jnp.zeros((emb,), jnp.float32)
    p['gen_w'] = w((output_dim, emb))
    p['gen_b'] = w((output_dim,))
    return p


def pack_params(p, nhead=8):
    """Pre-transpose / pre-stack / pre-pad PyTorch-layout weights into kernel layout."""
    E = p['src_emb_w'].shape[0]
    assert E % nhead == 0 and E // nhead == 1, "kernel assumes head_dim == 1"
    scale = 1.0 / math.sqrt(E // nhead)     # folded into Wq / bq below
    O = p['gen_w'].shape[0]
    O_pad = ((O + LANE - 1) // LANE) * LANE

    def mha_pack(pre):
        in_w, in_b = p[pre + '_in_w'], p[pre + '_in_b']
        wq = in_w[0:E].T * scale
        bq = in_b[0:E] * scale
        wkv = jnp.concatenate([in_w[E:2 * E].T, in_w[2 * E:3 * E].T], axis=1)  # (E, 2E)
        bkv = jnp.concatenate([in_b[E:2 * E], in_b[2 * E:3 * E]], axis=0)      # (2E,)
        return wq, bq, wkv, bkv, p[pre + '_out_w'].T, p[pre + '_out_b']

    packs = [mha_pack(pre) for pre in ['enc_sa', 'dec_sa', 'dec_ca']]
    wq, bq, wkv, bkv, wo, bo = (jnp.stack(z, axis=0) for z in zip(*packs))

    gen_w = jnp.zeros((E, O_pad), jnp.float32).at[:, :O].set(p['gen_w'].T)
    gen_b = jnp.zeros((1, O_pad), jnp.float32).at[0, :O].set(p['gen_b'])

    return {
        'w_se': p['src_emb_w'].T,                                           # (1, E)
        'b_se': p['src_emb_b'][None, :],                                    # (1, E)
        'tgt_tab': p['tgt_emb'],                                            # (V, E) host gather
        'attn_wq': wq,                 'attn_bq': bq[:, None, :],           # (3,E,E) / (3,1,E)
        'attn_wkv': wkv,               'attn_bkv': bkv[:, None, :],         # (3,E,2E) / (3,1,2E)
        'attn_wo': wo,                 'attn_bo': bo[:, None, :],           # (3,E,E) / (3,1,E)
        'ffn_w1': jnp.stack([p['enc_lin1_w'].T, p['dec_lin1_w'].T], 0),     # (2, E, F)
        'ffn_b1': jnp.stack([p['enc_lin1_b'], p['dec_lin1_b']], 0)[:, None, :],
        'ffn_w2': jnp.stack([p['enc_lin2_w'].T, p['dec_lin2_w'].T], 0),     # (2, F, E)
        'ffn_b2': jnp.stack([p['enc_lin2_b'], p['dec_lin2_b']], 0)[:, None, :],
        'ln_g': jnp.stack([p[n + '_g'] for n in LN_NAMES], 0)[:, None, :],  # (7, 1, E)
        'ln_b': jnp.stack([p[n + '_b'] for n in LN_NAMES], 0)[:, None, :],
        'gen_w': gen_w,                                                     # (E, O_pad)
        'gen_b': gen_b,                                                     # (1, O_pad)
    }


# ----------------------------------- main -------------------------------------

if __name__ == "__main__":
    S, T, N = 8, 6, 2            # src seq, tgt seq, batch
    EMB, NHEAD = 8, 8            # d_model=8, nhead=8 -> head_dim=1
    ALPHABET, OUT_DIM = 10, 5    # tgt vocab = alphabet_size + 1 = 11

    key = jax.random.PRNGKey(0)
    k_param, k_src, k_trg = jax.random.split(key, 3)
    params = init_params(k_param, ALPHABET, OUT_DIM, emb=EMB, ffdim=8)
    packed = pack_params(params, nhead=NHEAD)

    src = jax.random.normal(k_src, (S, N, 1), jnp.float32)
    trg = jax.random.randint(k_trg, (T, N), 0, ALPHABET + 1)

    src_mask = jnp.zeros((S, S), jnp.float32)
    causal = jnp.triu(jnp.ones((T, T), dtype=bool), k=1)
    tgt_mask = jnp.where(causal, -jnp.inf, 0.0).astype(jnp.float32)

    src_padding_mask = jnp.zeros((N, S), dtype=bool).at[1, S - 2:].set(True)
    tgt_padding_mask = jnp.zeros((N, T), dtype=bool).at[1, T - 1].set(True)
    memory_key_padding_mask = src_padding_mask

    fwd = jax.jit(seq2seq_forward, static_argnames=('output_dim',))
    out = fwd(packed, src, trg, src_mask, tgt_mask,
              src_padding_mask, tgt_padding_mask, memory_key_padding_mask,
              output_dim=OUT_DIM)
    out = jax.block_until_ready(out)
    assert out.shape == (T, N, OUT_DIM), out.shape
    assert bool(jnp.all(jnp.isfinite(out)))
    print("KERNEL_OK")
</pallas_src>

<mosaic_0001>
module attributes {stable_mosaic.version = 11 : i64} {
  func.func @kernel(%arg0: memref<16x1xf32, #tpu.memory_space<vmem>>, %arg1: memref<12x8xf32, #tpu.memory_space<vmem>>, %arg2: memref<16x16xf32, #tpu.memory_space<vmem>>, %arg3: memref<12x12xf32, #tpu.memory_space<vmem>>, %arg4: memref<12x16xf32, #tpu.memory_space<vmem>>, %arg5: memref<1x8xf32, #tpu.memory_space<vmem>>, %arg6: memref<1x8xf32, #tpu.memory_space<vmem>>, %arg7: memref<3x8x8xf32, #tpu.memory_space<vmem>>, %arg8: memref<3x1x8xf32, #tpu.memory_space<vmem>>, %arg9: memref<3x8x16xf32, #tpu.memory_space<vmem>>, %arg10: memref<3x1x16xf32, #tpu.memory_space<vmem>>, %arg11: memref<3x8x8xf32, #tpu.memory_space<vmem>>, %arg12: memref<3x1x8xf32, #tpu.memory_space<vmem>>, %arg13: memref<2x8x8xf32, #tpu.memory_space<vmem>>, %arg14: memref<2x1x8xf32, #tpu.memory_space<vmem>>, %arg15: memref<2x8x8xf32, #tpu.memory_space<vmem>>, %arg16: memref<2x1x8xf32, #tpu.memory_space<vmem>>, %arg17: memref<7x1x8xf32, #tpu.memory_space<vmem>>, %arg18: memref<7x1x8xf32, #tpu.memory_space<vmem>>, %arg19: memref<8x128xf32, #tpu.memory_space<vmem>>, %arg20: memref<1x128xf32, #tpu.memory_space<vmem>>, %arg21: memref<12x128xf32, #tpu.memory_space<vmem>>) attributes {dimension_semantics = [], scalar_prefetch = 0 : i64, scratch_operands = 0 : i64, tpu.core_type = #tpu.core_type<tc>} {
    %c0 = arith.constant 0 : index
    %c0_0 = arith.constant 0 : index
    %0 = vector.load %arg0[%c0, %c0_0] : memref<16x1xf32, #tpu.memory_space<vmem>>, vector<16x1xf32>
    %c0_1 = arith.constant 0 : index
    %c0_2 = arith.constant 0 : index
    %1 = vector.load %arg5[%c0_1, %c0_2] : memref<1x8xf32, #tpu.memory_space<vmem>>, vector<1x8xf32>
    %2 = vector.broadcast %0 : vector<16x1xf32> to vector<16x8xf32>
    %3 = vector.broadcast %1 : vector<1x8xf32> to vector<16x8xf32>
    %4 = arith.mulf %2, %3 : vector<16x8xf32>
    %c0_3 = arith.constant 0 : index
    %c0_4 = arith.constant 0 : index
    %5 = vector.load %arg6[%c0_3, %c0_4] : memref<1x8xf32, #tpu.memory_space<vmem>>, vector<1x8xf32>
    %6 = vector.broadcast %5 : vector<1x8xf32> to vector<16x8xf32>
    %7 = arith.addf %4, %6 : vector<16x8xf32>
    %c0_5 = arith.constant 0 : index
    %c0_6 = arith.constant 0 : index
    %8 = vector.load %arg1[%c0_5, %c0_6] : memref<12x8xf32, #tpu.memory_space<vmem>>, vector<12x8xf32>
    %c0_7 = arith.constant 0 : index
    %c0_8 = arith.constant 0 : index
    %9 = vector.load %arg2[%c0_7, %c0_8] : memref<16x16xf32, #tpu.memory_space<vmem>>, vector<16x16xf32>
    %c0_9 = arith.constant 0 : index
    %c0_10 = arith.constant 0 : index
    %c0_11 = arith.constant 0 : index
    %10 = vector.load %arg7[%c0_9, %c0_10, %c0_11] : memref<3x8x8xf32, #tpu.memory_space<vmem>>, vector<1x8x8xf32>
    %11 = vector.shape_cast %10 : vector<1x8x8xf32> to vector<8x8xf32>
    %cst = arith.constant dense<0.000000e+00> : vector<16x8xf32>
    %12 = tpu.matmul %7, %11, %cst {dimension_numbers = #tpu.dot_dimension_numbers<[1], [0], [0], [1], [0, 0, 1, 1], [], []>} : vector<16x8xf32>, vector<8x8xf32>, vector<16x8xf32> -> vector<16x8xf32>
    %c0_12 = arith.constant 0 : index
    %c0_13 = arith.constant 0 : index
    %c0_14 = arith.constant 0 : index
    %13 = vector.load %arg8[%c0_12, %c0_13, %c0_14] : memref<3x1x8xf32, #tpu.memory_space<vmem>>, vector<1x1x8xf32>
    %14 = vector.shape_cast %13 : vector<1x1x8xf32> to vector<1x8xf32>
    %15 = vector.broadcast %14 : vector<1x8xf32> to vector<16x8xf32>
    %16 = arith.addf %12, %15 : vector<16x8xf32>
    %c0_15 = arith.constant 0 : index
    %c0_16 = arith.constant 0 : index
    %c0_17 = arith.constant 0 : index
    %17 = vector.load %arg9[%c0_15, %c0_16, %c0_17] : memref<3x8x16xf32, #tpu.memory_space<vmem>>, vector<1x8x16xf32>
    %18 = vector.shape_cast %17 : vector<1x8x16xf32> to vector<8x16xf32>
    %cst_18 = arith.constant dense<0.000000e+00> : vector<16x16xf32>
    %19 = tpu.matmul %7, %18, %cst_18 {dimension_numbers = #tpu.dot_dimension_numbers<[1], [0], [0], [1], [0, 0, 1, 1], [], []>} : vector<16x8xf32>, vector<8x16xf32>, vector<16x16xf32> -> vector<16x16xf32>
    %c0_19 = arith.constant 0 : index
    %c0_20 = arith.constant 0 : index
    %c0_21 = arith.constant 0 : index
    %20 = vector.load %arg10[%c0_19, %c0_20, %c0_21] : memref<3x1x16xf32, #tpu.memory_space<vmem>>, vector<1x1x16xf32>
    %21 = vector.shape_cast %20 : vector<1x1x16xf32> to vector<1x16xf32>
    %22 = vector.broadcast %21 : vector<1x16xf32> to vector<16x16xf32>
    %23 = arith.addf %19, %22 : vector<16x16xf32>
    %24 = vector.extract_strided_slice %23 {offsets = [0, 0], sizes = [16, 8], strides = [1, 1]} : vector<16x16xf32> to vector<16x8xf32>
    %25 = vector.extract_strided_slice %23 {offsets = [0, 8], sizes = [16, 8], strides = [1, 1]} : vector<16x16xf32> to vector<16x8xf32>
    %26 = vector.shape_cast %16 : vector<16x8xf32> to vector<16x1x8xf32>
    %27 = vector.shape_cast %24 : vector<16x8xf32> to vector<1x16x8xf32>
    %28 = vector.broadcast %26 : vector<16x1x8xf32> to vector<16x16x8xf32>
    %29 = vector.broadcast %27 : vector<1x16x8xf32> to vector<16x16x8xf32>
    %30 = arith.mulf %28, %29 : vector<16x16x8xf32>
    %31 = vector.shape_cast %9 : vector<16x16xf32> to vector<16x16x1xf32>
    %32 = vector.broadcast %31 : vector<16x16x1xf32> to vector<16x16x8xf32>
    %33 = arith.addf %30, %32 : vector<16x16x8xf32>
    %cst_22 = arith.constant dense<0xFF800000> : vector<16x8xf32>
    %34 = vector.multi_reduction <maximumf>, %33, %cst_22 [1] : vector<16x16x8xf32> to vector<16x8xf32>
    %35 = vector.shape_cast %34 : vector<16x8xf32> to vector<16x1x8xf32>
    %cst_23 = arith.constant -1.000000e+30 : f32
    %36 = vector.broadcast %cst_23 : f32 to vector<16x1x8xf32>
    %37 = arith.maximumf %35, %36 : vector<16x1x8xf32>
    %38 = vector.broadcast %37 : vector<16x1x8xf32> to vector<16x16x8xf32>
    %39 = arith.subf %33, %38 : vector<16x16x8xf32>
    %40 = math.exp %39 : vector<16x16x8xf32>
    %cst_24 = arith.constant dense<0.000000e+00> : vector<16x8xf32>
    %41 = vector.multi_reduction <add>, %40, %cst_24 [1] : vector<16x16x8xf32> to vector<16x8xf32>
    %cst_25 = arith.constant 1.000000e-30 : f32
    %42 = vector.broadcast %cst_25 : f32 to vector<16x8xf32>
    %43 = arith.maximumf %41, %42 : vector<16x8xf32>
    %44 = vector.shape_cast %25 : vector<16x8xf32> to vector<1x16x8xf32>
    %45 = vector.broadcast %44 : vector<1x16x8xf32> to vector<16x16x8xf32>
    %46 = arith.mulf %40, %45 : vector<16x16x8xf32>
    %cst_26 = arith.constant dense<0.000000e+00> : vector<16x8xf32>
    %47 = vector.multi_reduction <add>, %46, %cst_26 [1] : vector<16x16x8xf32> to vector<16x8xf32>
    %48 = tpu.reciprocal %43 {approx = true} : vector<16x8xf32> -> vector<16x8xf32>
    %49 = arith.mulf %47, %48 : vector<16x8xf32>
    %c0_27 = arith.constant 0 : index
    %c0_28 = arith.constant 0 : index
    %c0_29 = arith.constant 0 : index
    %50 = vector.load %arg11[%c0_27, %c0_28, %c0_29] : memref<3x8x8xf32, #tpu.memory_space<vmem>>, vector<1x8x8xf32>
    %51 = vector.shape_cast %50 : vector<1x8x8xf32> to vector<8x8xf32>
    %cst_30 = arith.constant dense<0.000000e+00> : vector<16x8xf32>
    %52 = tpu.matmul %49, %51, %cst_30 {dimension_numbers = #tpu.dot_dimension_numbers<[1], [0], [0], [1], [0, 0, 1, 1], [], []>} : vector<16x8xf32>, vector<8x8xf32>, vector<16x8xf32> -> vector<16x8xf32>
    %c0_31 = arith.constant 0 : index
    %c0_32 = arith.constant 0 : index
    %c0_33 = arith.constant 0 : index
    %53 = vector.load %arg12[%c0_31, %c0_32, %c0_33] : memref<3x1x8xf32, #tpu.memory_space<vmem>>, vector<1x1x8xf32>
    %54 = vector.shape_cast %53 : vector<1x1x8xf32> to vector<1x8xf32>
    %55 = vector.broadcast %54 : vector<1x8xf32> to vector<16x8xf32>
    %56 = arith.addf %52, %55 : vector<16x8xf32>
    %57 = arith.addf %7, %56 : vector<16x8xf32>
    %c0_34 = arith.constant 0 : index
    %c0_35 = arith.constant 0 : index
    %c0_36 = arith.constant 0 : index
    %58 = vector.load %arg17[%c0_34, %c0_35, %c0_36] : memref<7x1x8xf32, #tpu.memory_space<vmem>>, vector<1x1x8xf32>
    %59 = vector.shape_cast %58 : vector<1x1x8xf32> to vector<1x8xf32>
    %c0_37 = arith.constant 0 : index
    %c0_38 = arith.constant 0 : index
    %c0_39 = arith.constant 0 : index
    %60 = vector.load %arg18[%c0_37, %c0_38, %c0_39] : memref<7x1x8xf32, #tpu.memory_space<vmem>>, vector<1x1x8xf32>
    %61 = vector.shape_cast %60 : vector<1x1x8xf32> to vector<1x8xf32>
    %cst_40 = arith.constant dense<0.000000e+00> : vector<16xf32>
    %62 = vector.multi_reduction <add>, %57, %cst_40 [1] : vector<16x8xf32> to vector<16xf32>
    %63 = vector.shape_cast %62 : vector<16xf32> to vector<16x1xf32>
    %cst_41 = arith.constant 8.000000e+00 : f32
    %64 = vector.broadcast %cst_41 : f32 to vector<16x1xf32>
    %65 = arith.divf %63, %64 : vector<16x1xf32>
    %66 = vector.broadcast %65 : vector<16x1xf32> to vector<16x8xf32>
    %67 = arith.subf %57, %66 : vector<16x8xf32>
    %68 = arith.mulf %67, %67 : vector<16x8xf32>
    %cst_42 = arith.constant dense<0.000000e+00> : vector<16xf32>
    %69 = vector.multi_reduction <add>, %68, %cst_42 [1] : vector<16x8xf32> to vector<16xf32>
    %70 = vector.shape_cast %69 : vector<16xf32> to vector<16x1xf32>
    %cst_43 = arith.constant 8.000000e+00 : f32
    %71 = vector.broadcast %cst_43 : f32 to vector<16x1xf32>
    %72 = arith.divf %70, %71 : vector<16x1xf32>
    %cst_44 = arith.constant 9.99999974E-6 : f32
    %73 = vector.broadcast %cst_44 : f32 to vector<16x1xf32>
    %74 = arith.addf %72, %73 : vector<16x1xf32>
    %75 = math.rsqrt %74 : vector<16x1xf32>
    %76 = vector.broadcast %75 : vector<16x1xf32> to vector<16x8xf32>
    %77 = arith.mulf %67, %76 : vector<16x8xf32>
    %78 = vector.broadcast %59 : vector<1x8xf32> to vector<16x8xf32>
    %79 = arith.mulf %77, %78 : vector<16x8xf32>
    %80 = vector.broadcast %61 : vector<1x8xf32> to vector<16x8xf32>
    %81 = arith.addf %79, %80 : vector<16x8xf32>
    %c0_45 = arith.constant 0 : index
    %c0_46 = arith.constant 0 : index
    %c0_47 = arith.constant 0 : index
    %82 = vector.load %arg13[%c0_45, %c0_46, %c0_47] : memref<2x8x8xf32, #tpu.memory_space<vmem>>, vector<1x8x8xf32>
    %83 = vector.shape_cast %82 : vector<1x8x8xf32> to vector<8x8xf32>
    %cst_48 = arith.constant dense<0.000000e+00> : vector<16x8xf32>
    %84 = tpu.matmul %81, %83, %cst_48 {dimension_numbers = #tpu.dot_dimension_numbers<[1], [0], [0], [1], [0, 0, 1, 1], [], []>} : vector<16x8xf32>, vector<8x8xf32>, vector<16x8xf32> -> vector<16x8xf32>
    %c0_49 = arith.constant 0 : index
    %c0_50 = arith.constant 0 : index
    %c0_51 = arith.constant 0 : index
    %85 = vector.load %arg14[%c0_49, %c0_50, %c0_51] : memref<2x1x8xf32, #tpu.memory_space<vmem>>, vector<1x1x8xf32>
    %86 = vector.shape_cast %85 : vector<1x1x8xf32> to vector<1x8xf32>
    %87 = vector.broadcast %86 : vector<1x8xf32> to vector<16x8xf32>
    %88 = arith.addf %84, %87 : vector<16x8xf32>
    %cst_52 = arith.constant 0.000000e+00 : f32
    %89 = vector.broadcast %cst_52 : f32 to vector<16x8xf32>
    %90 = arith.maximumf %88, %89 : vector<16x8xf32>
    %c0_53 = arith.constant 0 : index
    %c0_54 = arith.constant 0 : index
    %c0_55 = arith.constant 0 : index
    %91 = vector.load %arg15[%c0_53, %c0_54, %c0_55] : memref<2x8x8xf32, #tpu.memory_space<vmem>>, vector<1x8x8xf32>
    %92 = vector.shape_cast %91 : vector<1x8x8xf32> to vector<8x8xf32>
    %cst_56 = arith.constant dense<0.000000e+00> : vector<16x8xf32>
    %93 = tpu.matmul %90, %92, %cst_56 {dimension_numbers = #tpu.dot_dimension_numbers<[1], [0], [0], [1], [0, 0, 1, 1], [], []>} : vector<16x8xf32>, vector<8x8xf32>, vector<16x8xf32> -> vector<16x8xf32>
    %c0_57 = arith.constant 0 : index
    %c0_58 = arith.constant 0 : index
    %c0_59 = arith.constant 0 : index
    %94 = vector.load %arg16[%c0_57, %c0_58, %c0_59] : memref<2x1x8xf32, #tpu.memory_space<vmem>>, vector<1x1x8xf32>
    %95 = vector.shape_cast %94 : vector<1x1x8xf32> to vector<1x8xf32>
    %96 = vector.broadcast %95 : vector<1x8xf32> to vector<16x8xf32>
    %97 = arith.addf %93, %96 : vector<16x8xf32>
    %98 = arith.addf %81, %97 : vector<16x8xf32>
    %c1 = arith.constant 1 : index
    %c0_60 = arith.constant 0 : index
    %c0_61 = arith.constant 0 : index
    %99 = vector.load %arg17[%c1, %c0_60, %c0_61] : memref<7x1x8xf32, #tpu.memory_space<vmem>>, vector<1x1x8xf32>
    %100 = vector.shape_cast %99 : vector<1x1x8xf32> to vector<1x8xf32>
    %c1_62 = arith.constant 1 : index
    %c0_63 = arith.constant 0 : index
    %c0_64 = arith.constant 0 : index
    %101 = vector.load %arg18[%c1_62, %c0_63, %c0_64] : memref<7x1x8xf32, #tpu.memory_space<vmem>>, vector<1x1x8xf32>
    %102 = vector.shape_cast %101 : vector<1x1x8xf32> to vector<1x8xf32>
    %cst_65 = arith.constant dense<0.000000e+00> : vector<16xf32>
    %103 = vector.multi_reduction <add>, %98, %cst_65 [1] : vector<16x8xf32> to vector<16xf32>
    %104 = vector.shape_cast %103 : vector<16xf32> to vector<16x1xf32>
    %cst_66 = arith.constant 8.000000e+00 : f32
    %105 = vector.broadcast %cst_66 : f32 to vector<16x1xf32>
    %106 = arith.divf %104, %105 : vector<16x1xf32>
    %107 = vector.broadcast %106 : vector<16x1xf32> to vector<16x8xf32>
    %108 = arith.subf %98, %107 : vector<16x8xf32>
    %109 = arith.mulf %108, %108 : vector<16x8xf32>
    %cst_67 = arith.constant dense<0.000000e+00> : vector<16xf32>
    %110 = vector.multi_reduction <add>, %109, %cst_67 [1] : vector<16x8xf32> to vector<16xf32>
    %111 = vector.shape_cast %110 : vector<16xf32> to vector<16x1xf32>
    %cst_68 = arith.constant 8.000000e+00 : f32
    %112 = vector.broadcast %cst_68 : f32 to vector<16x1xf32>
    %113 = arith.divf %111, %112 : vector<16x1xf32>
    %cst_69 = arith.constant 9.99999974E-6 : f32
    %114 = vector.broadcast %cst_69 : f32 to vector<16x1xf32>
    %115 = arith.addf %113, %114 : vector<16x1xf32>
    %116 = math.rsqrt %115 : vector<16x1xf32>
    %117 = vector.broadcast %116 : vector<16x1xf32> to vector<16x8xf32>
    %118 = arith.mulf %108, %117 : vector<16x8xf32>
    %119 = vector.broadcast %100 : vector<1x8xf32> to vector<16x8xf32>
    %120 = arith.mulf %118, %119 : vector<16x8xf32>
    %121 = vector.broadcast %102 : vector<1x8xf32> to vector<16x8xf32>
    %122 = arith.addf %120, %121 : vector<16x8xf32>
    %c2 = arith.constant 2 : index
    %c0_70 = arith.constant 0 : index
    %c0_71 = arith.constant 0 : index
    %123 = vector.load %arg17[%c2, %c0_70, %c0_71] : memref<7x1x8xf32, #tpu.memory_space<vmem>>, vector<1x1x8xf32>
    %124 = vector.shape_cast %123 : vector<1x1x8xf32> to vector<1x8xf32>
    %c2_72 = arith.constant 2 : index
    %c0_73 = arith.constant 0 : index
    %c0_74 = arith.constant 0 : index
    %125 = vector.load %arg18[%c2_72, %c0_73, %c0_74] : memref<7x1x8xf32, #tpu.memory_space<vmem>>, vector<1x1x8xf32>
    %126 = vector.shape_cast %125 : vector<1x1x8xf32> to vector<1x8xf32>
    %cst_75 = arith.constant dense<0.000000e+00> : vector<16xf32>
    %127 = vector.multi_reduction <add>, %122, %cst_75 [1] : vector<16x8xf32> to vector<16xf32>
    %128 = vector.shape_cast %127 : vector<16xf32> to vector<16x1xf32>
    %cst_76 = arith.constant 8.000000e+00 : f32
    %129 = vector.broadcast %cst_76 : f32 to vector<16x1xf32>
    %130 = arith.divf %128, %129 : vector<16x1xf32>
    %131 = vector.broadcast %130 : vector<16x1xf32> to vector<16x8xf32>
    %132 = arith.subf %122, %131 : vector<16x8xf32>
    %133 = arith.mulf %132, %132 : vector<16x8xf32>
    %cst_77 = arith.constant dense<0.000000e+00> : vector<16xf32>
    %134 = vector.multi_reduction <add>, %133, %cst_77 [1] : vector<16x8xf32> to vector<16xf32>
    %135 = vector.shape_cast %134 : vector<16xf32> to vector<16x1xf32>
    %cst_78 = arith.constant 8.000000e+00 : f32
    %136 = vector.broadcast %cst_78 : f32 to vector<16x1xf32>
    %137 = arith.divf %135, %136 : vector<16x1xf32>
    %cst_79 = arith.constant 9.99999974E-6 : f32
    %138 = vector.broadcast %cst_79 : f32 to vector<16x1xf32>
    %139 = arith.addf %137, %138 : vector<16x1xf32>
    %140 = math.rsqrt %139 : vector<16x1xf32>
    %141 = vector.broadcast %140 : vector<16x1xf32> to vector<16x8xf32>
    %142 = arith.mulf %132, %141 : vector<16x8xf32>
    %143 = vector.broadcast %124 : vector<1x8xf32> to vector<16x8xf32>
    %144 = arith.mulf %142, %143 : vector<16x8xf32>
    %145 = vector.broadcast %126 : vector<1x8xf32> to vector<16x8xf32>
    %146 = arith.addf %144, %145 : vector<16x8xf32>
    %c0_80 = arith.constant 0 : index
    %c0_81 = arith.constant 0 : index
    %147 = vector.load %arg3[%c0_80, %c0_81] : memref<12x12xf32, #tpu.memory_space<vmem>>, vector<12x12xf32>
    %c1_82 = arith.constant 1 : index
    %c0_83 = arith.constant 0 : index
    %c0_84 = arith.constant 0 : index
    %148 = vector.load %arg7[%c1_82, %c0_83, %c0_84] : memref<3x8x8xf32, #tpu.memory_space<vmem>>, vector<1x8x8xf32>
    %149 = vector.shape_cast %148 : vector<1x8x8xf32> to vector<8x8xf32>
    %cst_85 = arith.constant dense<0.000000e+00> : vector<12x8xf32>
    %150 = tpu.matmul %8, %149, %cst_85 {dimension_numbers = #tpu.dot_dimension_numbers<[1], [0], [0], [1], [0, 0, 1, 1], [], []>} : vector<12x8xf32>, vector<8x8xf32>, vector<12x8xf32> -> vector<12x8xf32>
    %c1_86 = arith.constant 1 : index
    %c0_87 = arith.constant 0 : index
    %c0_88 = arith.constant 0 : index
    %151 = vector.load %arg8[%c1_86, %c0_87, %c0_88] : memref<3x1x8xf32, #tpu.memory_space<vmem>>, vector<1x1x8xf32>
    %152 = vector.shape_cast %151 : vector<1x1x8xf32> to vector<1x8xf32>
    %153 = vector.broadcast %152 : vector<1x8xf32> to vector<12x8xf32>
    %154 = arith.addf %150, %153 : vector<12x8xf32>
    %c1_89 = arith.constant 1 : index
    %c0_90 = arith.constant 0 : index
    %c0_91 = arith.constant 0 : index
    %155 = vector.load %arg9[%c1_89, %c0_90, %c0_91] : memref<3x8x16xf32, #tpu.memory_space<vmem>>, vector<1x8x16xf32>
    %156 = vector.shape_cast %155 : vector<1x8x16xf32> to vector<8x16xf32>
    %cst_92 = arith.constant dense<0.000000e+00> : vector<12x16xf32>
    %157 = tpu.matmul %8, %156, %cst_92 {dimension_numbers = #tpu.dot_dimension_numbers<[1], [0], [0], [1], [0, 0, 1, 1], [], []>} : vector<12x8xf32>, vector<8x16xf32>, vector<12x16xf32> -> vector<12x16xf32>
    %c1_93 = arith.constant 1 : index
    %c0_94 = arith.constant 0 : index
    %c0_95 = arith.constant 0 : index
    %158 = vector.load %arg10[%c1_93, %c0_94, %c0_95] : memref<3x1x16xf32, #tpu.memory_space<vmem>>, vector<1x1x16xf32>
    %159 = vector.shape_cast %158 : vector<1x1x16xf32> to vector<1x16xf32>
    %160 = vector.broadcast %159 : vector<1x16xf32> to vector<12x16xf32>
    %161 = arith.addf %157, %160 : vector<12x16xf32>
    %162 = vector.extract_strided_slice %161 {offsets = [0, 0], sizes = [12, 8], strides = [1, 1]} : vector<12x16xf32> to vector<12x8xf32>
    %163 = vector.extract_strided_slice %161 {offsets = [0, 8], sizes = [12, 8], strides = [1, 1]} : vector<12x16xf32> to vector<12x8xf32>
    %164 = vector.shape_cast %154 : vector<12x8xf32> to vector<12x1x8xf32>
    %165 = vector.shape_cast %162 : vector<12x8xf32> to vector<1x12x8xf32>
    %166 = vector.broadcast %164 : vector<12x1x8xf32> to vector<12x12x8xf32>
    %167 = vector.broadcast %165 : vector<1x12x8xf32> to vector<12x12x8xf32>
    %168 = arith.mulf %166, %167 : vector<12x12x8xf32>
    %169 = vector.shape_cast %147 : vector<12x12xf32> to vector<12x12x1xf32>
    %170 = vector.broadcast %169 : vector<12x12x1xf32> to vector<12x12x8xf32>
    %171 = arith.addf %168, %170 : vector<12x12x8xf32>
    %cst_96 = arith.constant dense<0xFF800000> : vector<12x8xf32>
    %172 = vector.multi_reduction <maximumf>, %171, %cst_96 [1] : vector<12x12x8xf32> to vector<12x8xf32>
    %173 = vector.shape_cast %172 : vector<12x8xf32> to vector<12x1x8xf32>
    %cst_97 = arith.constant -1.000000e+30 : f32
    %174 = vector.broadcast %cst_97 : f32 to vector<12x1x8xf32>
    %175 = arith.maximumf %173, %174 : vector<12x1x8xf32>
    %176 = vector.broadcast %175 : vector<12x1x8xf32> to vector<12x12x8xf32>
    %177 = arith.subf %171, %176 : vector<12x12x8xf32>
    %178 = math.exp %177 : vector<12x12x8xf32>
    %cst_98 = arith.constant dense<0.000000e+00> : vector<12x8xf32>
    %179 = vector.multi_reduction <add>, %178, %cst_98 [1] : vector<12x12x8xf32> to vector<12x8xf32>
    %cst_99 = arith.constant 1.000000e-30 : f32
    %180 = vector.broadcast %cst_99 : f32 to vector<12x8xf32>
    %181 = arith.maximumf %179, %180 : vector<12x8xf32>
    %182 = vector.shape_cast %163 : vector<12x8xf32> to vector<1x12x8xf32>
    %183 = vector.broadcast %182 : vector<1x12x8xf32> to vector<12x12x8xf32>
    %184 = arith.mulf %178, %183 : vector<12x12x8xf32>
    %cst_100 = arith.constant dense<0.000000e+00> : vector<12x8xf32>
    %185 = vector.multi_reduction <add>, %184, %cst_100 [1] : vector<12x12x8xf32> to vector<12x8xf32>
    %186 = tpu.reciprocal %181 {approx = true} : vector<12x8xf32> -> vector<12x8xf32>
    %187 = arith.mulf %185, %186 : vector<12x8xf32>
    %c1_101 = arith.constant 1 : index
    %c0_102 = arith.constant 0 : index
    %c0_103 = arith.constant 0 : index
    %188 = vector.load %arg11[%c1_101, %c0_102, %c0_103] : memref<3x8x8xf32, #tpu.memory_space<vmem>>, vector<1x8x8xf32>
    %189 = vector.shape_cast %188 : vector<1x8x8xf32> to vector<8x8xf32>
    %cst_104 = arith.constant dense<0.000000e+00> : vector<12x8xf32>
    %190 = tpu.matmul %187, %189, %cst_104 {dimension_numbers = #tpu.dot_dimension_numbers<[1], [0], [0], [1], [0, 0, 1, 1], [], []>} : vector<12x8xf32>, vector<8x8xf32>, vector<12x8xf32> -> vector<12x8xf32>
    %c1_105 = arith.constant 1 : index
    %c0_106 = arith.constant 0 : index
    %c0_107 = arith.constant 0 : index
    %191 = vector.load %arg12[%c1_105, %c0_106, %c0_107] : memref<3x1x8xf32, #tpu.memory_space<vmem>>, vector<1x1x8xf32>
    %192 = vector.shape_cast %191 : vector<1x1x8xf32> to vector<1x8xf32>
    %193 = vector.broadcast %192 : vector<1x8xf32> to vector<12x8xf32>
    %194 = arith.addf %190, %193 : vector<12x8xf32>
    %195 = arith.addf %8, %194 : vector<12x8xf32>
    %c3 = arith.constant 3 : index
    %c0_108 = arith.constant 0 : index
    %c0_109 = arith.constant 0 : index
    %196 = vector.load %arg17[%c3, %c0_108, %c0_109] : memref<7x1x8xf32, #tpu.memory_space<vmem>>, vector<1x1x8xf32>
    %197 = vector.shape_cast %196 : vector<1x1x8xf32> to vector<1x8xf32>
    %c3_110 = arith.constant 3 : index
    %c0_111 = arith.constant 0 : index
    %c0_112 = arith.constant 0 : index
    %198 = vector.load %arg18[%c3_110, %c0_111, %c0_112] : memref<7x1x8xf32, #tpu.memory_space<vmem>>, vector<1x1x8xf32>
    %199 = vector.shape_cast %198 : vector<1x1x8xf32> to vector<1x8xf32>
    %cst_113 = arith.constant dense<0.000000e+00> : vector<12xf32>
    %200 = vector.multi_reduction <add>, %195, %cst_113 [1] : vector<12x8xf32> to vector<12xf32>
    %201 = vector.shape_cast %200 : vector<12xf32> to vector<12x1xf32>
    %cst_114 = arith.constant 8.000000e+00 : f32
    %202 = vector.broadcast %cst_114 : f32 to vector<12x1xf32>
    %203 = arith.divf %201, %202 : vector<12x1xf32>
    %204 = vector.broadcast %203 : vector<12x1xf32> to vector<12x8xf32>
    %205 = arith.subf %195, %204 : vector<12x8xf32>
    %206 = arith.mulf %205, %205 : vector<12x8xf32>
    %cst_115 = arith.constant dense<0.000000e+00> : vector<12xf32>
    %207 = vector.multi_reduction <add>, %206, %cst_115 [1] : vector<12x8xf32> to vector<12xf32>
    %208 = vector.shape_cast %207 : vector<12xf32> to vector<12x1xf32>
    %cst_116 = arith.constant 8.000000e+00 : f32
    %209 = vector.broadcast %cst_116 : f32 to vector<12x1xf32>
    %210 = arith.divf %208, %209 : vector<12x1xf32>
    %cst_117 = arith.constant 9.99999974E-6 : f32
    %211 = vector.broadcast %cst_117 : f32 to vector<12x1xf32>
    %212 = arith.addf %210, %211 : vector<12x1xf32>
    %213 = math.rsqrt %212 : vector<12x1xf32>
    %214 = vector.broadcast %213 : vector<12x1xf32> to vector<12x8xf32>
    %215 = arith.mulf %205, %214 : vector<12x8xf32>
    %216 = vector.broadcast %197 : vector<1x8xf32> to vector<12x8xf32>
    %217 = arith.mulf %215, %216 : vector<12x8xf32>
    %218 = vector.broadcast %199 : vector<1x8xf32> to vector<12x8xf32>
    %219 = arith.addf %217, %218 : vector<12x8xf32>
    %c0_118 = arith.constant 0 : index
    %c0_119 = arith.constant 0 : index
    %220 = vector.load %arg4[%c0_118, %c0_119] : memref<12x16xf32, #tpu.memory_space<vmem>>, vector<12x16xf32>
    %c2_120 = arith.constant 2 : index
    %c0_121 = arith.constant 0 : index
    %c0_122 = arith.constant 0 : index
    %221 = vector.load %arg7[%c2_120, %c0_121, %c0_122] : memref<3x8x8xf32, #tpu.memory_space<vmem>>, vector<1x8x8xf32>
    %222 = vector.shape_cast %221 : vector<1x8x8xf32> to vector<8x8xf32>
    %cst_123 = arith.constant dense<0.000000e+00> : vector<12x8xf32>
    %223 = tpu.matmul %219, %222, %cst_123 {dimension_numbers = #tpu.dot_dimension_numbers<[1], [0], [0], [1], [0, 0, 1, 1], [], []>} : vector<12x8xf32>, vector<8x8xf32>, vector<12x8xf32> -> vector<12x8xf32>
    %c2_124 = arith.constant 2 : index
    %c0_125 = arith.constant 0 : index
    %c0_126 = arith.constant 0 : index
    %224 = vector.load %arg8[%c2_124, %c0_125, %c0_126] : memref<3x1x8xf32, #tpu.memory_space<vmem>>, vector<1x1x8xf32>
    %225 = vector.shape_cast %224 : vector<1x1x8xf32> to vector<1x8xf32>
    %226 = vector.broadcast %225 : vector<1x8xf32> to vector<12x8xf32>
    %227 = arith.addf %223, %226 : vector<12x8xf32>
    %c2_127 = arith.constant 2 : index
    %c0_128 = arith.constant 0 : index
    %c0_129 = arith.constant 0 : index
    %228 = vector.load %arg9[%c2_127, %c0_128, %c0_129] : memref<3x8x16xf32, #tpu.memory_space<vmem>>, vector<1x8x16xf32>
    %229 = vector.shape_cast %228 : vector<1x8x16xf32> to vector<8x16xf32>
    %cst_130 = arith.constant dense<0.000000e+00> : vector<16x16xf32>
    %230 = tpu.matmul %146, %229, %cst_130 {dimension_numbers = #tpu.dot_dimension_numbers<[1], [0], [0], [1], [0, 0, 1, 1], [], []>} : vector<16x8xf32>, vector<8x16xf32>, vector<16x16xf32> -> vector<16x16xf32>
    %c2_131 = arith.constant 2 : index
    %c0_132 = arith.constant 0 : index
    %c0_133 = arith.constant 0 : index
    %231 = vector.load %arg10[%c2_131, %c0_132, %c0_133] : memref<3x1x16xf32, #tpu.memory_space<vmem>>, vector<1x1x16xf32>
    %232 = vector.shape_cast %231 : vector<1x1x16xf32> to vector<1x16xf32>
    %233 = vector.broadcast %232 : vector<1x16xf32> to vector<16x16xf32>
    %234 = arith.addf %230, %233 : vector<16x16xf32>
    %235 = vector.extract_strided_slice %234 {offsets = [0, 0], sizes = [16, 8], strides = [1, 1]} : vector<16x16xf32> to vector<16x8xf32>
    %236 = vector.extract_strided_slice %234 {offsets = [0, 8], sizes = [16, 8], strides = [1, 1]} : vector<16x16xf32> to vector<16x8xf32>
    %237 = vector.shape_cast %227 : vector<12x8xf32> to vector<12x1x8xf32>
    %238 = vector.shape_cast %235 : vector<16x8xf32> to vector<1x16x8xf32>
    %239 = vector.broadcast %237 : vector<12x1x8xf32> to vector<12x16x8xf32>
    %240 = vector.broadcast %238 : vector<1x16x8xf32> to vector<12x16x8xf32>
    %241 = arith.mulf %239, %240 : vector<12x16x8xf32>
    %242 = vector.shape_cast %220 : vector<12x16xf32> to vector<12x16x1xf32>
    %243 = vector.broadcast %242 : vector<12x16x1xf32> to vector<12x16x8xf32>
    %244 = arith.addf %241, %243 : vector<12x16x8xf32>
    %cst_134 = arith.constant dense<0xFF800000> : vector<12x8xf32>
    %245 = vector.multi_reduction <maximumf>, %244, %cst_134 [1] : vector<12x16x8xf32> to vector<12x8xf32>
    %246 = vector.shape_cast %245 : vector<12x8xf32> to vector<12x1x8xf32>
    %cst_135 = arith.constant -1.000000e+30 : f32
    %247 = vector.broadcast %cst_135 : f32 to vector<12x1x8xf32>
    %248 = arith.maximumf %246, %247 : vector<12x1x8xf32>
    %249 = vector.broadcast %248 : vector<12x1x8xf32> to vector<12x16x8xf32>
    %250 = arith.subf %244, %249 : vector<12x16x8xf32>
    %251 = math.exp %250 : vector<12x16x8xf32>
    %cst_136 = arith.constant dense<0.000000e+00> : vector<12x8xf32>
    %252 = vector.multi_reduction <add>, %251, %cst_136 [1] : vector<12x16x8xf32> to vector<12x8xf32>
    %cst_137 = arith.constant 1.000000e-30 : f32
    %253 = vector.broadcast %cst_137 : f32 to vector<12x8xf32>
    %254 = arith.maximumf %252, %253 : vector<12x8xf32>
    %255 = vector.shape_cast %236 : vector<16x8xf32> to vector<1x16x8xf32>
    %256 = vector.broadcast %255 : vector<1x16x8xf32> to vector<12x16x8xf32>
    %257 = arith.mulf %251, %256 : vector<12x16x8xf32>
    %cst_138 = arith.constant dense<0.000000e+00> : vector<12x8xf32>
    %258 = vector.multi_reduction <add>, %257, %cst_138 [1] : vector<12x16x8xf32> to vector<12x8xf32>
    %259 = tpu.reciprocal %254 {approx = true} : vector<12x8xf32> -> vector<12x8xf32>
    %260 = arith.mulf %258, %259 : vector<12x8xf32>
    %c2_139 = arith.constant 2 : index
    %c0_140 = arith.constant 0 : index
    %c0_141 = arith.constant 0 : index
    %261 = vector.load %arg11[%c2_139, %c0_140, %c0_141] : memref<3x8x8xf32, #tpu.memory_space<vmem>>, vector<1x8x8xf32>
    %262 = vector.shape_cast %261 : vector<1x8x8xf32> to vector<8x8xf32>
    %cst_142 = arith.constant dense<0.000000e+00> : vector<12x8xf32>
    %263 = tpu.matmul %260, %262, %cst_142 {dimension_numbers = #tpu.dot_dimension_numbers<[1], [0], [0], [1], [0, 0, 1, 1], [], []>} : vector<12x8xf32>, vector<8x8xf32>, vector<12x8xf32> -> vector<12x8xf32>
    %c2_143 = arith.constant 2 : index
    %c0_144 = arith.constant 0 : index
    %c0_145 = arith.constant 0 : index
    %264 = vector.load %arg12[%c2_143, %c0_144, %c0_145] : memref<3x1x8xf32, #tpu.memory_space<vmem>>, vector<1x1x8xf32>
    %265 = vector.shape_cast %264 : vector<1x1x8xf32> to vector<1x8xf32>
    %266 = vector.broadcast %265 : vector<1x8xf32> to vector<12x8xf32>
    %267 = arith.addf %263, %266 : vector<12x8xf32>
    %268 = arith.addf %219, %267 : vector<12x8xf32>
    %c4 = arith.constant 4 : index
    %c0_146 = arith.constant 0 : index
    %c0_147 = arith.constant 0 : index
    %269 = vector.load %arg17[%c4, %c0_146, %c0_147] : memref<7x1x8xf32, #tpu.memory_space<vmem>>, vector<1x1x8xf32>
    %270 = vector.shape_cast %269 : vector<1x1x8xf32> to vector<1x8xf32>
    %c4_148 = arith.constant 4 : index
    %c0_149 = arith.constant 0 : index
    %c0_150 = arith.constant 0 : index
    %271 = vector.load %arg18[%c4_148, %c0_149, %c0_150] : memref<7x1x8xf32, #tpu.memory_space<vmem>>, vector<1x1x8xf32>
    %272 = vector.shape_cast %271 : vector<1x1x8xf32> to vector<1x8xf32>
    %cst_151 = arith.constant dense<0.000000e+00> : vector<12xf32>
    %273 = vector.multi_reduction <add>, %268, %cst_151 [1] : vector<12x8xf32> to vector<12xf32>
    %274 = vector.shape_cast %273 : vector<12xf32> to vector<12x1xf32>
    %cst_152 = arith.constant 8.000000e+00 : f32
    %275 = vector.broadcast %cst_152 : f32 to vector<12x1xf32>
    %276 = arith.divf %274, %275 : vector<12x1xf32>
    %277 = vector.broadcast %276 : vector<12x1xf32> to vector<12x8xf32>
    %278 = arith.subf %268, %277 : vector<12x8xf32>
    %279 = arith.mulf %278, %278 : vector<12x8xf32>
    %cst_153 = arith.constant dense<0.000000e+00> : vector<12xf32>
    %280 = vector.multi_reduction <add>, %279, %cst_153 [1] : vector<12x8xf32> to vector<12xf32>
    %281 = vector.shape_cast %280 : vector<12xf32> to vector<12x1xf32>
    %cst_154 = arith.constant 8.000000e+00 : f32
    %282 = vector.broadcast %cst_154 : f32 to vector<12x1xf32>
    %283 = arith.divf %281, %282 : vector<12x1xf32>
    %cst_155 = arith.constant 9.99999974E-6 : f32
    %284 = vector.broadcast %cst_155 : f32 to vector<12x1xf32>
    %285 = arith.addf %283, %284 : vector<12x1xf32>
    %286 = math.rsqrt %285 : vector<12x1xf32>
    %287 = vector.broadcast %286 : vector<12x1xf32> to vector<12x8xf32>
    %288 = arith.mulf %278, %287 : vector<12x8xf32>
    %289 = vector.broadcast %270 : vector<1x8xf32> to vector<12x8xf32>
    %290 = arith.mulf %288, %289 : vector<12x8xf32>
    %291 = vector.broadcast %272 : vector<1x8xf32> to vector<12x8xf32>
    %292 = arith.addf %290, %291 : vector<12x8xf32>
    %c1_156 = arith.constant 1 : index
    %c0_157 = arith.constant 0 : index
    %c0_158 = arith.constant 0 : index
    %293 = vector.load %arg13[%c1_156, %c0_157, %c0_158] : memref<2x8x8xf32, #tpu.memory_space<vmem>>, vector<1x8x8xf32>
    %294 = vector.shape_cast %293 : vector<1x8x8xf32> to vector<8x8xf32>
    %cst_159 = arith.constant dense<0.000000e+00> : vector<12x8xf32>
    %295 = tpu.matmul %292, %294, %cst_159 {dimension_numbers = #tpu.dot_dimension_numbers<[1], [0], [0], [1], [0, 0, 1, 1], [], []>} : vector<12x8xf32>, vector<8x8xf32>, vector<12x8xf32> -> vector<12x8xf32>
    %c1_160 = arith.constant 1 : index
    %c0_161 = arith.constant 0 : index
    %c0_162 = arith.constant 0 : index
    %296 = vector.load %arg14[%c1_160, %c0_161, %c0_162] : memref<2x1x8xf32, #tpu.memory_space<vmem>>, vector<1x1x8xf32>
    %297 = vector.shape_cast %296 : vector<1x1x8xf32> to vector<1x8xf32>
    %298 = vector.broadcast %297 : vector<1x8xf32> to vector<12x8xf32>
    %299 = arith.addf %295, %298 : vector<12x8xf32>
    %cst_163 = arith.constant 0.000000e+00 : f32
    %300 = vector.broadcast %cst_163 : f32 to vector<12x8xf32>
    %301 = arith.maximumf %299, %300 : vector<12x8xf32>
    %c1_164 = arith.constant 1 : index
    %c0_165 = arith.constant 0 : index
    %c0_166 = arith.constant 0 : index
    %302 = vector.load %arg15[%c1_164, %c0_165, %c0_166] : memref<2x8x8xf32, #tpu.memory_space<vmem>>, vector<1x8x8xf32>
    %303 = vector.shape_cast %302 : vector<1x8x8xf32> to vector<8x8xf32>
    %cst_167 = arith.constant dense<0.000000e+00> : vector<12x8xf32>
    %304 = tpu.matmul %301, %303, %cst_167 {dimension_numbers = #tpu.dot_dimension_numbers<[1], [0], [0], [1], [0, 0, 1, 1], [], []>} : vector<12x8xf32>, vector<8x8xf32>, vector<12x8xf32> -> vector<12x8xf32>
    %c1_168 = arith.constant 1 : index
    %c0_169 = arith.constant 0 : index
    %c0_170 = arith.constant 0 : index
    %305 = vector.load %arg16[%c1_168, %c0_169, %c0_170] : memref<2x1x8xf32, #tpu.memory_space<vmem>>, vector<1x1x8xf32>
    %306 = vector.shape_cast %305 : vector<1x1x8xf32> to vector<1x8xf32>
    %307 = vector.broadcast %306 : vector<1x8xf32> to vector<12x8xf32>
    %308 = arith.addf %304, %307 : vector<12x8xf32>
    %309 = arith.addf %292, %308 : vector<12x8xf32>
    %c5 = arith.constant 5 : index
    %c0_171 = arith.constant 0 : index
    %c0_172 = arith.constant 0 : index
    %310 = vector.load %arg17[%c5, %c0_171, %c0_172] : memref<7x1x8xf32, #tpu.memory_space<vmem>>, vector<1x1x8xf32>
    %311 = vector.shape_cast %310 : vector<1x1x8xf32> to vector<1x8xf32>
    %c5_173 = arith.constant 5 : index
    %c0_174 = arith.constant 0 : index
    %c0_175 = arith.constant 0 : index
    %312 = vector.load %arg18[%c5_173, %c0_174, %c0_175] : memref<7x1x8xf32, #tpu.memory_space<vmem>>, vector<1x1x8xf32>
    %313 = vector.shape_cast %312 : vector<1x1x8xf32> to vector<1x8xf32>
    %cst_176 = arith.constant dense<0.000000e+00> : vector<12xf32>
    %314 = vector.multi_reduction <add>, %309, %cst_176 [1] : vector<12x8xf32> to vector<12xf32>
    %315 = vector.shape_cast %314 : vector<12xf32> to vector<12x1xf32>
    %cst_177 = arith.constant 8.000000e+00 : f32
    %316 = vector.broadcast %cst_177 : f32 to vector<12x1xf32>
    %317 = arith.divf %315, %316 : vector<12x1xf32>
    %318 = vector.broadcast %317 : vector<12x1xf32> to vector<12x8xf32>
    %319 = arith.subf %309, %318 : vector<12x8xf32>
    %320 = arith.mulf %319, %319 : vector<12x8xf32>
    %cst_178 = arith.constant dense<0.000000e+00> : vector<12xf32>
    %321 = vector.multi_reduction <add>, %320, %cst_178 [1] : vector<12x8xf32> to vector<12xf32>
    %322 = vector.shape_cast %321 : vector<12xf32> to vector<12x1xf32>
    %cst_179 = arith.constant 8.000000e+00 : f32
    %323 = vector.broadcast %cst_179 : f32 to vector<12x1xf32>
    %324 = arith.divf %322, %323 : vector<12x1xf32>
    %cst_180 = arith.constant 9.99999974E-6 : f32
    %325 = vector.broadcast %cst_180 : f32 to vector<12x1xf32>
    %326 = arith.addf %324, %325 : vector<12x1xf32>
    %327 = math.rsqrt %326 : vector<12x1xf32>
    %328 = vector.broadcast %327 : vector<12x1xf32> to vector<12x8xf32>
    %329 = arith.mulf %319, %328 : vector<12x8xf32>
    %330 = vector.broadcast %311 : vector<1x8xf32> to vector<12x8xf32>
    %331 = arith.mulf %329, %330 : vector<12x8xf32>
    %332 = vector.broadcast %313 : vector<1x8xf32> to vector<12x8xf32>
    %333 = arith.addf %331, %332 : vector<12x8xf32>
    %c6 = arith.constant 6 : index
    %c0_181 = arith.constant 0 : index
    %c0_182 = arith.constant 0 : index
    %334 = vector.load %arg17[%c6, %c0_181, %c0_182] : memref<7x1x8xf32, #tpu.memory_space<vmem>>, vector<1x1x8xf32>
    %335 = vector.shape_cast %334 : vector<1x1x8xf32> to vector<1x8xf32>
    %c6_183 = arith.constant 6 : index
    %c0_184 = arith.constant 0 : index
    %c0_185 = arith.constant 0 : index
    %336 = vector.load %arg18[%c6_183, %c0_184, %c0_185] : memref<7x1x8xf32, #tpu.memory_space<vmem>>, vector<1x1x8xf32>
    %337 = vector.shape_cast %336 : vector<1x1x8xf32> to vector<1x8xf32>
    %cst_186 = arith.constant dense<0.000000e+00> : vector<12xf32>
    %338 = vector.multi_reduction <add>, %333, %cst_186 [1] : vector<12x8xf32> to vector<12xf32>
    %339 = vector.shape_cast %338 : vector<12xf32> to vector<12x1xf32>
    %cst_187 = arith.constant 8.000000e+00 : f32
    %340 = vector.broadcast %cst_187 : f32 to vector<12x1xf32>
    %341 = arith.divf %339, %340 : vector<12x1xf32>
    %342 = vector.broadcast %341 : vector<12x1xf32> to vector<12x8xf32>
    %343 = arith.subf %333, %342 : vector<12x8xf32>
    %344 = arith.mulf %343, %343 : vector<12x8xf32>
    %cst_188 = arith.constant dense<0.000000e+00> : vector<12xf32>
    %345 = vector.multi_reduction <add>, %344, %cst_188 [1] : vector<12x8xf32> to vector<12xf32>
    %346 = vector.shape_cast %345 : vector<12xf32> to vector<12x1xf32>
    %cst_189 = arith.constant 8.000000e+00 : f32
    %347 = vector.broadcast %cst_189 : f32 to vector<12x1xf32>
    %348 = arith.divf %346, %347 : vector<12x1xf32>
    %cst_190 = arith.constant 9.99999974E-6 : f32
    %349 = vector.broadcast %cst_190 : f32 to vector<12x1xf32>
    %350 = arith.addf %348, %349 : vector<12x1xf32>
    %351 = math.rsqrt %350 : vector<12x1xf32>
    %352 = vector.broadcast %351 : vector<12x1xf32> to vector<12x8xf32>
    %353 = arith.mulf %343, %352 : vector<12x8xf32>
    %354 = vector.broadcast %335 : vector<1x8xf32> to vector<12x8xf32>
    %355 = arith.mulf %353, %354 : vector<12x8xf32>
    %356 = vector.broadcast %337 : vector<1x8xf32> to vector<12x8xf32>
    %357 = arith.addf %355, %356 : vector<12x8xf32>
    %c0_191 = arith.constant 0 : index
    %c0_192 = arith.constant 0 : index
    %358 = vector.load %arg19[%c0_191, %c0_192] : memref<8x128xf32, #tpu.memory_space<vmem>>, vector<8x128xf32>
    %cst_193 = arith.constant dense<0.000000e+00> : vector<12x128xf32>
    %359 = tpu.matmul %357, %358, %cst_193 {dimension_numbers = #tpu.dot_dimension_numbers<[1], [0], [0], [1], [0, 0, 1, 1], [], []>} : vector<12x8xf32>, vector<8x128xf32>, vector<12x128xf32> -> vector<12x128xf32>
    %c0_194 = arith.constant 0 : index
    %c0_195 = arith.constant 0 : index
    %360 = vector.load %arg20[%c0_194, %c0_195] : memref<1x128xf32, #tpu.memory_space<vmem>>, vector<1x128xf32>
    %361 = vector.broadcast %360 : vector<1x128xf32> to vector<12x128xf32>
    %362 = arith.addf %359, %361 : vector<12x128xf32>
    %c0_196 = arith.constant 0 : index
    %c0_197 = arith.constant 0 : index
    %363 = vector.load %arg21[%c0_196, %c0_197] : memref<12x128xf32, #tpu.memory_space<vmem>>, vector<12x128xf32>
    tpu.vector_store %arg21[%c0_196, %c0_197], %362 {strides = array<i32>} : memref<12x128xf32, #tpu.memory_space<vmem>>, vector<12x128xf32>,
    return
  }
}

</mosaic_0001>

<llo_original>
// kernel: seq2seq_forward.1
$region0: #{seq2seq_forward.1}
  #allocation0 [shape = 'u32[]', space=smem, size = 0x4, offset = 0x4, fixed_abs, tag = 'smem constant byte address 0x4 - core index']
  #allocation1 [shape = 'u32[144,128]{1,0:T(1,128)}', space=vmem, size = 0x12000, scoped, tag = 'internal scratch']
  %s0 = inlined_call_operand.vmem [shape: f32[16,1], index: 0, kind: input, shape index: {}]
  %s1 = inlined_call_operand.vmem [shape: f32[12,8], index: 1, kind: input, shape index: {}]
  %s2 = inlined_call_operand.vmem [shape: f32[16,16], index: 2, kind: input, shape index: {}]
  %s3 = inlined_call_operand.vmem [shape: f32[12,12], index: 3, kind: input, shape index: {}]
  %s4 = inlined_call_operand.vmem [shape: f32[12,16], index: 4, kind: input, shape index: {}]
  %s5 = inlined_call_operand.vmem [shape: f32[1,8], index: 5, kind: input, shape index: {}]
  %s6 = inlined_call_operand.vmem [shape: f32[1,8], index: 6, kind: input, shape index: {}]
  %s7 = inlined_call_operand.vmem [shape: f32[3,8,8], index: 7, kind: input, shape index: {}]
  %s8 = inlined_call_operand.vmem [shape: f32[3,1,8], index: 8, kind: input, shape index: {}]
  %s9 = inlined_call_operand.vmem [shape: f32[3,8,16], index: 9, kind: input, shape index: {}]
  %s10 = inlined_call_operand.vmem [shape: f32[3,1,16], index: 10, kind: input, shape index: {}]
  %s11 = inlined_call_operand.vmem [shape: f32[3,8,8], index: 11, kind: input, shape index: {}]
  %s12 = inlined_call_operand.vmem [shape: f32[3,1,8], index: 12, kind: input, shape index: {}]
  %s13 = inlined_call_operand.vmem [shape: f32[2,8,8], index: 13, kind: input, shape index: {}]
  %s14 = inlined_call_operand.vmem [shape: f32[2,1,8], index: 14, kind: input, shape index: {}]
  %s15 = inlined_call_operand.vmem [shape: f32[2,8,8], index: 15, kind: input, shape index: {}]
  %s16 = inlined_call_operand.vmem [shape: f32[2,1,8], index: 16, kind: input, shape index: {}]
  %s17 = inlined_call_operand.vmem [shape: f32[7,1,8], index: 17, kind: input, shape index: {}]
  %s18 = inlined_call_operand.vmem [shape: f32[7,1,8], index: 18, kind: input, shape index: {}]
  %s19 = inlined_call_operand.vmem [shape: f32[8,128], index: 19, kind: input, shape index: {}]
  %s20 = inlined_call_operand.vmem [shape: f32[1,128], index: 20, kind: input, shape index: {}]
  %s21 = inlined_call_operand.vmem [shape: f32[12,128], index: 21, kind: output, shape index: {}]
  %s22 = sld [smem:[#allocation0]]
  $region94: #{seq2seq_forward.1} parent=0
    _
  %s24 = ssub.s32 1, %s22
  %s25 = scalar_select 0, %s24, %s22
  // Predicated region
  $region2: #{seq2seq_forward.1} parent=0 // pred_check
    _
  $region3: #{seq2seq_forward.1} parent=0 // pred_check_branch
    %27 = sbr.rel (0) target = $region5
  $region4: #{seq2seq_forward.1} parent=0 // pred_region
    _
  $region5: #{seq2seq_forward.1} parent=0 // pred_fallthru
    _
  // Predicated region
  $region6: #{seq2seq_forward.1} parent=0 // pred_check
    _
  $region7: #{seq2seq_forward.1} parent=0 // pred_check_branch
    %29 = sbr.rel (0) target = $region9
  $region8: #{seq2seq_forward.1} parent=0 // pred_region
    _
  $region9: #{seq2seq_forward.1} parent=0 // pred_fallthru
    _
  // Predicated region
  $region10: #{seq2seq_forward.1} parent=0 // pred_check
    _
  $region11: #{seq2seq_forward.1} parent=0 // pred_check_branch
    %31 = sbr.rel (0) target = $region13
  $region12: #{seq2seq_forward.1} parent=0 // pred_region
    _
  $region13: #{seq2seq_forward.1} parent=0 // pred_fallthru
    _
  // Predicated region
  $region14: #{seq2seq_forward.1} parent=0 // pred_check
    _
  $region15: #{seq2seq_forward.1} parent=0 // pred_check_branch
    %33 = sbr.rel (0) target = $region17
  $region16: #{seq2seq_forward.1} parent=0 // pred_region
    _
  $region17: #{seq2seq_forward.1} parent=0 // pred_fallthru
    _
  // Predicated region
  $region18: #{seq2seq_forward.1} parent=0 // pred_check
    _
  $region19: #{seq2seq_forward.1} parent=0 // pred_check_branch
    %35 = sbr.rel (0) target = $region21
  $region20: #{seq2seq_forward.1} parent=0 // pred_region
    _
  $region21: #{seq2seq_forward.1} parent=0 // pred_fallthru
    _
  // Predicated region
  $region22: #{seq2seq_forward.1} parent=0 // pred_check
    _
  $region23: #{seq2seq_forward.1} parent=0 // pred_check_branch
    %37 = sbr.rel (0) target = $region25
  $region24: #{seq2seq_forward.1} parent=0 // pred_region
    _
  $region25: #{seq2seq_forward.1} parent=0 // pred_fallthru
    _
  // Predicated region
  $region26: #{seq2seq_forward.1} parent=0 // pred_check
    _
  $region27: #{seq2seq_forward.1} parent=0 // pred_check_branch
    %39 = sbr.rel (0) target = $region29
  $region28: #{seq2seq_forward.1} parent=0 // pred_region
    _
  $region29: #{seq2seq_forward.1} parent=0 // pred_fallthru
    _
  // Predicated region
  $region30: #{seq2seq_forward.1} parent=0 // pred_check
    _
  $region31: #{seq2seq_forward.1} parent=0 // pred_check_branch
    %41 = sbr.rel (0) target = $region33
  $region32: #{seq2seq_forward.1} parent=0 // pred_region
    _
  $region33: #{seq2seq_forward.1} parent=0 // pred_fallthru
    _
  // Predicated region
  $region34: #{seq2seq_forward.1} parent=0 // pred_check
    _
  $region35: #{seq2seq_forward.1} parent=0 // pred_check_branch
    %43 = sbr.rel (0) target = $region37
  $region36: #{seq2seq_forward.1} parent=0 // pred_region
    _
  $region37: #{seq2seq_forward.1} parent=0 // pred_fallthru
    _
  // Predicated region
  $region38: #{seq2seq_forward.1} parent=0 // pred_check
    _
  $region39: #{seq2seq_forward.1} parent=0 // pred_check_branch
    %45 = sbr.rel (0) target = $region41
  $region40: #{seq2seq_forward.1} parent=0 // pred_region
    _
  $region41: #{seq2seq_forward.1} parent=0 // pred_fallthru
    _
  // Predicated region
  $region42: #{seq2seq_forward.1} parent=0 // pred_check
    _
  $region43: #{seq2seq_forward.1} parent=0 // pred_check_branch
    %47 = sbr.rel (0) target = $region45
  $region44: #{seq2seq_forward.1} parent=0 // pred_region
    _
  $region45: #{seq2seq_forward.1} parent=0 // pred_fallthru
    _
  // Predicated region
  $region46: #{seq2seq_forward.1} parent=0 // pred_check
    _
  $region47: #{seq2seq_forward.1} parent=0 // pred_check_branch
    %49 = sbr.rel (0) target = $region49
  $region48: #{seq2seq_forward.1} parent=0 // pred_region
    _
  $region49: #{seq2seq_forward.1} parent=0 // pred_fallthru
    _
  // Predicated region
  $region50: #{seq2seq_forward.1} parent=0 // pred_check
    _
  $region51: #{seq2seq_forward.1} parent=0 // pred_check_branch
    %51 = sbr.rel (0) target = $region53
  $region52: #{seq2seq_forward.1} parent=0 // pred_region
    _
  $region53: #{seq2seq_forward.1} parent=0 // pred_fallthru
    _
  // Predicated region
  $region54: #{seq2seq_forward.1} parent=0 // pred_check
    _
  $region55: #{seq2seq_forward.1} parent=0 // pred_check_branch
    %53 = sbr.rel (0) target = $region57
  $region56: #{seq2seq_forward.1} parent=0 // pred_region
    _
  $region57: #{seq2seq_forward.1} parent=0 // pred_fallthru
    _
  // Predicated region
  $region58: #{seq2seq_forward.1} parent=0 // pred_check
    _
  $region59: #{seq2seq_forward.1} parent=0 // pred_check_branch
    %55 = sbr.rel (0) target = $region61
  $region60: #{seq2seq_forward.1} parent=0 // pred_region
    _
  $region61: #{seq2seq_forward.1} parent=0 // pred_fallthru
    _
  // Predicated region
  $region62: #{seq2seq_forward.1} parent=0 // pred_check
    _
  $region63: #{seq2seq_forward.1} parent=0 // pred_check_branch
    %57 = sbr.rel (0) target = $region65
  $region64: #{seq2seq_forward.1} parent=0 // pred_region
    _
  $region65: #{seq2seq_forward.1} parent=0 // pred_fallthru
    _
  // Predicated region
  $region66: #{seq2seq_forward.1} parent=0 // pred_check
    _
  $region67: #{seq2seq_forward.1} parent=0 // pred_check_branch
    %59 = sbr.rel (0) target = $region69
  $region68: #{seq2seq_forward.1} parent=0 // pred_region
    _
  $region69: #{seq2seq_forward.1} parent=0 // pred_fallthru
    _
  // Predicated region
  $region70: #{seq2seq_forward.1} parent=0 // pred_check
    _
  $region71: #{seq2seq_forward.1} parent=0 // pred_check_branch
    %61 = sbr.rel (0) target = $region73
  $region72: #{seq2seq_forward.1} parent=0 // pred_region
    _
  $region73: #{seq2seq_forward.1} parent=0 // pred_fallthru
    _
  // Predicated region
  $region74: #{seq2seq_forward.1} parent=0 // pred_check
    _
  $region75: #{seq2seq_forward.1} parent=0 // pred_check_branch
    %63 = sbr.rel (0) target = $region77
  $region76: #{seq2seq_forward.1} parent=0 // pred_region
    _
  $region77: #{seq2seq_forward.1} parent=0 // pred_fallthru
    _
  // Predicated region
  $region78: #{seq2seq_forward.1} parent=0 // pred_check
    _
  $region79: #{seq2seq_forward.1} parent=0 // pred_check_branch
    %65 = sbr.rel (0) target = $region81
  $region80: #{seq2seq_forward.1} parent=0 // pred_region
    _
  $region81: #{seq2seq_forward.1} parent=0 // pred_fallthru
    _
  // Predicated region
  $region82: #{seq2seq_forward.1} parent=0 // pred_check
    _
  $region83: #{seq2seq_forward.1} parent=0 // pred_check_branch
    %67 = sbr.rel (0) target = $region85
  $region84: #{seq2seq_forward.1} parent=0 // pred_region
    _
  $region85: #{seq2seq_forward.1} parent=0 // pred_fallthru
    _
  %v68 = vld [vmem:[%s0] sm:$0xff]
  %v69 = vld [vmem:[%s0 + $0x8] sm:$0xff]
  %v70 = vld [vmem:[%s5] sm:$0x1]
  %72 = vset.pattern.permute.xlu0 0
  %73 = vperm.xlu0 %72, %v68
  %v74 = vpop.permute.xlu0 %73
  %77 = vset.pattern.permute.xlu0 0
  %78 = vperm.xlu0 %77, %v69
  %v79 = vpop.permute.xlu0 %78
  %v82 = vlaneseq
  %v83 = vshrl.u32 %v82, 7
  %v84 = vsub.s32 0, %v83
  %v85 = vrot.slane %v70, %v84
  %v87 = vmul.f32 %v74, %v85
  %v88 = vmul.f32 %v79, %v85
  %v89 = vld [vmem:[%s6] sm:$0x1]
  %v91 = vlaneseq
  %v92 = vshrl.u32 %v91, 7
  %v93 = vsub.s32 0, %v92
  %v94 = vrot.slane %v89, %v93
  %v96 = vadd.f32 %v87, %v94
  %v97 = vadd.f32 %v88, %v94
  %v98 = vld [vmem:[%s1] sm:$0xff]
  %v99 = vld [vmem:[%s1 + $0x8] sm:$0xf]
  %v100 = vld [vmem:[%s2] sm:$0xff]
  %v101 = vld [vmem:[%s2 + $0x8] sm:$0xff]
  %v102 = vld [vmem:[%s7] sm:$0xff]
  %v103 = vld [vmem:[%s8] sm:$0x1]
  %v105 = vlaneseq
  %v106 = vshrl.u32 %v105, 7
  %v107 = vsub.s32 0, %v106
  %v108 = vrot.slane %v103, %v107
  %vm110 = vcmask 64512
  %v112 = vsel %vm110, %v96, 0
  %v115 = vsel %vm110, %v97, 0
  %117 = vmatprep.subr.mxu0 0.0
  %118 = vmatpush1.msra.mxu0 0.0
  %119 = vmatprep.subr.mxu0 0.0
  %120 = vmatpush1.msra.mxu0 0.0
  %121 = vmatprep.subr.mxu0 0.0
  %122 = vmatpush1.msra.mxu0 0.0
  %123 = vmatprep.subr.mxu0 0.0
  %124 = vmatpush1.msra.mxu0 0.0
  %125 = vmatprep.subr.mxu0 0.0
  %126 = vmatpush1.msra.mxu0 0.0
  %127 = vmatprep.subr.mxu0 0.0
  %128 = vmatpush1.msra.mxu0 0.0
  %129 = vmatprep.subr.mxu0 0.0
  %130 = vmatpush1.msra.mxu0 0.0
  %131 = vmatprep.subr.mxu0 0.0
  %132 = vmatpush1.msra.mxu0 0.0
  %133 = vmatprep.subr.mxu0 0.0
  %134 = vmatpush1.msra.mxu0 0.0
  %135 = vmatprep.subr.mxu0 0.0
  %136 = vmatpush1.msra.mxu0 0.0
  %137 = vmatprep.subr.mxu0 0.0
  %138 = vmatpush1.msra.mxu0 0.0
  %139 = vmatprep.subr.mxu0 0.0
  %140 = vmatpush1.msra.mxu0 0.0
  %141 = vmatprep.subr.mxu0 0.0
  %142 = vmatpush1.msra.mxu0 0.0
  %143 = vmatprep.subr.mxu0 0.0
  %144 = vmatpush1.msra.mxu0 0.0
  %145 = vmatprep.subr.mxu0 0.0
  %146 = vmatpush1.msra.mxu0 0.0
  %147 = vmatprep.subr.mxu0 0.0
  %148 = vmatpush1.msra.mxu0 %v102
  %149 = vmatprep.subr.mxu0 0.0
  %150 = vmatpush2.msra.mxu0 0.0
  %151 = vmatprep.subr.mxu0 0.0
  %152 = vmatpush2.msra.mxu0 0.0
  %153 = vmatprep.subr.mxu0 0.0
  %154 = vmatpush2.msra.mxu0 0.0
  %155 = vmatprep.subr.mxu0 0.0
  %156 = vmatpush2.msra.mxu0 0.0
  %157 = vmatprep.subr.mxu0 0.0
  %158 = vmatpush2.msra.mxu0 0.0
  %159 = vmatprep.subr.mxu0 0.0
  %160 = vmatpush2.msra.mxu0 0.0
  %161 = vmatprep.subr.mxu0 0.0
  %162 = vmatpush2.msra.mxu0 0.0
  %163 = vmatprep.subr.mxu0 0.0
  %164 = vmatpush2.msra.mxu0 0.0
  %165 = vmatprep.subr.mxu0 0.0
  %166 = vmatpush2.msra.mxu0 0.0
  %167 = vmatprep.subr.mxu0 0.0
  %168 = vmatpush2.msra.mxu0 0.0
  %169 = vmatprep.subr.mxu0 0.0
  %170 = vmatpush2.msra.mxu0 0.0
  %171 = vmatprep.subr.mxu0 0.0
  %172 = vmatpush2.msra.mxu0 0.0
  %173 = vmatprep.subr.mxu0 0.0
  %174 = vmatpush2.msra.mxu0 0.0
  %175 = vmatprep.subr.mxu0 0.0
  %176 = vmatpush2.msra.mxu0 0.0
  %177 = vmatprep.subr.mxu0 0.0
  %178 = vmatpush2.msra.mxu0 0.0
  %179 = vmatprep.subr.mxu0 0.0
  %180 = vmatpush2.msra.mxu0 0.0
  %181 = vmatprep.mubr.f32.mxu0 0.0
  %182 = vmatmul.mubr.f32.gmra.mxu0 %v112
  %v183 = vpop.f32.mrf.mxu0
  %v184 = vadd.f32 %v108, %v183
  %v185 = vpop.f32.mrf.mxu0
  %186 = vmatprep.mubr.f32.mxu0 0.0
  %187 = vmatmul.mubr.f32.gmra.mxu0 %v115
  %v188 = vpop.f32.mrf.mxu0
  %v189 = vadd.f32 %v108, %v188
  %v190 = vpop.f32.mrf.mxu0
  %191 = vdwg.mxu0
  %v192 = vld [vmem:[%s9] sm:$0xff]
  %v193 = vld [vmem:[%s10] sm:$0x1]
  %v195 = vlaneseq
  %v196 = vshrl.u32 %v195, 7
  %v197 = vsub.s32 0, %v196
  %v198 = vrot.slane %v193, %v197
  %200 = vmatprep.subr.mxu0 0.0
  %201 = vmatpush1.msra.mxu0 0.0
  %202 = vmatprep.subr.mxu0 0.0
  %203 = vmatpush1.msra.mxu0 0.0
  %204 = vmatprep.subr.mxu0 0.0
  %205 = vmatpush1.msra.mxu0 0.0
  %206 = vmatprep.subr.mxu0 0.0
  %207 = vmatpush1.msra.mxu0 0.0
  %208 = vmatprep.subr.mxu0 0.0
  %209 = vmatpush1.msra.mxu0 0.0
  %210 = vmatprep.subr.mxu0 0.0
  %211 = vmatpush1.msra.mxu0 0.0
  %212 = vmatprep.subr.mxu0 0.0
  %213 = vmatpush1.msra.mxu0 0.0
  %214 = vmatprep.subr.mxu0 0.0
  %215 = vmatpush1.msra.mxu0 0.0
  %216 = vmatprep.subr.mxu0 0.0
  %217 = vmatpush1.msra.mxu0 0.0
  %218 = vmatprep.subr.mxu0 0.0
  %219 = vmatpush1.msra.mxu0 0.0
  %220 = vmatprep.subr.mxu0 0.0
  %221 = vmatpush1.msra.mxu0 0.0
  %222 = vmatprep.subr.mxu0 0.0
  %223 = vmatpush1.msra.mxu0 0.0
  %224 = vmatprep.subr.mxu0 0.0
  %225 = vmatpush1.msra.mxu0 0.0
  %226 = vmatprep.subr.mxu0 0.0
  %227 = vmatpush1.msra.mxu0 0.0
  %228 = vmatprep.subr.mxu0 0.0
  %229 = vmatpush1.msra.mxu0 0.0
  %230 = vmatprep.subr.mxu0 0.0
  %231 = vmatpush1.msra.mxu0 %v192
  %232 = vmatprep.subr.mxu0 0.0
  %233 = vmatpush2.msra.mxu0 0.0
  %234 = vmatprep.subr.mxu0 0.0
  %235 = vmatpush2.msra.mxu0 0.0
  %236 = vmatprep.subr.mxu0 0.0
  %237 = vmatpush2.msra.mxu0 0.0
  %238 = vmatprep.subr.mxu0 0.0
  %239 = vmatpush2.msra.mxu0 0.0
  %240 = vmatprep.subr.mxu0 0.0
  %241 = vmatpush2.msra.mxu0 0.0
  %242 = vmatprep.subr.mxu0 0.0
  %243 = vmatpush2.msra.mxu0 0.0
  %244 = vmatprep.subr.mxu0 0.0
  %245 = vmatpush2.msra.mxu0 0.0
  %246 = vmatprep.subr.mxu0 0.0
  %247 = vmatpush2.msra.mxu0 0.0
  %248 = vmatprep.subr.mxu0 0.0
  %249 = vmatpush2.msra.mxu0 0.0
  %250 = vmatprep.subr.mxu0 0.0
  %251 = vmatpush2.msra.mxu0 0.0
  %252 = vmatprep.subr.mxu0 0.0
  %253 = vmatpush2.msra.mxu0 0.0
  %254 = vmatprep.subr.mxu0 0.0
  %255 = vmatpush2.msra.mxu0 0.0
  %256 = vmatprep.subr.mxu0 0.0
  %257 = vmatpush2.msra.mxu0 0.0
  %258 = vmatprep.subr.mxu0 0.0
  %259 = vmatpush2.msra.mxu0 0.0
  %260 = vmatprep.subr.mxu0 0.0
  %261 = vmatpush2.msra.mxu0 0.0
  %262 = vmatprep.subr.mxu0 0.0
  %263 = vmatpush2.msra.mxu0 0.0
  %264 = vmatprep.mubr.f32.mxu0 0.0
  %265 = vmatmul.mubr.f32.gmra.mxu0 %v112
  %v266 = vpop.f32.mrf.mxu0
  %v267 = vadd.f32 %v198, %v266
  %v268 = vpop.f32.mrf.mxu0
  %269 = vmatprep.mubr.f32.mxu0 0.0
  %270 = vmatmul.mubr.f32.gmra.mxu0 %v115
  %v271 = vpop.f32.mrf.mxu0
  %v272 = vadd.f32 %v198, %v271
  %v273 = vpop.f32.mrf.mxu0
  %274 = vdwg.mxu0
  %v277 = vcombine.high %v184, %v184
  %v279 = vunpack.c.l.s4 1966171168
  %v280 = vunpack.c.0.s8 %v279
  %v281 = vlaneseq
  %v282 = vshrl.u32 %v281, 7
  %v283 = vsub.s32 %v280, %v282
  %v284 = vrot.slane %v184, %v283
  %v286 = vunpack.c.l.s4 1966171168
  %v287 = vunpack.c.0.s8 %v286
  %v288 = vlaneseq
  %v289 = vshrl.u32 %v288, 7
  %v290 = vsub.s32 %v287, %v289
  %v291 = vrot.slane %v277, %v290
  %v292 = vcombine.high %v284, %v284
  %v293 = vcombine.high %v291, %v291
  %v295 = vunpack.c.l.s4 1966171168
  %v296 = vunpack.c.0.s8 %v295
  %v297 = vlaneseq
  %v298 = vshrl.u32 %v297, 7
  %v299 = vsub.s32 %v296, %v298
  %v300 = vrot.slane %v284, %v299
  %v302 = vunpack.c.l.s4 1966171168
  %v303 = vunpack.c.0.s8 %v302
  %v304 = vlaneseq
  %v305 = vshrl.u32 %v304, 7
  %v306 = vsub.s32 %v303, %v305
  %v307 = vrot.slane %v291, %v306
  %v309 = vunpack.c.l.s4 1966171168
  %v310 = vunpack.c.0.s8 %v309
  %v311 = vlaneseq
  %v312 = vshrl.u32 %v311, 7
  %v313 = vsub.s32 %v310, %v312
  %v314 = vrot.slane %v292, %v313
  %v316 = vunpack.c.l.s4 1966171168
  %v317 = vunpack.c.0.s8 %v316
  %v318 = vlaneseq
  %v319 = vshrl.u32 %v318, 7
  %v320 = vsub.s32 %v317, %v319
  %v321 = vrot.slane %v293, %v320
  %v322 = vcombine.high %v300, %v300
  %v323 = vcombine.high %v307, %v307
  %v324 = vcombine.high %v314, %v314
  %v325 = vcombine.high %v321, %v321
  %v326 = vcombine.high %v189, %v189
  %v328 = vunpack.c.l.s4 1966171168
  %v329 = vunpack.c.0.s8 %v328
  %v330 = vlaneseq
  %v331 = vshrl.u32 %v330, 7
  %v332 = vsub.s32 %v329, %v331
  %v333 = vrot.slane %v189, %v332
  %v335 = vunpack.c.l.s4 1966171168
  %v336 = vunpack.c.0.s8 %v335
  %v337 = vlaneseq
  %v338 = vshrl.u32 %v337, 7
  %v339 = vsub.s32 %v336, %v338
  %v340 = vrot.slane %v326, %v339
  %v341 = vcombine.high %v333, %v333
  %v342 = vcombine.high %v340, %v340
  %v344 = vunpack.c.l.s4 1966171168
  %v345 = vunpack.c.0.s8 %v344
  %v346 = vlaneseq
  %v347 = vshrl.u32 %v346, 7
  %v348 = vsub.s32 %v345, %v347
  %v349 = vrot.slane %v333, %v348
  %v351 = vunpack.c.l.s4 1966171168
  %v352 = vunpack.c.0.s8 %v351
  %v353 = vlaneseq
  %v354 = vshrl.u32 %v353, 7
  %v355 = vsub.s32 %v352, %v354
  %v356 = vrot.slane %v340, %v355
  %v358 = vunpack.c.l.s4 1966171168
  %v359 = vunpack.c.0.s8 %v358
  %v360 = vlaneseq
  %v361 = vshrl.u32 %v360, 7
  %v362 = vsub.s32 %v359, %v361
  %v363 = vrot.slane %v341, %v362
  %v365 = vunpack.c.l.s4 1966171168
  %v366 = vunpack.c.0.s8 %v365
  %v367 = vlaneseq
  %v368 = vshrl.u32 %v367, 7
  %v369 = vsub.s32 %v366, %v368
  %v370 = vrot.slane %v342, %v369
  %v371 = vcombine.high %v349, %v349
  %v372 = vcombine.high %v356, %v356
  %v373 = vcombine.high %v363, %v363
  %v374 = vcombine.high %v370, %v370
  %v375 = vlaneseq
  %v376 = vshrl.u32 %v375, 7
  %v377 = vsub.s32 0, %v376
  %v378 = vrot.slane %v300, %v377
  %v379 = vlaneseq
  %v380 = vshrl.u32 %v379, 7
  %v381 = vsub.s32 0, %v380
  %v382 = vrot.slane %v314, %v381
  %v383 = vlaneseq
  %v384 = vshrl.u32 %v383, 7
  %v385 = vsub.s32 0, %v384
  %v386 = vrot.slane %v322, %v385
  %v387 = vlaneseq
  %v388 = vshrl.u32 %v387, 7
  %v389 = vsub.s32 0, %v388
  %v390 = vrot.slane %v324, %v389
  %v391 = vlaneseq
  %v392 = vshrl.u32 %v391, 7
  %v393 = vsub.s32 0, %v392
  %v394 = vrot.slane %v307, %v393
  %v395 = vlaneseq
  %v396 = vshrl.u32 %v395, 7
  %v397 = vsub.s32 0, %v396
  %v398 = vrot.slane %v321, %v397
  %v399 = vlaneseq
  %v400 = vshrl.u32 %v399, 7
  %v401 = vsub.s32 0, %v400
  %v402 = vrot.slane %v323, %v401
  %v403 = vlaneseq
  %v404 = vshrl.u32 %v403, 7
  %v405 = vsub.s32 0, %v404
  %v406 = vrot.slane %v325, %v405
  %v407 = vlaneseq
  %v408 = vshrl.u32 %v407, 7
  %v409 = vsub.s32 0, %v408
  %v410 = vrot.slane %v349, %v409
  %v411 = vlaneseq
  %v412 = vshrl.u32 %v411, 7
  %v413 = vsub.s32 0, %v412
  %v414 = vrot.slane %v363, %v413
  %v415 = vlaneseq
  %v416 = vshrl.u32 %v415, 7
  %v417 = vsub.s32 0, %v416
  %v418 = vrot.slane %v371, %v417
  %v419 = vlaneseq
  %v420 = vshrl.u32 %v419, 7
  %v421 = vsub.s32 0, %v420
  %v422 = vrot.slane %v373, %v421
  %v423 = vlaneseq
  %v424 = vshrl.u32 %v423, 7
  %v425 = vsub.s32 0, %v424
  %v426 = vrot.slane %v356, %v425
  %v427 = vlaneseq
  %v428 = vshrl.u32 %v427, 7
  %v429 = vsub.s32 0, %v428
  %v430 = vrot.slane %v370, %v429
  %v431 = vlaneseq
  %v432 = vshrl.u32 %v431, 7
  %v433 = vsub.s32 0, %v432
  %v434 = vrot.slane %v372, %v433
  %v435 = vlaneseq
  %v436 = vshrl.u32 %v435, 7
  %v437 = vsub.s32 0, %v436
  %v438 = vrot.slane %v374, %v437
  %v455 = vmul.f32 %v378, %v267
  %v456 = vmul.f32 %v378, %v272
  %v457 = vmul.f32 %v382, %v267
  %v458 = vmul.f32 %v382, %v272
  %v459 = vmul.f32 %v386, %v267
  %v460 = vmul.f32 %v386, %v272
  %v461 = vmul.f32 %v390, %v267
  %v462 = vmul.f32 %v390, %v272
  %v463 = vmul.f32 %v394, %v267
  %v464 = vmul.f32 %v394, %v272
  %v465 = vmul.f32 %v398, %v267
  %v466 = vmul.f32 %v398, %v272
  %v467 = vmul.f32 %v402, %v267
  %v468 = vmul.f32 %v402, %v272
  %v469 = vmul.f32 %v406, %v267
  %v470 = vmul.f32 %v406, %v272
  %v471 = vmul.f32 %v410, %v267
  %v472 = vmul.f32 %v410, %v272
  %v473 = vmul.f32 %v414, %v267
  %v474 = vmul.f32 %v414, %v272
  %v475 = vmul.f32 %v418, %v267
  %v476 = vmul.f32 %v418, %v272
  %v477 = vmul.f32 %v422, %v267
  %v478 = vmul.f32 %v422, %v272
  %v479 = vmul.f32 %v426, %v267
  %v480 = vmul.f32 %v426, %v272
  %v481 = vmul.f32 %v430, %v267
  %v482 = vmul.f32 %v430, %v272
  %v483 = vmul.f32 %v434, %v267
  %v484 = vmul.f32 %v434, %v272
  %v485 = vmul.f32 %v438, %v267
  %v486 = vmul.f32 %v438, %v272
  %v487 = vlaneseq
  %v488 = vshrl.u32 %v487, 7
  %v489 = vsub.s32 0, %v488
  %v490 = vrot.slane %v100, %v489
  %492 = vbcast.lane.b32.xlu0 %v490, 256
  %v493 = vpop.permute.xlu0 %492
  %s495 = sor.u32 256, 8
  %496 = vbcast.lane.b32.xlu0 %v490, %s495
  %v497 = vpop.permute.xlu0 %496
  %v498 = vlaneseq
  %v499 = vshrl.u32 %v498, 7
  %v500 = vsub.s32 1, %v499
  %v501 = vrot.slane %v100, %v500
  %503 = vbcast.lane.b32.xlu0 %v501, 256
  %v504 = vpop.permute.xlu0 %503
  %s506 = sor.u32 256, 8
  %507 = vbcast.lane.b32.xlu0 %v501, %s506
  %v508 = vpop.permute.xlu0 %507
  %v509 = vlaneseq
  %v510 = vshrl.u32 %v509, 7
  %v511 = vsub.s32 2, %v510
  %v512 = vrot.slane %v100, %v511
  %514 = vbcast.lane.b32.xlu0 %v512, 256
  %v515 = vpop.permute.xlu0 %514
  %s517 = sor.u32 256, 8
  %518 = vbcast.lane.b32.xlu0 %v512, %s517
  %v519 = vpop.permute.xlu0 %518
  %v520 = vlaneseq
  %v521 = vshrl.u32 %v520, 7
  %v522 = vsub.s32 3, %v521
  %v523 = vrot.slane %v100, %v522
  %525 = vbcast.lane.b32.xlu0 %v523, 256
  %v526 = vpop.permute.xlu0 %525
  %s528 = sor.u32 256, 8
  %529 = vbcast.lane.b32.xlu0 %v523, %s528
  %v530 = vpop.permute.xlu0 %529
  %v531 = vlaneseq
  %v532 = vshrl.u32 %v531, 7
  %v533 = vsub.s32 4, %v532
  %v534 = vrot.slane %v100, %v533
  %536 = vbcast.lane.b32.xlu0 %v534, 256
  %v537 = vpop.permute.xlu0 %536
  %s539 = sor.u32 256, 8
  %540 = vbcast.lane.b32.xlu0 %v534, %s539
  %v541 = vpop.permute.xlu0 %540
  %v542 = vlaneseq
  %v543 = vshrl.u32 %v542, 7
  %v544 = vsub.s32 5, %v543
  %v545 = vrot.slane %v100, %v544
  %547 = vbcast.lane.b32.xlu0 %v545, 256
  %v548 = vpop.permute.xlu0 %547
  %s550 = sor.u32 256, 8
  %551 = vbcast.lane.b32.xlu0 %v545, %s550
  %v552 = vpop.permute.xlu0 %551
  %v553 = vlaneseq
  %v554 = vshrl.u32 %v553, 7
  %v555 = vsub.s32 6, %v554
  %v556 = vrot.slane %v100, %v555
  %558 = vbcast.lane.b32.xlu0 %v556, 256
  %v559 = vpop.permute.xlu0 %558
  %s561 = sor.u32 256, 8
  %562 = vbcast.lane.b32.xlu0 %v556, %s561
  %v563 = vpop.permute.xlu0 %562
  %v564 = vlaneseq
  %v565 = vshrl.u32 %v564, 7
  %v566 = vsub.s32 7, %v565
  %v567 = vrot.slane %v100, %v566
  %569 = vbcast.lane.b32.xlu0 %v567, 256
  %v570 = vpop.permute.xlu0 %569
  %s572 = sor.u32 256, 8
  %573 = vbcast.lane.b32.xlu0 %v567, %s572
  %v574 = vpop.permute.xlu0 %573
  %v575 = vlaneseq
  %v576 = vshrl.u32 %v575, 7
  %v577 = vsub.s32 0, %v576
  %v578 = vrot.slane %v101, %v577
  %580 = vbcast.lane.b32.xlu0 %v578, 256
  %v581 = vpop.permute.xlu0 %580
  %s583 = sor.u32 256, 8
  %584 = vbcast.lane.b32.xlu0 %v578, %s583
  %v585 = vpop.permute.xlu0 %584
  %v586 = vlaneseq
  %v587 = vshrl.u32 %v586, 7
  %v588 = vsub.s32 1, %v587
  %v589 = vrot.slane %v101, %v588
  %591 = vbcast.lane.b32.xlu0 %v589, 256
  %v592 = vpop.permute.xlu0 %591
  %s594 = sor.u32 256, 8
  %595 = vbcast.lane.b32.xlu0 %v589, %s594
  %v596 = vpop.permute.xlu0 %595
  %v597 = vlaneseq
  %v598 = vshrl.u32 %v597, 7
  %v599 = vsub.s32 2, %v598
  %v600 = vrot.slane %v101, %v599
  %602 = vbcast.lane.b32.xlu0 %v600, 256
  %v603 = vpop.permute.xlu0 %602
  %s605 = sor.u32 256, 8
  %606 = vbcast.lane.b32.xlu0 %v600, %s605
  %v607 = vpop.permute.xlu0 %606
  %v608 = vlaneseq
  %v609 = vshrl.u32 %v608, 7
  %v610 = vsub.s32 3, %v609
  %v611 = vrot.slane %v101, %v610
  %613 = vbcast.lane.b32.xlu0 %v611, 256
  %v614 = vpop.permute.xlu0 %613
  %s616 = sor.u32 256, 8
  %617 = vbcast.lane.b32.xlu0 %v611, %s616
  %v618 = vpop.permute.xlu0 %617
  %v619 = vlaneseq
  %v620 = vshrl.u32 %v619, 7
  %v621 = vsub.s32 4, %v620
  %v622 = vrot.slane %v101, %v621
  %624 = vbcast.lane.b32.xlu0 %v622, 256
  %v625 = vpop.permute.xlu0 %624
  %s627 = sor.u32 256, 8
  %628 = vbcast.lane.b32.xlu0 %v622, %s627
  %v629 = vpop.permute.xlu0 %628
  %v630 = vlaneseq
  %v631 = vshrl.u32 %v630, 7
  %v632 = vsub.s32 5, %v631
  %v633 = vrot.slane %v101, %v632
  %635 = vbcast.lane.b32.xlu0 %v633, 256
  %v636 = vpop.permute.xlu0 %635
  %s638 = sor.u32 256, 8
  %639 = vbcast.lane.b32.xlu0 %v633, %s638
  %v640 = vpop.permute.xlu0 %639
  %v641 = vlaneseq
  %v642 = vshrl.u32 %v641, 7
  %v643 = vsub.s32 6, %v642
  %v644 = vrot.slane %v101, %v643
  %646 = vbcast.lane.b32.xlu0 %v644, 256
  %v647 = vpop.permute.xlu0 %646
  %s649 = sor.u32 256, 8
  %650 = vbcast.lane.b32.xlu0 %v644, %s649
  %v651 = vpop.permute.xlu0 %650
  %v652 = vlaneseq
  %v653 = vshrl.u32 %v652, 7
  %v654 = vsub.s32 7, %v653
  %v655 = vrot.slane %v101, %v654
  %657 = vbcast.lane.b32.xlu0 %v655, 256
  %v658 = vpop.permute.xlu0 %657
  %s660 = sor.u32 256, 8
  %661 = vbcast.lane.b32.xlu0 %v655, %s660
  %v662 = vpop.permute.xlu0 %661
  %v663 = vadd.f32 %v455, %v493
  %v664 = vadd.f32 %v456, %v497
  %v665 = vadd.f32 %v457, %v504
  %v666 = vadd.f32 %v458, %v508
  %v667 = vadd.f32 %v459, %v515
  %v668 = vadd.f32 %v460, %v519
  %v669 = vadd.f32 %v461, %v526
  %v670 = vadd.f32 %v462, %v530
  %v671 = vadd.f32 %v463, %v537
  %v672 = vadd.f32 %v464, %v541
  %v673 = vadd.f32 %v465, %v548
  %v674 = vadd.f32 %v466, %v552
  %v675 = vadd.f32 %v467, %v559
  %v676 = vadd.f32 %v468, %v563
  %v677 = vadd.f32 %v469, %v570
  %v678 = vadd.f32 %v470, %v574
  %v679 = vadd.f32 %v471, %v581
  %v680 = vadd.f32 %v472, %v585
  %v681 = vadd.f32 %v473, %v592
  %v682 = vadd.f32 %v474, %v596
  %v683 = vadd.f32 %v475, %v603
  %v684 = vadd.f32 %v476, %v607
  %v685 = vadd.f32 %v477, %v614
  %v686 = vadd.f32 %v478, %v618
  %v687 = vadd.f32 %v479, %v625
  %v688 = vadd.f32 %v480, %v629
  %v689 = vadd.f32 %v481, %v636
  %v690 = vadd.f32 %v482, %v640
  %v691 = vadd.f32 %v483, %v647
  %v692 = vadd.f32 %v484, %v651
  %v693 = vadd.f32 %v485, %v658
  %v694 = vadd.f32 %v486, %v662
  %v695 = vsel %vm110, %v663, -inf
  %v696 = vsel %vm110, %v664, -inf
  %v697 = vmax.f32 %v695, %v696
  %v698 = vrot.slane %v697, 4
  %v699 = vmax.f32 %v697, %v698
  %v700 = vrot.slane %v699, 2
  %v701 = vmax.f32 %v699, %v700
  %v702 = vrot.slane %v701, 1
  %v703 = vmax.f32 %v701, %v702
  %v704 = vsel %vm110, %v665, -inf
  %v705 = vsel %vm110, %v666, -inf
  %v706 = vmax.f32 %v704, %v705
  %v707 = vrot.slane %v706, 4
  %v708 = vmax.f32 %v706, %v707
  %v709 = vrot.slane %v708, 2
  %v710 = vmax.f32 %v708, %v709
  %v711 = vrot.slane %v710, 1
  %v712 = vmax.f32 %v710, %v711
  %v713 = vsel %vm110, %v667, -inf
  %v714 = vsel %vm110, %v668, -inf
  %v715 = vmax.f32 %v713, %v714
  %v716 = vrot.slane %v715, 4
  %v717 = vmax.f32 %v715, %v716
  %v718 = vrot.slane %v717, 2
  %v719 = vmax.f32 %v717, %v718
  %v720 = vrot.slane %v719, 1
  %v721 = vmax.f32 %v719, %v720
  %v722 = vsel %vm110, %v669, -inf
  %v723 = vsel %vm110, %v670, -inf
  %v724 = vmax.f32 %v722, %v723
  %v725 = vrot.slane %v724, 4
  %v726 = vmax.f32 %v724, %v725
  %v727 = vrot.slane %v726, 2
  %v728 = vmax.f32 %v726, %v727
  %v729 = vrot.slane %v728, 1
  %v730 = vmax.f32 %v728, %v729
  %v731 = vsel %vm110, %v671, -inf
  %v732 = vsel %vm110, %v672, -inf
  %v733 = vmax.f32 %v731, %v732
  %v734 = vrot.slane %v733, 4
  %v735 = vmax.f32 %v733, %v734
  %v736 = vrot.slane %v735, 2
  %v737 = vmax.f32 %v735, %v736
  %v738 = vrot.slane %v737, 1
  %v739 = vmax.f32 %v737, %v738
  %v740 = vsel %vm110, %v673, -inf
  %v741 = vsel %vm110, %v674, -inf
  %v742 = vmax.f32 %v740, %v741
  %v743 = vrot.slane %v742, 4
  %v744 = vmax.f32 %v742, %v743
  %v745 = vrot.slane %v744, 2
  %v746 = vmax.f32 %v744, %v745
  %v747 = vrot.slane %v746, 1
  %v748 = vmax.f32 %v746, %v747
  %v749 = vsel %vm110, %v675, -inf
  %v750 = vsel %vm110, %v676, -inf
  %v751 = vmax.f32 %v749, %v750
  %v752 = vrot.slane %v751, 4
  %v753 = vmax.f32 %v751, %v752
  %v754 = vrot.slane %v753, 2
  %v755 = vmax.f32 %v753, %v754
  %v756 = vrot.slane %v755, 1
  %v757 = vmax.f32 %v755, %v756
  %v758 = vsel %vm110, %v677, -inf
  %v759 = vsel %vm110, %v678, -inf
  %v760 = vmax.f32 %v758, %v759
  %v761 = vrot.slane %v760, 4
  %v762 = vmax.f32 %v760, %v761
  %v763 = vrot.slane %v762, 2
  %v764 = vmax.f32 %v762, %v763
  %v765 = vrot.slane %v764, 1
  %v766 = vmax.f32 %v764, %v765
  %v767 = vsel %vm110, %v679, -inf
  %v768 = vsel %vm110, %v680, -inf
  %v769 = vmax.f32 %v767, %v768
  %v770 = vrot.slane %v769, 4
  %v771 = vmax.f32 %v769, %v770
  %v772 = vrot.slane %v771, 2
  %v773 = vmax.f32 %v771, %v772
  %v774 = vrot.slane %v773, 1
  %v775 = vmax.f32 %v773, %v774
  %v776 = vsel %vm110, %v681, -inf
  %v777 = vsel %vm110, %v682, -inf
  %v778 = vmax.f32 %v776, %v777
  %v779 = vrot.slane %v778, 4
  %v780 = vmax.f32 %v778, %v779
  %v781 = vrot.slane %v780, 2
  %v782 = vmax.f32 %v780, %v781
  %v783 = vrot.slane %v782, 1
  %v784 = vmax.f32 %v782, %v783
  %v785 = vsel %vm110, %v683, -inf
  %v786 = vsel %vm110, %v684, -inf
  %v787 = vmax.f32 %v785, %v786
  %v788 = vrot.slane %v787, 4
  %v789 = vmax.f32 %v787, %v788
  %v790 = vrot.slane %v789, 2
  %v791 = vmax.f32 %v789, %v790
  %v792 = vrot.slane %v791, 1
  %v793 = vmax.f32 %v791, %v792
  %v794 = vsel %vm110, %v685, -inf
  %v795 = vsel %vm110, %v686, -inf
  %v796 = vmax.f32 %v794, %v795
  %v797 = vrot.slane %v796, 4
  %v798 = vmax.f32 %v796, %v797
  %v799 = vrot.slane %v798, 2
  %v800 = vmax.f32 %v798, %v799
  %v801 = vrot.slane %v800, 1
  %v802 = vmax.f32 %v800, %v801
  %v803 = vsel %vm110, %v687, -inf
  %v804 = vsel %vm110, %v688, -inf
  %v805 = vmax.f32 %v803, %v804
  %v806 = vrot.slane %v805, 4
  %v807 = vmax.f32 %v805, %v806
  %v808 = vrot.slane %v807, 2
  %v809 = vmax.f32 %v807, %v808
  %v810 = vrot.slane %v809, 1
  %v811 = vmax.f32 %v809, %v810
  %v812 = vsel %vm110, %v689, -inf
  %v813 = vsel %vm110, %v690, -inf
  %v814 = vmax.f32 %v812, %v813
  %v815 = vrot.slane %v814, 4
  %v816 = vmax.f32 %v814, %v815
  %v817 = vrot.slane %v816, 2
  %v818 = vmax.f32 %v816, %v817
  %v819 = vrot.slane %v818, 1
  %v820 = vmax.f32 %v818, %v819
  %v821 = vsel %vm110, %v691, -inf
  %v822 = vsel %vm110, %v692, -inf
  %v823 = vmax.f32 %v821, %v822
  %v824 = vrot.slane %v823, 4
  %v825 = vmax.f32 %v823, %v824
  %v826 = vrot.slane %v825, 2
  %v827 = vmax.f32 %v825, %v826
  %v828 = vrot.slane %v827, 1
  %v829 = vmax.f32 %v827, %v828
  %v830 = vsel %vm110, %v693, -inf
  %v831 = vsel %vm110, %v694, -inf
  %v832 = vmax.f32 %v830, %v831
  %v833 = vrot.slane %v832, 4
  %v834 = vmax.f32 %v832, %v833
  %v835 = vrot.slane %v834, 2
  %v836 = vmax.f32 %v834, %v835
  %v837 = vrot.slane %v836, 1
  %v838 = vmax.f32 %v836, %v837
  %v839 = vmax.f32 %v703, -1e+30
  %v840 = vmax.f32 %v712, -1e+30
  %v841 = vmax.f32 %v721, -1e+30
  %v842 = vmax.f32 %v730, -1e+30
  %v843 = vmax.f32 %v739, -1e+30
  %v844 = vmax.f32 %v748, -1e+30
  %v845 = vmax.f32 %v757, -1e+30
  %v846 = vmax.f32 %v766, -1e+30
  %v847 = vmax.f32 %v775, -1e+30
  %v848 = vmax.f32 %v784, -1e+30
  %v849 = vmax.f32 %v793, -1e+30
  %v850 = vmax.f32 %v802, -1e+30
  %v851 = vmax.f32 %v811, -1e+30
  %v852 = vmax.f32 %v820, -1e+30
  %v853 = vmax.f32 %v829, -1e+30
  %v854 = vmax.f32 %v838, -1e+30
  %v855 = vsub.f32 %v663, %v839
  %v856 = vsub.f32 %v664, %v839
  %v857 = vsub.f32 %v665, %v840
  %v858 = vsub.f32 %v666, %v840
  %v859 = vsub.f32 %v667, %v841
  %v860 = vsub.f32 %v668, %v841
  %v861 = vsub.f32 %v669, %v842
  %v862 = vsub.f32 %v670, %v842
  %v863 = vsub.f32 %v671, %v843
  %v864 = vsub.f32 %v672, %v843
  %v865 = vsub.f32 %v673, %v844
  %v866 = vsub.f32 %v674, %v844
  %v867 = vsub.f32 %v675, %v845
  %v868 = vsub.f32 %v676, %v845
  %v869 = vsub.f32 %v677, %v846
  %v870 = vsub.f32 %v678, %v846
  %v871 = vsub.f32 %v679, %v847
  %v872 = vsub.f32 %v680, %v847
  %v873 = vsub.f32 %v681, %v848
  %v874 = vsub.f32 %v682, %v848
  %v875 = vsub.f32 %v683, %v849
  %v876 = vsub.f32 %v684, %v849
  %v877 = vsub.f32 %v685, %v850
  %v878 = vsub.f32 %v686, %v850
  %v879 = vsub.f32 %v687, %v851
  %v880 = vsub.f32 %v688, %v851
  %v881 = vsub.f32 %v689, %v852
  %v882 = vsub.f32 %v690, %v852
  %v883 = vsub.f32 %v691, %v853
  %v884 = vsub.f32 %v692, %v853
  %v885 = vsub.f32 %v693, %v854
  %v886 = vsub.f32 %v694, %v854
  %v887 = vmul.f32 %v855, 1.442695
  %v888 = vpow.pop %v887
  %v889 = vmul.f32 %v856, 1.442695
  %v890 = vpow.pop %v889
  %v891 = vmul.f32 %v857, 1.442695
  %v892 = vpow.pop %v891
  %v893 = vmul.f32 %v858, 1.442695
  %v894 = vpow.pop %v893
  %v895 = vmul.f32 %v859, 1.442695
  %v896 = vpow.pop %v895
  %v897 = vmul.f32 %v860, 1.442695
  %v898 = vpow.pop %v897
  %v899 = vmul.f32 %v861, 1.442695
  %v900 = vpow.pop %v899
  %v901 = vmul.f32 %v862, 1.442695
  %v902 = vpow.pop %v901
  %v903 = vmul.f32 %v863, 1.442695
  %v904 = vpow.pop %v903
  %v905 = vmul.f32 %v864, 1.442695
  %v906 = vpow.pop %v905
  %v907 = vmul.f32 %v865, 1.442695
  %v908 = vpow.pop %v907
  %v909 = vmul.f32 %v866, 1.442695
  %v910 = vpow.pop %v909
  %v911 = vmul.f32 %v867, 1.442695
  %v912 = vpow.pop %v911
  %v913 = vmul.f32 %v868, 1.442695
  %v914 = vpow.pop %v913
  %v915 = vmul.f32 %v869, 1.442695
  %v916 = vpow.pop %v915
  %v917 = vmul.f32 %v870, 1.442695
  %v918 = vpow.pop %v917
  %v919 = vmul.f32 %v871, 1.442695
  %v920 = vpow.pop %v919
  %v921 = vmul.f32 %v872, 1.442695
  %v922 = vpow.pop %v921
  %v923 = vmul.f32 %v873, 1.442695
  %v924 = vpow.pop %v923
  %v925 = vmul.f32 %v874, 1.442695
  %v926 = vpow.pop %v925
  %v927 = vmul.f32 %v875, 1.442695
  %v928 = vpow.pop %v927
  %v929 = vmul.f32 %v876, 1.442695
  %v930 = vpow.pop %v929
  %v931 = vmul.f32 %v877, 1.442695
  %v932 = vpow.pop %v931
  %v933 = vmul.f32 %v878, 1.442695
  %v934 = vpow.pop %v933
  %v935 = vmul.f32 %v879, 1.442695
  %v936 = vpow.pop %v935
  %v937 = vmul.f32 %v880, 1.442695
  %v938 = vpow.pop %v937
  %v939 = vmul.f32 %v881, 1.442695
  %v940 = vpow.pop %v939
  %v941 = vmul.f32 %v882, 1.442695
  %v942 = vpow.pop %v941
  %v943 = vmul.f32 %v883, 1.442695
  %v944 = vpow.pop %v943
  %v945 = vmul.f32 %v884, 1.442695
  %v946 = vpow.pop %v945
  %v947 = vmul.f32 %v885, 1.442695
  %v948 = vpow.pop %v947
  %v949 = vmul.f32 %v886, 1.442695
  %v950 = vpow.pop %v949
  %v951 = vsel %vm110, %v888, 0.0
  %v952 = vsel %vm110, %v890, 0.0
  %v953 = vadd.f32 %v951, %v952
  %v954 = vrot.slane %v953, 4
  %v955 = vadd.f32 %v953, %v954
  %v956 = vrot.slane %v955, 2
  %v957 = vadd.f32 %v955, %v956
  %v958 = vrot.slane %v957, 1
  %v959 = vadd.f32 %v957, %v958
  %v960 = vsel %vm110, %v892, 0.0
  %v961 = vsel %vm110, %v894, 0.0
  %v962 = vadd.f32 %v960, %v961
  %v963 = vrot.slane %v962, 4
  %v964 = vadd.f32 %v962, %v963
  %v965 = vrot.slane %v964, 2
  %v966 = vadd.f32 %v964, %v965
  %v967 = vrot.slane %v966, 1
  %v968 = vadd.f32 %v966, %v967
  %v969 = vsel %vm110, %v896, 0.0
  %v970 = vsel %vm110, %v898, 0.0
  %v971 = vadd.f32 %v969, %v970
  %v972 = vrot.slane %v971, 4
  %v973 = vadd.f32 %v971, %v972
  %v974 = vrot.slane %v973, 2
  %v975 = vadd.f32 %v973, %v974
  %v976 = vrot.slane %v975, 1
  %v977 = vadd.f32 %v975, %v976
  %v978 = vsel %vm110, %v900, 0.0
  %v979 = vsel %vm110, %v902, 0.0
  %v980 = vadd.f32 %v978, %v979
  %v981 = vrot.slane %v980, 4
  %v982 = vadd.f32 %v980, %v981
  %v983 = vrot.slane %v982, 2
  %v984 = vadd.f32 %v982, %v983
  %v985 = vrot.slane %v984, 1
  %v986 = vadd.f32 %v984, %v985
  %v987 = vsel %vm110, %v904, 0.0
  %v988 = vsel %vm110, %v906, 0.0
  %v989 = vadd.f32 %v987, %v988
  %v990 = vrot.slane %v989, 4
  %v991 = vadd.f32 %v989, %v990
  %v992 = vrot.slane %v991, 2
  %v993 = vadd.f32 %v991, %v992
  %v994 = vrot.slane %v993, 1
  %v995 = vadd.f32 %v993, %v994
  %v996 = vsel %vm110, %v908, 0.0
  %v997 = vsel %vm110, %v910, 0.0
  %v998 = vadd.f32 %v996, %v997
  %v999 = vrot.slane %v998, 4
  %v1000 = vadd.f32 %v998, %v999
  %v1001 = vrot.slane %v1000, 2
  %v1002 = vadd.f32 %v1000, %v1001
  %v1003 = vrot.slane %v1002, 1
  %v1004 = vadd.f32 %v1002, %v1003
  %v1005 = vsel %vm110, %v912, 0.0
  %v1006 = vsel %vm110, %v914, 0.0
  %v1007 = vadd.f32 %v1005, %v1006
  %v1008 = vrot.slane %v1007, 4
  %v1009 = vadd.f32 %v1007, %v1008
  %v1010 = vrot.slane %v1009, 2
  %v1011 = vadd.f32 %v1009, %v1010
  %v1012 = vrot.slane %v1011, 1
  %v1013 = vadd.f32 %v1011, %v1012
  %v1014 = vsel %vm110, %v916, 0.0
  %v1015 = vsel %vm110, %v918, 0.0
  %v1016 = vadd.f32 %v1014, %v1015
  %v1017 = vrot.slane %v1016, 4
  %v1018 = vadd.f32 %v1016, %v1017
  %v1019 = vrot.slane %v1018, 2
  %v1020 = vadd.f32 %v1018, %v1019
  %v1021 = vrot.slane %v1020, 1
  %v1022 = vadd.f32 %v1020, %v1021
  %v1023 = vsel %vm110, %v920, 0.0
  %v1024 = vsel %vm110, %v922, 0.0
  %v1025 = vadd.f32 %v1023, %v1024
  %v1026 = vrot.slane %v1025, 4
  %v1027 = vadd.f32 %v1025, %v1026
  %v1028 = vrot.slane %v1027, 2
  %v1029 = vadd.f32 %v1027, %v1028
  %v1030 = vrot.slane %v1029, 1
  %v1031 = vadd.f32 %v1029, %v1030
  %v1032 = vsel %vm110, %v924, 0.0
  %v1033 = vsel %vm110, %v926, 0.0
  %v1034 = vadd.f32 %v1032, %v1033
  %v1035 = vrot.slane %v1034, 4
  %v1036 = vadd.f32 %v1034, %v1035
  %v1037 = vrot.slane %v1036, 2
  %v1038 = vadd.f32 %v1036, %v1037
  %v1039 = vrot.slane %v1038, 1
  %v1040 = vadd.f32 %v1038, %v1039
  %v1041 = vsel %vm110, %v928, 0.0
  %v1042 = vsel %vm110, %v930, 0.0
  %v1043 = vadd.f32 %v1041, %v1042
  %v1044 = vrot.slane %v1043, 4
  %v1045 = vadd.f32 %v1043, %v1044
  %v1046 = vrot.slane %v1045, 2
  %v1047 = vadd.f32 %v1045, %v1046
  %v1048 = vrot.slane %v1047, 1
  %v1049 = vadd.f32 %v1047, %v1048
  %v1050 = vsel %vm110, %v932, 0.0
  %v1051 = vsel %vm110, %v934, 0.0
  %v1052 = vadd.f32 %v1050, %v1051
  %v1053 = vrot.slane %v1052, 4
  %v1054 = vadd.f32 %v1052, %v1053
  %v1055 = vrot.slane %v1054, 2
  %v1056 = vadd.f32 %v1054, %v1055
  %v1057 = vrot.slane %v1056, 1
  %v1058 = vadd.f32 %v1056, %v1057
  %v1059 = vsel %vm110, %v936, 0.0
  %v1060 = vsel %vm110, %v938, 0.0
  %v1061 = vadd.f32 %v1059, %v1060
  %v1062 = vrot.slane %v1061, 4
  %v1063 = vadd.f32 %v1061, %v1062
  %v1064 = vrot.slane %v1063, 2
  %v1065 = vadd.f32 %v1063, %v1064
  %v1066 = vrot.slane %v1065, 1
  %v1067 = vadd.f32 %v1065, %v1066
  %v1068 = vsel %vm110, %v940, 0.0
  %v1069 = vsel %vm110, %v942, 0.0
  %v1070 = vadd.f32 %v1068, %v1069
  %v1071 = vrot.slane %v1070, 4
  %v1072 = vadd.f32 %v1070, %v1071
  %v1073 = vrot.slane %v1072, 2
  %v1074 = vadd.f32 %v1072, %v1073
  %v1075 = vrot.slane %v1074, 1
  %v1076 = vadd.f32 %v1074, %v1075
  %v1077 = vsel %vm110, %v944, 0.0
  %v1078 = vsel %vm110, %v946, 0.0
  %v1079 = vadd.f32 %v1077, %v1078
  %v1080 = vrot.slane %v1079, 4
  %v1081 = vadd.f32 %v1079, %v1080
  %v1082 = vrot.slane %v1081, 2
  %v1083 = vadd.f32 %v1081, %v1082
  %v1084 = vrot.slane %v1083, 1
  %v1085 = vadd.f32 %v1083, %v1084
  %v1086 = vsel %vm110, %v948, 0.0
  %v1087 = vsel %vm110, %v950, 0.0
  %v1088 = vadd.f32 %v1086, %v1087
  %v1089 = vrot.slane %v1088, 4
  %v1090 = vadd.f32 %v1088, %v1089
  %v1091 = vrot.slane %v1090, 2
  %v1092 = vadd.f32 %v1090, %v1091
  %v1093 = vrot.slane %v1092, 1
  %v1094 = vadd.f32 %v1092, %v1093
  %v1095 = vmax.f32 %v959, 1e-30
  %v1096 = vmax.f32 %v968, 1e-30
  %v1097 = vmax.f32 %v977, 1e-30
  %v1098 = vmax.f32 %v986, 1e-30
  %v1099 = vmax.f32 %v995, 1e-30
  %v1100 = vmax.f32 %v1004, 1e-30
  %v1101 = vmax.f32 %v1013, 1e-30
  %v1102 = vmax.f32 %v1022, 1e-30
  %v1103 = vmax.f32 %v1031, 1e-30
  %v1104 = vmax.f32 %v1040, 1e-30
  %v1105 = vmax.f32 %v1049, 1e-30
  %v1106 = vmax.f32 %v1058, 1e-30
  %v1107 = vmax.f32 %v1067, 1e-30
  %v1108 = vmax.f32 %v1076, 1e-30
  %v1109 = vmax.f32 %v1085, 1e-30
  %v1110 = vmax.f32 %v1094, 1e-30
  %1113 = vrot.lane.b32.xlu0 %v267, 120
  %v1114 = vpop.permute.xlu0 %1113
  %1115 = vrot.lane.b32.xlu0 %v272, 120
  %v1116 = vpop.permute.xlu0 %1115
  %v1119 = vmul.f32 %v888, %v1114
  %v1120 = vmul.f32 %v890, %v1116
  %v1121 = vmul.f32 %v892, %v1114
  %v1122 = vmul.f32 %v894, %v1116
  %v1123 = vmul.f32 %v896, %v1114
  %v1124 = vmul.f32 %v898, %v1116
  %v1125 = vmul.f32 %v900, %v1114
  %v1126 = vmul.f32 %v902, %v1116
  %v1127 = vmul.f32 %v904, %v1114
  %v1128 = vmul.f32 %v906, %v1116
  %v1129 = vmul.f32 %v908, %v1114
  %v1130 = vmul.f32 %v910, %v1116
  %v1131 = vmul.f32 %v912, %v1114
  %v1132 = vmul.f32 %v914, %v1116
  %v1133 = vmul.f32 %v916, %v1114
  %v1134 = vmul.f32 %v918, %v1116
  %v1135 = vmul.f32 %v920, %v1114
  %v1136 = vmul.f32 %v922, %v1116
  %v1137 = vmul.f32 %v924, %v1114
  %v1138 = vmul.f32 %v926, %v1116
  %v1139 = vmul.f32 %v928, %v1114
  %v1140 = vmul.f32 %v930, %v1116
  %v1141 = vmul.f32 %v932, %v1114
  %v1142 = vmul.f32 %v934, %v1116
  %v1143 = vmul.f32 %v936, %v1114
  %v1144 = vmul.f32 %v938, %v1116
  %v1145 = vmul.f32 %v940, %v1114
  %v1146 = vmul.f32 %v942, %v1116
  %v1147 = vmul.f32 %v944, %v1114
  %v1148 = vmul.f32 %v946, %v1116
  %v1149 = vmul.f32 %v948, %v1114
  %v1150 = vmul.f32 %v950, %v1116
  %v1151 = vsel %vm110, %v1119, 0.0
  %v1152 = vsel %vm110, %v1120, 0.0
  %v1153 = vadd.f32 %v1151, %v1152
  %v1154 = vrot.slane %v1153, 4
  %v1155 = vadd.f32 %v1153, %v1154
  %v1156 = vrot.slane %v1155, 2
  %v1157 = vadd.f32 %v1155, %v1156
  %v1158 = vrot.slane %v1157, 1
  %v1159 = vadd.f32 %v1157, %v1158
  %v1160 = vsel %vm110, %v1121, 0.0
  %v1161 = vsel %vm110, %v1122, 0.0
  %v1162 = vadd.f32 %v1160, %v1161
  %v1163 = vrot.slane %v1162, 4
  %v1164 = vadd.f32 %v1162, %v1163
  %v1165 = vrot.slane %v1164, 2
  %v1166 = vadd.f32 %v1164, %v1165
  %v1167 = vrot.slane %v1166, 1
  %v1168 = vadd.f32 %v1166, %v1167
  %v1169 = vsel %vm110, %v1123, 0.0
  %v1170 = vsel %vm110, %v1124, 0.0
  %v1171 = vadd.f32 %v1169, %v1170
  %v1172 = vrot.slane %v1171, 4
  %v1173 = vadd.f32 %v1171, %v1172
  %v1174 = vrot.slane %v1173, 2
  %v1175 = vadd.f32 %v1173, %v1174
  %v1176 = vrot.slane %v1175, 1
  %v1177 = vadd.f32 %v1175, %v1176
  %v1178 = vsel %vm110, %v1125, 0.0
  %v1179 = vsel %vm110, %v1126, 0.0
  %v1180 = vadd.f32 %v1178, %v1179
  %v1181 = vrot.slane %v1180, 4
  %v1182 = vadd.f32 %v1180, %v1181
  %v1183 = vrot.slane %v1182, 2
  %v1184 = vadd.f32 %v1182, %v1183
  %v1185 = vrot.slane %v1184, 1
  %v1186 = vadd.f32 %v1184, %v1185
  %v1187 = vsel %vm110, %v1127, 0.0
  %v1188 = vsel %vm110, %v1128, 0.0
  %v1189 = vadd.f32 %v1187, %v1188
  %v1190 = vrot.slane %v1189, 4
  %v1191 = vadd.f32 %v1189, %v1190
  %v1192 = vrot.slane %v1191, 2
  %v1193 = vadd.f32 %v1191, %v1192
  %v1194 = vrot.slane %v1193, 1
  %v1195 = vadd.f32 %v1193, %v1194
  %v1196 = vsel %vm110, %v1129, 0.0
  %v1197 = vsel %vm110, %v1130, 0.0
  %v1198 = vadd.f32 %v1196, %v1197
  %v1199 = vrot.slane %v1198, 4
  %v1200 = vadd.f32 %v1198, %v1199
  %v1201 = vrot.slane %v1200, 2
  %v1202 = vadd.f32 %v1200, %v1201
  %v1203 = vrot.slane %v1202, 1
  %v1204 = vadd.f32 %v1202, %v1203
  %v1205 = vsel %vm110, %v1131, 0.0
  %v1206 = vsel %vm110, %v1132, 0.0
  %v1207 = vadd.f32 %v1205, %v1206
  %v1208 = vrot.slane %v1207, 4
  %v1209 = vadd.f32 %v1207, %v1208
  %v1210 = vrot.slane %v1209, 2
  %v1211 = vadd.f32 %v1209, %v1210
  %v1212 = vrot.slane %v1211, 1
  %v1213 = vadd.f32 %v1211, %v1212
  %v1214 = vsel %vm110, %v1133, 0.0
  %v1215 = vsel %vm110, %v1134, 0.0
  %v1216 = vadd.f32 %v1214, %v1215
  %v1217 = vrot.slane %v1216, 4
  %v1218 = vadd.f32 %v1216, %v1217
  %v1219 = vrot.slane %v1218, 2
  %v1220 = vadd.f32 %v1218, %v1219
  %v1221 = vrot.slane %v1220, 1
  %v1222 = vadd.f32 %v1220, %v1221
  %v1223 = vsel %vm110, %v1135, 0.0
  %v1224 = vsel %vm110, %v1136, 0.0
  %v1225 = vadd.f32 %v1223, %v1224
  %v1226 = vrot.slane %v1225, 4
  %v1227 = vadd.f32 %v1225, %v1226
  %v1228 = vrot.slane %v1227, 2
  %v1229 = vadd.f32 %v1227, %v1228
  %v1230 = vrot.slane %v1229, 1
  %v1231 = vadd.f32 %v1229, %v1230
  %v1232 = vsel %vm110, %v1137, 0.0
  %v1233 = vsel %vm110, %v1138, 0.0
  %v1234 = vadd.f32 %v1232, %v1233
  %v1235 = vrot.slane %v1234, 4
  %v1236 = vadd.f32 %v1234, %v1235
  %v1237 = vrot.slane %v1236, 2
  %v1238 = vadd.f32 %v1236, %v1237
  %v1239 = vrot.slane %v1238, 1
  %v1240 = vadd.f32 %v1238, %v1239
  %v1241 = vsel %vm110, %v1139, 0.0
  %v1242 = vsel %vm110, %v1140, 0.0
  %v1243 = vadd.f32 %v1241, %v1242
  %v1244 = vrot.slane %v1243, 4
  %v1245 = vadd.f32 %v1243, %v1244
  %v1246 = vrot.slane %v1245, 2
  %v1247 = vadd.f32 %v1245, %v1246
  %v1248 = vrot.slane %v1247, 1
  %v1249 = vadd.f32 %v1247, %v1248
  %v1250 = vsel %vm110, %v1141, 0.0
  %v1251 = vsel %vm110, %v1142, 0.0
  %v1252 = vadd.f32 %v1250, %v1251
  %v1253 = vrot.slane %v1252, 4
  %v1254 = vadd.f32 %v1252, %v1253
  %v1255 = vrot.slane %v1254, 2
  %v1256 = vadd.f32 %v1254, %v1255
  %v1257 = vrot.slane %v1256, 1
  %v1258 = vadd.f32 %v1256, %v1257
  %v1259 = vsel %vm110, %v1143, 0.0
  %v1260 = vsel %vm110, %v1144, 0.0
  %v1261 = vadd.f32 %v1259, %v1260
  %v1262 = vrot.slane %v1261, 4
  %v1263 = vadd.f32 %v1261, %v1262
  %v1264 = vrot.slane %v1263, 2
  %v1265 = vadd.f32 %v1263, %v1264
  %v1266 = vrot.slane %v1265, 1
  %v1267 = vadd.f32 %v1265, %v1266
  %v1268 = vsel %vm110, %v1145, 0.0
  %v1269 = vsel %vm110, %v1146, 0.0
  %v1270 = vadd.f32 %v1268, %v1269
  %v1271 = vrot.slane %v1270, 4
  %v1272 = vadd.f32 %v1270, %v1271
  %v1273 = vrot.slane %v1272, 2
  %v1274 = vadd.f32 %v1272, %v1273
  %v1275 = vrot.slane %v1274, 1
  %v1276 = vadd.f32 %v1274, %v1275
  %v1277 = vsel %vm110, %v1147, 0.0
  %v1278 = vsel %vm110, %v1148, 0.0
  %v1279 = vadd.f32 %v1277, %v1278
  %v1280 = vrot.slane %v1279, 4
  %v1281 = vadd.f32 %v1279, %v1280
  %v1282 = vrot.slane %v1281, 2
  %v1283 = vadd.f32 %v1281, %v1282
  %v1284 = vrot.slane %v1283, 1
  %v1285 = vadd.f32 %v1283, %v1284
  %v1286 = vsel %vm110, %v1149, 0.0
  %v1287 = vsel %vm110, %v1150, 0.0
  %v1288 = vadd.f32 %v1286, %v1287
  %v1289 = vrot.slane %v1288, 4
  %v1290 = vadd.f32 %v1288, %v1289
  %v1291 = vrot.slane %v1290, 2
  %v1292 = vadd.f32 %v1290, %v1291
  %v1293 = vrot.slane %v1292, 1
  %v1294 = vadd.f32 %v1292, %v1293
  %v1295 = vrcp.pop %v1095
  %v1296 = vrcp.pop %v1096
  %v1297 = vrcp.pop %v1097
  %v1298 = vrcp.pop %v1098
  %v1299 = vrcp.pop %v1099
  %v1300 = vrcp.pop %v1100
  %v1301 = vrcp.pop %v1101
  %v1302 = vrcp.pop %v1102
  %v1303 = vrcp.pop %v1103
  %v1304 = vrcp.pop %v1104
  %v1305 = vrcp.pop %v1105
  %v1306 = vrcp.pop %v1106
  %v1307 = vrcp.pop %v1107
  %v1308 = vrcp.pop %v1108
  %v1309 = vrcp.pop %v1109
  %v1310 = vrcp.pop %v1110
  %v1311 = vmul.f32 %v1159, %v1295
  %v1312 = vmul.f32 %v1168, %v1296
  %v1313 = vmul.f32 %v1177, %v1297
  %v1314 = vmul.f32 %v1186, %v1298
  %v1315 = vmul.f32 %v1195, %v1299
  %v1316 = vmul.f32 %v1204, %v1300
  %v1317 = vmul.f32 %v1213, %v1301
  %v1318 = vmul.f32 %v1222, %v1302
  %v1319 = vmul.f32 %v1231, %v1303
  %v1320 = vmul.f32 %v1240, %v1304
  %v1321 = vmul.f32 %v1249, %v1305
  %v1322 = vmul.f32 %v1258, %v1306
  %v1323 = vmul.f32 %v1267, %v1307
  %v1324 = vmul.f32 %v1276, %v1308
  %v1325 = vmul.f32 %v1285, %v1309
  %v1326 = vmul.f32 %v1294, %v1310
  %v1327 = vld [vmem:[%s11] sm:$0xff]
  %v1328 = vld [vmem:[%s12] sm:$0x1]
  %v1330 = vlaneseq
  %v1331 = vshrl.u32 %v1330, 7
  %v1332 = vsub.s32 0, %v1331
  %v1333 = vrot.slane %v1328, %v1332
  %vm1351 = vcmask 1041409
  %v1352 = vsel %vm1351, %v1312, %v1311
  %vm1353 = vcmask 1042434
  %v1354 = vsel %vm1353, %v1313, %v1352
  %vm1355 = vcmask 1043459
  %v1356 = vsel %vm1355, %v1314, %v1354
  %vm1357 = vcmask 1044484
  %v1358 = vsel %vm1357, %v1315, %v1356
  %vm1359 = vcmask 1045509
  %v1360 = vsel %vm1359, %v1316, %v1358
  %vm1361 = vcmask 1046534
  %v1362 = vsel %vm1361, %v1317, %v1360
  %vm1363 = vcmask 1047559
  %v1364 = vsel %vm1363, %v1318, %v1362
  %v1365 = vsel %vm1351, %v1320, %v1319
  %v1366 = vsel %vm1353, %v1321, %v1365
  %v1367 = vsel %vm1355, %v1322, %v1366
  %v1368 = vsel %vm1357, %v1323, %v1367
  %v1369 = vsel %vm1359, %v1324, %v1368
  %v1370 = vsel %vm1361, %v1325, %v1369
  %v1371 = vsel %vm1363, %v1326, %v1370
  %v1372 = vsel %vm110, %v1364, 0
  %v1374 = vsel %vm110, %v1371, 0
  %1376 = vmatprep.subr.mxu0 0.0
  %1377 = vmatpush1.msra.mxu0 0.0
  %1378 = vmatprep.subr.mxu0 0.0
  %1379 = vmatpush1.msra.mxu0 0.0
  %1380 = vmatprep.subr.mxu0 0.0
  %1381 = vmatpush1.msra.mxu0 0.0
  %1382 = vmatprep.subr.mxu0 0.0
  %1383 = vmatpush1.msra.mxu0 0.0
  %1384 = vmatprep.subr.mxu0 0.0
  %1385 = vmatpush1.msra.mxu0 0.0
  %1386 = vmatprep.subr.mxu0 0.0
  %1387 = vmatpush1.msra.mxu0 0.0
  %1388 = vmatprep.subr.mxu0 0.0
  %1389 = vmatpush1.msra.mxu0 0.0
  %1390 = vmatprep.subr.mxu0 0.0
  %1391 = vmatpush1.msra.mxu0 0.0
  %1392 = vmatprep.subr.mxu0 0.0
  %1393 = vmatpush1.msra.mxu0 0.0
  %1394 = vmatprep.subr.mxu0 0.0
  %1395 = vmatpush1.msra.mxu0 0.0
  %1396 = vmatprep.subr.mxu0 0.0
  %1397 = vmatpush1.msra.mxu0 0.0
  %1398 = vmatprep.subr.mxu0 0.0
  %1399 = vmatpush1.msra.mxu0 0.0
  %1400 = vmatprep.subr.mxu0 0.0
  %1401 = vmatpush1.msra.mxu0 0.0
  %1402 = vmatprep.subr.mxu0 0.0
  %1403 = vmatpush1.msra.mxu0 0.0
  %1404 = vmatprep.subr.mxu0 0.0
  %1405 = vmatpush1.msra.mxu0 0.0
  %1406 = vmatprep.subr.mxu0 0.0
  %1407 = vmatpush1.msra.mxu0 %v1327
  %1408 = vmatprep.subr.mxu0 0.0
  %1409 = vmatpush2.msra.mxu0 0.0
  %1410 = vmatprep.subr.mxu0 0.0
  %1411 = vmatpush2.msra.mxu0 0.0
  %1412 = vmatprep.subr.mxu0 0.0
  %1413 = vmatpush2.msra.mxu0 0.0
  %1414 = vmatprep.subr.mxu0 0.0
  %1415 = vmatpush2.msra.mxu0 0.0
  %1416 = vmatprep.subr.mxu0 0.0
  %1417 = vmatpush2.msra.mxu0 0.0
  %1418 = vmatprep.subr.mxu0 0.0
  %1419 = vmatpush2.msra.mxu0 0.0
  %1420 = vmatprep.subr.mxu0 0.0
  %1421 = vmatpush2.msra.mxu0 0.0
  %1422 = vmatprep.subr.mxu0 0.0
  %1423 = vmatpush2.msra.mxu0 0.0
  %1424 = vmatprep.subr.mxu0 0.0
  %1425 = vmatpush2.msra.mxu0 0.0
  %1426 = vmatprep.subr.mxu0 0.0
  %1427 = vmatpush2.msra.mxu0 0.0
  %1428 = vmatprep.subr.mxu0 0.0
  %1429 = vmatpush2.msra.mxu0 0.0
  %1430 = vmatprep.subr.mxu0 0.0
  %1431 = vmatpush2.msra.mxu0 0.0
  %1432 = vmatprep.subr.mxu0 0.0
  %1433 = vmatpush2.msra.mxu0 0.0
  %1434 = vmatprep.subr.mxu0 0.0
  %1435 = vmatpush2.msra.mxu0 0.0
  %1436 = vmatprep.subr.mxu0 0.0
  %1437 = vmatpush2.msra.mxu0 0.0
  %1438 = vmatprep.subr.mxu0 0.0
  %1439 = vmatpush2.msra.mxu0 0.0
  %1440 = vmatprep.mubr.f32.mxu0 0.0
  %1441 = vmatmul.mubr.f32.gmra.mxu0 %v1372
  %v1442 = vpop.f32.mrf.mxu0
  %v1443 = vadd.f32 %v1333, %v1442
  %v1444 = vpop.f32.mrf.mxu0
  %1445 = vmatprep.mubr.f32.mxu0 0.0
  %1446 = vmatmul.mubr.f32.gmra.mxu0 %v1374
  %v1447 = vpop.f32.mrf.mxu0
  %v1448 = vadd.f32 %v1333, %v1447
  %v1449 = vpop.f32.mrf.mxu0
  %1450 = vdwg.mxu0
  %v1451 = vadd.f32 %v96, %v1443
  %v1452 = vadd.f32 %v97, %v1448
  %v1453 = vld [vmem:[%s17] sm:$0x1]
  %v1454 = vld [vmem:[%s18] sm:$0x1]
  %v1455 = vsel %vm110, %v1451, 0.0
  %1456 = vadd.xlane.f32.xlu0 %v1455
  %v1457 = vpop.xlane.xlu0 %1456
  %v1458 = vsel %vm110, %v1452, 0.0
  %1459 = vadd.xlane.f32.xlu0 %v1458
  %v1460 = vpop.xlane.xlu0 %1459
  %v1461 = vrcp.pop 8.0
  %v1462 = vmul.f32 %v1457, %v1461
  %v1463 = vmul.f32 %v1460, %v1461
  %v1464 = vsub.f32 %v1451, %v1462
  %v1465 = vsub.f32 %v1452, %v1463
  %v1466 = vmul.f32 %v1464, %v1464
  %v1467 = vmul.f32 %v1465, %v1465
  %v1468 = vsel %vm110, %v1466, 0.0
  %1469 = vadd.xlane.f32.xlu0 %v1468
  %v1470 = vpop.xlane.xlu0 %1469
  %v1471 = vsel %vm110, %v1467, 0.0
  %1472 = vadd.xlane.f32.xlu0 %v1471
  %v1473 = vpop.xlane.xlu0 %1472
  %v1474 = vmul.f32 %v1470, %v1461
  %v1475 = vmul.f32 %v1473, %v1461
  %v1476 = vadd.f32 %v1474, 1e-05
  %v1477 = vadd.f32 %v1475, 1e-05
  %v1478 = vrsqrt.pop %v1476
  %v1479 = vrsqrt.pop %v1477
  %v1480 = vmul.f32 %v1464, %v1478
  %v1481 = vmul.f32 %v1465, %v1479
  %v1483 = vlaneseq
  %v1484 = vshrl.u32 %v1483, 7
  %v1485 = vsub.s32 0, %v1484
  %v1486 = vrot.slane %v1453, %v1485
  %v1488 = vmul.f32 %v1480, %v1486
  %v1489 = vmul.f32 %v1481, %v1486
  %v1491 = vlaneseq
  %v1492 = vshrl.u32 %v1491, 7
  %v1493 = vsub.s32 0, %v1492
  %v1494 = vrot.slane %v1454, %v1493
  %v1496 = vadd.f32 %v1488, %v1494
  %v1497 = vadd.f32 %v1489, %v1494
  %v1498 = vld [vmem:[%s13] sm:$0xff]
  %v1499 = vld [vmem:[%s14] sm:$0x1]
  %v1501 = vlaneseq
  %v1502 = vshrl.u32 %v1501, 7
  %v1503 = vsub.s32 0, %v1502
  %v1504 = vrot.slane %v1499, %v1503
  %v1507 = vsel %vm110, %v1496, 0
  %v1510 = vsel %vm110, %v1497, 0
  %1512 = vmatprep.subr.mxu0 0.0
  %1513 = vmatpush1.msra.mxu0 0.0
  %1514 = vmatprep.subr.mxu0 0.0
  %1515 = vmatpush1.msra.mxu0 0.0
  %1516 = vmatprep.subr.mxu0 0.0
  %1517 = vmatpush1.msra.mxu0 0.0
  %1518 = vmatprep.subr.mxu0 0.0
  %1519 = vmatpush1.msra.mxu0 0.0
  %1520 = vmatprep.subr.mxu0 0.0
  %1521 = vmatpush1.msra.mxu0 0.0
  %1522 = vmatprep.subr.mxu0 0.0
  %1523 = vmatpush1.msra.mxu0 0.0
  %1524 = vmatprep.subr.mxu0 0.0
  %1525 = vmatpush1.msra.mxu0 0.0
  %1526 = vmatprep.subr.mxu0 0.0
  %1527 = vmatpush1.msra.mxu0 0.0
  %1528 = vmatprep.subr.mxu0 0.0
  %1529 = vmatpush1.msra.mxu0 0.0
  %1530 = vmatprep.subr.mxu0 0.0
  %1531 = vmatpush1.msra.mxu0 0.0
  %1532 = vmatprep.subr.mxu0 0.0
  %1533 = vmatpush1.msra.mxu0 0.0
  %1534 = vmatprep.subr.mxu0 0.0
  %1535 = vmatpush1.msra.mxu0 0.0
  %1536 = vmatprep.subr.mxu0 0.0
  %1537 = vmatpush1.msra.mxu0 0.0
  %1538 = vmatprep.subr.mxu0 0.0
  %1539 = vmatpush1.msra.mxu0 0.0
  %1540 = vmatprep.subr.mxu0 0.0
  %1541 = vmatpush1.msra.mxu0 0.0
  %1542 = vmatprep.subr.mxu0 0.0
  %1543 = vmatpush1.msra.mxu0 %v1498
  %1544 = vmatprep.subr.mxu0 0.0
  %1545 = vmatpush2.msra.mxu0 0.0
  %1546 = vmatprep.subr.mxu0 0.0
  %1547 = vmatpush2.msra.mxu0 0.0
  %1548 = vmatprep.subr.mxu0 0.0
  %1549 = vmatpush2.msra.mxu0 0.0
  %1550 = vmatprep.subr.mxu0 0.0
  %1551 = vmatpush2.msra.mxu0 0.0
  %1552 = vmatprep.subr.mxu0 0.0
  %1553 = vmatpush2.msra.mxu0 0.0
  %1554 = vmatprep.subr.mxu0 0.0
  %1555 = vmatpush2.msra.mxu0 0.0
  %1556 = vmatprep.subr.mxu0 0.0
  %1557 = vmatpush2.msra.mxu0 0.0
  %1558 = vmatprep.subr.mxu0 0.0
  %1559 = vmatpush2.msra.mxu0 0.0
  %1560 = vmatprep.subr.mxu0 0.0
  %1561 = vmatpush2.msra.mxu0 0.0
  %1562 = vmatprep.subr.mxu0 0.0
  %1563 = vmatpush2.msra.mxu0 0.0
  %1564 = vmatprep.subr.mxu0 0.0
  %1565 = vmatpush2.msra.mxu0 0.0
  %1566 = vmatprep.subr.mxu0 0.0
  %1567 = vmatpush2.msra.mxu0 0.0
  %1568 = vmatprep.subr.mxu0 0.0
  %1569 = vmatpush2.msra.mxu0 0.0
  %1570 = vmatprep.subr.mxu0 0.0
  %1571 = vmatpush2.msra.mxu0 0.0
  %1572 = vmatprep.subr.mxu0 0.0
  %1573 = vmatpush2.msra.mxu0 0.0
  %1574 = vmatprep.subr.mxu0 0.0
  %1575 = vmatpush2.msra.mxu0 0.0
  %1576 = vmatprep.mubr.f32.mxu0 0.0
  %1577 = vmatmul.mubr.f32.gmra.mxu0 %v1507
  %v1578 = vpop.f32.mrf.mxu0
  %v1579 = vadd.f32 %v1504, %v1578
  %v1580 = vpop.f32.mrf.mxu0
  %1581 = vmatprep.mubr.f32.mxu0 0.0
  %1582 = vmatmul.mubr.f32.gmra.mxu0 %v1510
  %v1583 = vpop.f32.mrf.mxu0
  %v1584 = vadd.f32 %v1504, %v1583
  %v1585 = vpop.f32.mrf.mxu0
  %1586 = vdwg.mxu0
  %v1587 = vmax.f32 %v1579, 0.0
  %v1588 = vmax.f32 %v1584, 0.0
  %v1589 = vld [vmem:[%s15] sm:$0xff]
  %v1590 = vld [vmem:[%s16] sm:$0x1]
  %v1592 = vlaneseq
  %v1593 = vshrl.u32 %v1592, 7
  %v1594 = vsub.s32 0, %v1593
  %v1595 = vrot.slane %v1590, %v1594
  %v1598 = vsel %vm110, %v1587, 0
  %v1601 = vsel %vm110, %v1588, 0
  %1603 = vmatprep.subr.mxu0 0.0
  %1604 = vmatpush1.msra.mxu0 0.0
  %1605 = vmatprep.subr.mxu0 0.0
  %1606 = vmatpush1.msra.mxu0 0.0
  %1607 = vmatprep.subr.mxu0 0.0
  %1608 = vmatpush1.msra.mxu0 0.0
  %1609 = vmatprep.subr.mxu0 0.0
  %1610 = vmatpush1.msra.mxu0 0.0
  %1611 = vmatprep.subr.mxu0 0.0
  %1612 = vmatpush1.msra.mxu0 0.0
  %1613 = vmatprep.subr.mxu0 0.0
  %1614 = vmatpush1.msra.mxu0 0.0
  %1615 = vmatprep.subr.mxu0 0.0
  %1616 = vmatpush1.msra.mxu0 0.0
  %1617 = vmatprep.subr.mxu0 0.0
  %1618 = vmatpush1.msra.mxu0 0.0
  %1619 = vmatprep.subr.mxu0 0.0
  %1620 = vmatpush1.msra.mxu0 0.0
  %1621 = vmatprep.subr.mxu0 0.0
  %1622 = vmatpush1.msra.mxu0 0.0
  %1623 = vmatprep.subr.mxu0 0.0
  %1624 = vmatpush1.msra.mxu0 0.0
  %1625 = vmatprep.subr.mxu0 0.0
  %1626 = vmatpush1.msra.mxu0 0.0
  %1627 = vmatprep.subr.mxu0 0.0
  %1628 = vmatpush1.msra.mxu0 0.0
  %1629 = vmatprep.subr.mxu0 0.0
  %1630 = vmatpush1.msra.mxu0 0.0
  %1631 = vmatprep.subr.mxu0 0.0
  %1632 = vmatpush1.msra.mxu0 0.0
  %1633 = vmatprep.subr.mxu0 0.0
  %1634 = vmatpush1.msra.mxu0 %v1589
  %1635 = vmatprep.subr.mxu0 0.0
  %1636 = vmatpush2.msra.mxu0 0.0
  %1637 = vmatprep.subr.mxu0 0.0
  %1638 = vmatpush2.msra.mxu0 0.0
  %1639 = vmatprep.subr.mxu0 0.0
  %1640 = vmatpush2.msra.mxu0 0.0
  %1641 = vmatprep.subr.mxu0 0.0
  %1642 = vmatpush2.msra.mxu0 0.0
  %1643 = vmatprep.subr.mxu0 0.0
  %1644 = vmatpush2.msra.mxu0 0.0
  %1645 = vmatprep.subr.mxu0 0.0
  %1646 = vmatpush2.msra.mxu0 0.0
  %1647 = vmatprep.subr.mxu0 0.0
  %1648 = vmatpush2.msra.mxu0 0.0
  %1649 = vmatprep.subr.mxu0 0.0
  %1650 = vmatpush2.msra.mxu0 0.0
  %1651 = vmatprep.subr.mxu0 0.0
  %1652 = vmatpush2.msra.mxu0 0.0
  %1653 = vmatprep.subr.mxu0 0.0
  %1654 = vmatpush2.msra.mxu0 0.0
  %1655 = vmatprep.subr.mxu0 0.0
  %1656 = vmatpush2.msra.mxu0 0.0
  %1657 = vmatprep.subr.mxu0 0.0
  %1658 = vmatpush2.msra.mxu0 0.0
  %1659 = vmatprep.subr.mxu0 0.0
  %1660 = vmatpush2.msra.mxu0 0.0
  %1661 = vmatprep.subr.mxu0 0.0
  %1662 = vmatpush2.msra.mxu0 0.0
  %1663 = vmatprep.subr.mxu0 0.0
  %1664 = vmatpush2.msra.mxu0 0.0
  %1665 = vmatprep.subr.mxu0 0.0
  %1666 = vmatpush2.msra.mxu0 0.0
  %1667 = vmatprep.mubr.f32.mxu0 0.0
  %1668 = vmatmul.mubr.f32.gmra.mxu0 %v1598
  %v1669 = vpop.f32.mrf.mxu0
  %v1670 = vadd.f32 %v1595, %v1669
  %v1671 = vpop.f32.mrf.mxu0
  %1672 = vmatprep.mubr.f32.mxu0 0.0
  %1673 = vmatmul.mubr.f32.gmra.mxu0 %v1601
  %v1674 = vpop.f32.mrf.mxu0
  %v1675 = vadd.f32 %v1595, %v1674
  %v1676 = vpop.f32.mrf.mxu0
  %1677 = vdwg.mxu0
  %v1678 = vadd.f32 %v1496, %v1670
  %v1679 = vadd.f32 %v1497, %v1675
  %s1680 = scalar_lea.vmem %s17, 1
  %v1681 = vld [vmem:[%s1680] sm:$0x1]
  %s1682 = scalar_lea.vmem %s18, 1
  %v1683 = vld [vmem:[%s1682] sm:$0x1]
  %v1684 = vsel %vm110, %v1678, 0.0
  %1685 = vadd.xlane.f32.xlu0 %v1684
  %v1686 = vpop.xlane.xlu0 %1685
  %v1687 = vsel %vm110, %v1679, 0.0
  %1688 = vadd.xlane.f32.xlu0 %v1687
  %v1689 = vpop.xlane.xlu0 %1688
  %v1690 = vmul.f32 %v1686, %v1461
  %v1691 = vmul.f32 %v1689, %v1461
  %v1692 = vsub.f32 %v1678, %v1690
  %v1693 = vsub.f32 %v1679, %v1691
  %v1694 = vmul.f32 %v1692, %v1692
  %v1695 = vmul.f32 %v1693, %v1693
  %v1696 = vsel %vm110, %v1694, 0.0
  %1697 = vadd.xlane.f32.xlu0 %v1696
  %v1698 = vpop.xlane.xlu0 %1697
  %v1699 = vsel %vm110, %v1695, 0.0
  %1700 = vadd.xlane.f32.xlu0 %v1699
  %v1701 = vpop.xlane.xlu0 %1700
  %v1702 = vmul.f32 %v1698, %v1461
  %v1703 = vmul.f32 %v1701, %v1461
  %v1704 = vadd.f32 %v1702, 1e-05
  %v1705 = vadd.f32 %v1703, 1e-05
  %v1706 = vrsqrt.pop %v1704
  %v1707 = vrsqrt.pop %v1705
  %v1708 = vmul.f32 %v1692, %v1706
  %v1709 = vmul.f32 %v1693, %v1707
  %v1711 = vlaneseq
  %v1712 = vshrl.u32 %v1711, 7
  %v1713 = vsub.s32 0, %v1712
  %v1714 = vrot.slane %v1681, %v1713
  %v1716 = vmul.f32 %v1708, %v1714
  %v1717 = vmul.f32 %v1709, %v1714
  %v1719 = vlaneseq
  %v1720 = vshrl.u32 %v1719, 7
  %v1721 = vsub.s32 0, %v1720
  %v1722 = vrot.slane %v1683, %v1721
  %v1724 = vadd.f32 %v1716, %v1722
  %v1725 = vadd.f32 %v1717, %v1722
  %s1726 = scalar_lea.vmem %s17, 2
  %v1727 = vld [vmem:[%s1726] sm:$0x1]
  %s1728 = scalar_lea.vmem %s18, 2
  %v1729 = vld [vmem:[%s1728] sm:$0x1]
  %v1730 = vsel %vm110, %v1724, 0.0
  %1731 = vadd.xlane.f32.xlu0 %v1730
  %v1732 = vpop.xlane.xlu0 %1731
  %v1733 = vsel %vm110, %v1725, 0.0
  %1734 = vadd.xlane.f32.xlu0 %v1733
  %v1735 = vpop.xlane.xlu0 %1734
  %v1736 = vmul.f32 %v1732, %v1461
  %v1737 = vmul.f32 %v1735, %v1461
  %v1738 = vsub.f32 %v1724, %v1736
  %v1739 = vsub.f32 %v1725, %v1737
  %v1740 = vmul.f32 %v1738, %v1738
  %v1741 = vmul.f32 %v1739, %v1739
  %v1742 = vsel %vm110, %v1740, 0.0
  %1743 = vadd.xlane.f32.xlu0 %v1742
  %v1744 = vpop.xlane.xlu0 %1743
  %v1745 = vsel %vm110, %v1741, 0.0
  %1746 = vadd.xlane.f32.xlu0 %v1745
  %v1747 = vpop.xlane.xlu0 %1746
  %v1748 = vmul.f32 %v1744, %v1461
  %v1749 = vmul.f32 %v1747, %v1461
  %v1750 = vadd.f32 %v1748, 1e-05
  %v1751 = vadd.f32 %v1749, 1e-05
  %v1752 = vrsqrt.pop %v1750
  %v1753 = vrsqrt.pop %v1751
  %v1754 = vmul.f32 %v1738, %v1752
  %v1755 = vmul.f32 %v1739, %v1753
  %v1757 = vlaneseq
  %v1758 = vshrl.u32 %v1757, 7
  %v1759 = vsub.s32 0, %v1758
  %v1760 = vrot.slane %v1727, %v1759
  %v1762 = vmul.f32 %v1754, %v1760
  %v1763 = vmul.f32 %v1755, %v1760
  %v1765 = vlaneseq
  %v1766 = vshrl.u32 %v1765, 7
  %v1767 = vsub.s32 0, %v1766
  %v1768 = vrot.slane %v1729, %v1767
  %v1770 = vadd.f32 %v1762, %v1768
  %v1771 = vadd.f32 %v1763, %v1768
  %v1772 = vld [vmem:[%s3] sm:$0xff]
  %v1773 = vld [vmem:[%s3 + $0x8] sm:$0xf]
  %s1774 = scalar_lea.vmem %s7, 8
  %v1775 = vld [vmem:[%s1774] sm:$0xff]
  %s1776 = scalar_lea.vmem %s8, 1
  %v1777 = vld [vmem:[%s1776] sm:$0x1]
  %v1779 = vlaneseq
  %v1780 = vshrl.u32 %v1779, 7
  %v1781 = vsub.s32 0, %v1780
  %v1782 = vrot.slane %v1777, %v1781
  %v1785 = vsel %vm110, %v98, 0
  %v1788 = vsel %vm110, %v99, 0
  %1790 = vmatprep.subr.mxu0 0.0
  %1791 = vmatpush1.msra.mxu0 0.0
  %1792 = vmatprep.subr.mxu0 0.0
  %1793 = vmatpush1.msra.mxu0 0.0
  %1794 = vmatprep.subr.mxu0 0.0
  %1795 = vmatpush1.msra.mxu0 0.0
  %1796 = vmatprep.subr.mxu0 0.0
  %1797 = vmatpush1.msra.mxu0 0.0
  %1798 = vmatprep.subr.mxu0 0.0
  %1799 = vmatpush1.msra.mxu0 0.0
  %1800 = vmatprep.subr.mxu0 0.0
  %1801 = vmatpush1.msra.mxu0 0.0
  %1802 = vmatprep.subr.mxu0 0.0
  %1803 = vmatpush1.msra.mxu0 0.0
  %1804 = vmatprep.subr.mxu0 0.0
  %1805 = vmatpush1.msra.mxu0 0.0
  %1806 = vmatprep.subr.mxu0 0.0
  %1807 = vmatpush1.msra.mxu0 0.0
  %1808 = vmatprep.subr.mxu0 0.0
  %1809 = vmatpush1.msra.mxu0 0.0
  %1810 = vmatprep.subr.mxu0 0.0
  %1811 = vmatpush1.msra.mxu0 0.0
  %1812 = vmatprep.subr.mxu0 0.0
  %1813 = vmatpush1.msra.mxu0 0.0
  %1814 = vmatprep.subr.mxu0 0.0
  %1815 = vmatpush1.msra.mxu0 0.0
  %1816 = vmatprep.subr.mxu0 0.0
  %1817 = vmatpush1.msra.mxu0 0.0
  %1818 = vmatprep.subr.mxu0 0.0
  %1819 = vmatpush1.msra.mxu0 0.0
  %1820 = vmatprep.subr.mxu0 0.0
  %1821 = vmatpush1.msra.mxu0 %v1775
  %1822 = vmatprep.subr.mxu0 0.0
  %1823 = vmatpush2.msra.mxu0 0.0
  %1824 = vmatprep.subr.mxu0 0.0
  %1825 = vmatpush2.msra.mxu0 0.0
  %1826 = vmatprep.subr.mxu0 0.0
  %1827 = vmatpush2.msra.mxu0 0.0
  %1828 = vmatprep.subr.mxu0 0.0
  %1829 = vmatpush2.msra.mxu0 0.0
  %1830 = vmatprep.subr.mxu0 0.0
  %1831 = vmatpush2.msra.mxu0 0.0
  %1832 = vmatprep.subr.mxu0 0.0
  %1833 = vmatpush2.msra.mxu0 0.0
  %1834 = vmatprep.subr.mxu0 0.0
  %1835 = vmatpush2.msra.mxu0 0.0
  %1836 = vmatprep.subr.mxu0 0.0
  %1837 = vmatpush2.msra.mxu0 0.0
  %1838 = vmatprep.subr.mxu0 0.0
  %1839 = vmatpush2.msra.mxu0 0.0
  %1840 = vmatprep.subr.mxu0 0.0
  %1841 = vmatpush2.msra.mxu0 0.0
  %1842 = vmatprep.subr.mxu0 0.0
  %1843 = vmatpush2.msra.mxu0 0.0
  %1844 = vmatprep.subr.mxu0 0.0
  %1845 = vmatpush2.msra.mxu0 0.0
  %1846 = vmatprep.subr.mxu0 0.0
  %1847 = vmatpush2.msra.mxu0 0.0
  %1848 = vmatprep.subr.mxu0 0.0
  %1849 = vmatpush2.msra.mxu0 0.0
  %1850 = vmatprep.subr.mxu0 0.0
  %1851 = vmatpush2.msra.mxu0 0.0
  %1852 = vmatprep.subr.mxu0 0.0
  %1853 = vmatpush2.msra.mxu0 0.0
  %1854 = vmatprep.mubr.f32.mxu0 0.0
  %1855 = vmatmul.mubr.f32.gmra.mxu0 %v1785
  %v1856 = vpop.f32.mrf.mxu0
  %v1857 = vadd.f32 %v1782, %v1856
  %v1858 = vpop.f32.mrf.mxu0
  %1859 = vmatprep.mubr.f32.mxu0 0.0
  %1860 = vmatmul.mubr.f32.gmra.mxu0 %v1788
  %v1861 = vpop.f32.mrf.mxu0
  %v1862 = vadd.f32 %v1782, %v1861
  %v1863 = vpop.f32.mrf.mxu0
  %1864 = vdwg.mxu0
  %s1865 = scalar_lea.vmem %s9, 8
  %v1866 = vld [vmem:[%s1865] sm:$0xff]
  %s1867 = scalar_lea.vmem %s10, 1
  %v1868 = vld [vmem:[%s1867] sm:$0x1]
  %v1870 = vlaneseq
  %v1871 = vshrl.u32 %v1870, 7
  %v1872 = vsub.s32 0, %v1871
  %v1873 = vrot.slane %v1868, %v1872
  %1875 = vmatprep.subr.mxu0 0.0
  %1876 = vmatpush1.msra.mxu0 0.0
  %1877 = vmatprep.subr.mxu0 0.0
  %1878 = vmatpush1.msra.mxu0 0.0
  %1879 = vmatprep.subr.mxu0 0.0
  %1880 = vmatpush1.msra.mxu0 0.0
  %1881 = vmatprep.subr.mxu0 0.0
  %1882 = vmatpush1.msra.mxu0 0.0
  %1883 = vmatprep.subr.mxu0 0.0
  %1884 = vmatpush1.msra.mxu0 0.0
  %1885 = vmatprep.subr.mxu0 0.0
  %1886 = vmatpush1.msra.mxu0 0.0
  %1887 = vmatprep.subr.mxu0 0.0
  %1888 = vmatpush1.msra.mxu0 0.0
  %1889 = vmatprep.subr.mxu0 0.0
  %1890 = vmatpush1.msra.mxu0 0.0
  %1891 = vmatprep.subr.mxu0 0.0
  %1892 = vmatpush1.msra.mxu0 0.0
  %1893 = vmatprep.subr.mxu0 0.0
  %1894 = vmatpush1.msra.mxu0 0.0
  %1895 = vmatprep.subr.mxu0 0.0
  %1896 = vmatpush1.msra.mxu0 0.0
  %1897 = vmatprep.subr.mxu0 0.0
  %1898 = vmatpush1.msra.mxu0 0.0
  %1899 = vmatprep.subr.mxu0 0.0
  %1900 = vmatpush1.msra.mxu0 0.0
  %1901 = vmatprep.subr.mxu0 0.0
  %1902 = vmatpush1.msra.mxu0 0.0
  %1903 = vmatprep.subr.mxu0 0.0
  %1904 = vmatpush1.msra.mxu0 0.0
  %1905 = vmatprep.subr.mxu0 0.0
  %1906 = vmatpush1.msra.mxu0 %v1866
  %1907 = vmatprep.subr.mxu0 0.0
  %1908 = vmatpush2.msra.mxu0 0.0
  %1909 = vmatprep.subr.mxu0 0.0
  %1910 = vmatpush2.msra.mxu0 0.0
  %1911 = vmatprep.subr.mxu0 0.0
  %1912 = vmatpush2.msra.mxu0 0.0
  %1913 = vmatprep.subr.mxu0 0.0
  %1914 = vmatpush2.msra.mxu0 0.0
  %1915 = vmatprep.subr.mxu0 0.0
  %1916 = vmatpush2.msra.mxu0 0.0
  %1917 = vmatprep.subr.mxu0 0.0
  %1918 = vmatpush2.msra.mxu0 0.0
  %1919 = vmatprep.subr.mxu0 0.0
  %1920 = vmatpush2.msra.mxu0 0.0
  %1921 = vmatprep.subr.mxu0 0.0
  %1922 = vmatpush2.msra.mxu0 0.0
  %1923 = vmatprep.subr.mxu0 0.0
  %1924 = vmatpush2.msra.mxu0 0.0
  %1925 = vmatprep.subr.mxu0 0.0
  %1926 = vmatpush2.msra.mxu0 0.0
  %1927 = vmatprep.subr.mxu0 0.0
  %1928 = vmatpush2.msra.mxu0 0.0
  %1929 = vmatprep.subr.mxu0 0.0
  %1930 = vmatpush2.msra.mxu0 0.0
  %1931 = vmatprep.subr.mxu0 0.0
  %1932 = vmatpush2.msra.mxu0 0.0
  %1933 = vmatprep.subr.mxu0 0.0
  %1934 = vmatpush2.msra.mxu0 0.0
  %1935 = vmatprep.subr.mxu0 0.0
  %1936 = vmatpush2.msra.mxu0 0.0
  %1937 = vmatprep.subr.mxu0 0.0
  %1938 = vmatpush2.msra.mxu0 0.0
  %1939 = vmatprep.mubr.f32.mxu0 0.0
  %1940 = vmatmul.mubr.f32.gmra.mxu0 %v1785
  %v1941 = vpop.f32.mrf.mxu0
  %v1942 = vadd.f32 %v1873, %v1941
  %v1943 = vpop.f32.mrf.mxu0
  %1944 = vmatprep.mubr.f32.mxu0 0.0
  %1945 = vmatmul.mubr.f32.gmra.mxu0 %v1788
  %v1946 = vpop.f32.mrf.mxu0
  %v1947 = vadd.f32 %v1873, %v1946
  %v1948 = vpop.f32.mrf.mxu0
  %1949 = vdwg.mxu0
  %v1952 = vcombine.high %v1857, %v1857
  %v1954 = vunpack.c.l.s4 1966171168
  %v1955 = vunpack.c.0.s8 %v1954
  %v1956 = vlaneseq
  %v1957 = vshrl.u32 %v1956, 7
  %v1958 = vsub.s32 %v1955, %v1957
  %v1959 = vrot.slane %v1857, %v1958
  %v1961 = vunpack.c.l.s4 1966171168
  %v1962 = vunpack.c.0.s8 %v1961
  %v1963 = vlaneseq
  %v1964 = vshrl.u32 %v1963, 7
  %v1965 = vsub.s32 %v1962, %v1964
  %v1966 = vrot.slane %v1952, %v1965
  %v1967 = vcombine.high %v1959, %v1959
  %v1968 = vcombine.high %v1966, %v1966
  %v1970 = vunpack.c.l.s4 1966171168
  %v1971 = vunpack.c.0.s8 %v1970
  %v1972 = vlaneseq
  %v1973 = vshrl.u32 %v1972, 7
  %v1974 = vsub.s32 %v1971, %v1973
  %v1975 = vrot.slane %v1959, %v1974
  %v1977 = vunpack.c.l.s4 1966171168
  %v1978 = vunpack.c.0.s8 %v1977
  %v1979 = vlaneseq
  %v1980 = vshrl.u32 %v1979, 7
  %v1981 = vsub.s32 %v1978, %v1980
  %v1982 = vrot.slane %v1966, %v1981
  %v1984 = vunpack.c.l.s4 1966171168
  %v1985 = vunpack.c.0.s8 %v1984
  %v1986 = vlaneseq
  %v1987 = vshrl.u32 %v1986, 7
  %v1988 = vsub.s32 %v1985, %v1987
  %v1989 = vrot.slane %v1967, %v1988
  %v1991 = vunpack.c.l.s4 1966171168
  %v1992 = vunpack.c.0.s8 %v1991
  %v1993 = vlaneseq
  %v1994 = vshrl.u32 %v1993, 7
  %v1995 = vsub.s32 %v1992, %v1994
  %v1996 = vrot.slane %v1968, %v1995
  %v1997 = vcombine.high %v1975, %v1975
  %v1998 = vcombine.high %v1982, %v1982
  %v1999 = vcombine.high %v1989, %v1989
  %v2000 = vcombine.high %v1996, %v1996
  %v2002 = vunpack.c.l.s4 1966171168
  %v2003 = vunpack.c.0.s8 %v2002
  %v2004 = vlaneseq
  %v2005 = vshrl.u32 %v2004, 7
  %v2006 = vsub.s32 %v2003, %v2005
  %v2007 = vrot.slane %v1862, %v2006
  %v2008 = vcombine.high %v2007, %v2007
  %v2010 = vunpack.c.l.s4 1966171168
  %v2011 = vunpack.c.0.s8 %v2010
  %v2012 = vlaneseq
  %v2013 = vshrl.u32 %v2012, 7
  %v2014 = vsub.s32 %v2011, %v2013
  %v2015 = vrot.slane %v2007, %v2014
  %v2017 = vunpack.c.l.s4 1966171168
  %v2018 = vunpack.c.0.s8 %v2017
  %v2019 = vlaneseq
  %v2020 = vshrl.u32 %v2019, 7
  %v2021 = vsub.s32 %v2018, %v2020
  %v2022 = vrot.slane %v2008, %v2021
  %v2023 = vcombine.high %v2015, %v2015
  %v2024 = vcombine.high %v2022, %v2022
  %v2025 = vlaneseq
  %v2026 = vshrl.u32 %v2025, 7
  %v2027 = vsub.s32 0, %v2026
  %v2028 = vrot.slane %v1975, %v2027
  %v2029 = vlaneseq
  %v2030 = vshrl.u32 %v2029, 7
  %v2031 = vsub.s32 0, %v2030
  %v2032 = vrot.slane %v1989, %v2031
  %v2033 = vlaneseq
  %v2034 = vshrl.u32 %v2033, 7
  %v2035 = vsub.s32 0, %v2034
  %v2036 = vrot.slane %v1997, %v2035
  %v2037 = vlaneseq
  %v2038 = vshrl.u32 %v2037, 7
  %v2039 = vsub.s32 0, %v2038
  %v2040 = vrot.slane %v1999, %v2039
  %v2041 = vlaneseq
  %v2042 = vshrl.u32 %v2041, 7
  %v2043 = vsub.s32 0, %v2042
  %v2044 = vrot.slane %v1982, %v2043
  %v2045 = vlaneseq
  %v2046 = vshrl.u32 %v2045, 7
  %v2047 = vsub.s32 0, %v2046
  %v2048 = vrot.slane %v1996, %v2047
  %v2049 = vlaneseq
  %v2050 = vshrl.u32 %v2049, 7
  %v2051 = vsub.s32 0, %v2050
  %v2052 = vrot.slane %v1998, %v2051
  %v2053 = vlaneseq
  %v2054 = vshrl.u32 %v2053, 7
  %v2055 = vsub.s32 0, %v2054
  %v2056 = vrot.slane %v2000, %v2055
  %v2057 = vlaneseq
  %v2058 = vshrl.u32 %v2057, 7
  %v2059 = vsub.s32 0, %v2058
  %v2060 = vrot.slane %v2015, %v2059
  %v2061 = vlaneseq
  %v2062 = vshrl.u32 %v2061, 7
  %v2063 = vsub.s32 0, %v2062
  %v2064 = vrot.slane %v2022, %v2063
  %v2065 = vlaneseq
  %v2066 = vshrl.u32 %v2065, 7
  %v2067 = vsub.s32 0, %v2066
  %v2068 = vrot.slane %v2023, %v2067
  %v2069 = vlaneseq
  %v2070 = vshrl.u32 %v2069, 7
  %v2071 = vsub.s32 0, %v2070
  %v2072 = vrot.slane %v2024, %v2071
  %v2085 = vmul.f32 %v2028, %v1942
  %v2086 = vmul.f32 %v2028, %v1947
  %v2087 = vmul.f32 %v2032, %v1942
  %v2088 = vmul.f32 %v2032, %v1947
  %v2089 = vmul.f32 %v2036, %v1942
  %v2090 = vmul.f32 %v2036, %v1947
  %v2091 = vmul.f32 %v2040, %v1942
  %v2092 = vmul.f32 %v2040, %v1947
  %v2093 = vmul.f32 %v2044, %v1942
  %v2094 = vmul.f32 %v2044, %v1947
  %v2095 = vmul.f32 %v2048, %v1942
  %v2096 = vmul.f32 %v2048, %v1947
  %v2097 = vmul.f32 %v2052, %v1942
  %v2098 = vmul.f32 %v2052, %v1947
  %v2099 = vmul.f32 %v2056, %v1942
  %v2100 = vmul.f32 %v2056, %v1947
  %v2101 = vmul.f32 %v2060, %v1942
  %v2102 = vmul.f32 %v2060, %v1947
  %v2103 = vmul.f32 %v2064, %v1942
  %v2104 = vmul.f32 %v2064, %v1947
  %v2105 = vmul.f32 %v2068, %v1942
  %v2106 = vmul.f32 %v2068, %v1947
  %v2107 = vmul.f32 %v2072, %v1942
  %v2108 = vmul.f32 %v2072, %v1947
  %v2109 = vlaneseq
  %v2110 = vshrl.u32 %v2109, 7
  %v2111 = vsub.s32 0, %v2110
  %v2112 = vrot.slane %v1772, %v2111
  %2114 = vbcast.lane.b32.xlu0 %v2112, 256
  %v2115 = vpop.permute.xlu0 %2114
  %s2117 = sor.u32 256, 8
  %2118 = vbcast.lane.b32.xlu0 %v2112, %s2117
  %v2119 = vpop.permute.xlu0 %2118
  %v2120 = vlaneseq
  %v2121 = vshrl.u32 %v2120, 7
  %v2122 = vsub.s32 1, %v2121
  %v2123 = vrot.slane %v1772, %v2122
  %2125 = vbcast.lane.b32.xlu0 %v2123, 256
  %v2126 = vpop.permute.xlu0 %2125
  %s2128 = sor.u32 256, 8
  %2129 = vbcast.lane.b32.xlu0 %v2123, %s2128
  %v2130 = vpop.permute.xlu0 %2129
  %v2131 = vlaneseq
  %v2132 = vshrl.u32 %v2131, 7
  %v2133 = vsub.s32 2, %v2132
  %v2134 = vrot.slane %v1772, %v2133
  %2136 = vbcast.lane.b32.xlu0 %v2134, 256
  %v2137 = vpop.permute.xlu0 %2136
  %s2139 = sor.u32 256, 8
  %2140 = vbcast.lane.b32.xlu0 %v2134, %s2139
  %v2141 = vpop.permute.xlu0 %2140
  %v2142 = vlaneseq
  %v2143 = vshrl.u32 %v2142, 7
  %v2144 = vsub.s32 3, %v2143
  %v2145 = vrot.slane %v1772, %v2144
  %2147 = vbcast.lane.b32.xlu0 %v2145, 256
  %v2148 = vpop.permute.xlu0 %2147
  %s2150 = sor.u32 256, 8
  %2151 = vbcast.lane.b32.xlu0 %v2145, %s2150
  %v2152 = vpop.permute.xlu0 %2151
  %v2153 = vlaneseq
  %v2154 = vshrl.u32 %v2153, 7
  %v2155 = vsub.s32 4, %v2154
  %v2156 = vrot.slane %v1772, %v2155
  %2158 = vbcast.lane.b32.xlu0 %v2156, 256
  %v2159 = vpop.permute.xlu0 %2158
  %s2161 = sor.u32 256, 8
  %2162 = vbcast.lane.b32.xlu0 %v2156, %s2161
  %v2163 = vpop.permute.xlu0 %2162
  %v2164 = vlaneseq
  %v2165 = vshrl.u32 %v2164, 7
  %v2166 = vsub.s32 5, %v2165
  %v2167 = vrot.slane %v1772, %v2166
  %2169 = vbcast.lane.b32.xlu0 %v2167, 256
  %v2170 = vpop.permute.xlu0 %2169
  %s2172 = sor.u32 256, 8
  %2173 = vbcast.lane.b32.xlu0 %v2167, %s2172
  %v2174 = vpop.permute.xlu0 %2173
  %v2175 = vlaneseq
  %v2176 = vshrl.u32 %v2175, 7
  %v2177 = vsub.s32 6, %v2176
  %v2178 = vrot.slane %v1772, %v2177
  %2180 = vbcast.lane.b32.xlu0 %v2178, 256
  %v2181 = vpop.permute.xlu0 %2180
  %s2183 = sor.u32 256, 8
  %2184 = vbcast.lane.b32.xlu0 %v2178, %s2183
  %v2185 = vpop.permute.xlu0 %2184
  %v2186 = vlaneseq
  %v2187 = vshrl.u32 %v2186, 7
  %v2188 = vsub.s32 7, %v2187
  %v2189 = vrot.slane %v1772, %v2188
  %2191 = vbcast.lane.b32.xlu0 %v2189, 256
  %v2192 = vpop.permute.xlu0 %2191
  %s2194 = sor.u32 256, 8
  %2195 = vbcast.lane.b32.xlu0 %v2189, %s2194
  %v2196 = vpop.permute.xlu0 %2195
  %v2197 = vlaneseq
  %v2198 = vshrl.u32 %v2197, 7
  %v2199 = vsub.s32 0, %v2198
  %v2200 = vrot.slane %v1773, %v2199
  %2202 = vbcast.lane.b32.xlu0 %v2200, 256
  %v2203 = vpop.permute.xlu0 %2202
  %s2205 = sor.u32 256, 8
  %2206 = vbcast.lane.b32.xlu0 %v2200, %s2205
  %v2207 = vpop.permute.xlu0 %2206
  %v2208 = vlaneseq
  %v2209 = vshrl.u32 %v2208, 7
  %v2210 = vsub.s32 1, %v2209
  %v2211 = vrot.slane %v1773, %v2210
  %2213 = vbcast.lane.b32.xlu0 %v2211, 256
  %v2214 = vpop.permute.xlu0 %2213
  %s2216 = sor.u32 256, 8
  %2217 = vbcast.lane.b32.xlu0 %v2211, %s2216
  %v2218 = vpop.permute.xlu0 %2217
  %v2219 = vlaneseq
  %v2220 = vshrl.u32 %v2219, 7
  %v2221 = vsub.s32 2, %v2220
  %v2222 = vrot.slane %v1773, %v2221
  %2224 = vbcast.lane.b32.xlu0 %v2222, 256
  %v2225 = vpop.permute.xlu0 %2224
  %s2227 = sor.u32 256, 8
  %2228 = vbcast.lane.b32.xlu0 %v2222, %s2227
  %v2229 = vpop.permute.xlu0 %2228
  %v2230 = vlaneseq
  %v2231 = vshrl.u32 %v2230, 7
  %v2232 = vsub.s32 3, %v2231
  %v2233 = vrot.slane %v1773, %v2232
  %2235 = vbcast.lane.b32.xlu0 %v2233, 256
  %v2236 = vpop.permute.xlu0 %2235
  %s2238 = sor.u32 256, 8
  %2239 = vbcast.lane.b32.xlu0 %v2233, %s2238
  %v2240 = vpop.permute.xlu0 %2239
  %v2241 = vadd.f32 %v2085, %v2115
  %v2242 = vadd.f32 %v2086, %v2119
  %v2243 = vadd.f32 %v2087, %v2126
  %v2244 = vadd.f32 %v2088, %v2130
  %v2245 = vadd.f32 %v2089, %v2137
  %v2246 = vadd.f32 %v2090, %v2141
  %v2247 = vadd.f32 %v2091, %v2148
  %v2248 = vadd.f32 %v2092, %v2152
  %v2249 = vadd.f32 %v2093, %v2159
  %v2250 = vadd.f32 %v2094, %v2163
  %v2251 = vadd.f32 %v2095, %v2170
  %v2252 = vadd.f32 %v2096, %v2174
  %v2253 = vadd.f32 %v2097, %v2181
  %v2254 = vadd.f32 %v2098, %v2185
  %v2255 = vadd.f32 %v2099, %v2192
  %v2256 = vadd.f32 %v2100, %v2196
  %v2257 = vadd.f32 %v2101, %v2203
  %v2258 = vadd.f32 %v2102, %v2207
  %v2259 = vadd.f32 %v2103, %v2214
  %v2260 = vadd.f32 %v2104, %v2218
  %v2261 = vadd.f32 %v2105, %v2225
  %v2262 = vadd.f32 %v2106, %v2229
  %v2263 = vadd.f32 %v2107, %v2236
  %v2264 = vadd.f32 %v2108, %v2240
  %v2265 = vsel %vm110, %v2241, -inf
  %vm2266 = vcmask 60416
  %v2267 = vsel %vm2266, %v2242, -inf
  %v2268 = vmax.f32 %v2265, %v2267
  %v2269 = vrot.slane %v2268, 4
  %v2270 = vmax.f32 %v2268, %v2269
  %v2271 = vrot.slane %v2270, 2
  %v2272 = vmax.f32 %v2270, %v2271
  %v2273 = vrot.slane %v2272, 1
  %v2274 = vmax.f32 %v2272, %v2273
  %v2275 = vsel %vm110, %v2243, -inf
  %v2276 = vsel %vm2266, %v2244, -inf
  %v2277 = vmax.f32 %v2275, %v2276
  %v2278 = vrot.slane %v2277, 4
  %v2279 = vmax.f32 %v2277, %v2278
  %v2280 = vrot.slane %v2279, 2
  %v2281 = vmax.f32 %v2279, %v2280
  %v2282 = vrot.slane %v2281, 1
  %v2283 = vmax.f32 %v2281, %v2282
  %v2284 = vsel %vm110, %v2245, -inf
  %v2285 = vsel %vm2266, %v2246, -inf
  %v2286 = vmax.f32 %v2284, %v2285
  %v2287 = vrot.slane %v2286, 4
  %v2288 = vmax.f32 %v2286, %v2287
  %v2289 = vrot.slane %v2288, 2
  %v2290 = vmax.f32 %v2288, %v2289
  %v2291 = vrot.slane %v2290, 1
  %v2292 = vmax.f32 %v2290, %v2291
  %v2293 = vsel %vm110, %v2247, -inf
  %v2294 = vsel %vm2266, %v2248, -inf
  %v2295 = vmax.f32 %v2293, %v2294
  %v2296 = vrot.slane %v2295, 4
  %v2297 = vmax.f32 %v2295, %v2296
  %v2298 = vrot.slane %v2297, 2
  %v2299 = vmax.f32 %v2297, %v2298
  %v2300 = vrot.slane %v2299, 1
  %v2301 = vmax.f32 %v2299, %v2300
  %v2302 = vsel %vm110, %v2249, -inf
  %v2303 = vsel %vm2266, %v2250, -inf
  %v2304 = vmax.f32 %v2302, %v2303
  %v2305 = vrot.slane %v2304, 4
  %v2306 = vmax.f32 %v2304, %v2305
  %v2307 = vrot.slane %v2306, 2
  %v2308 = vmax.f32 %v2306, %v2307
  %v2309 = vrot.slane %v2308, 1
  %v2310 = vmax.f32 %v2308, %v2309
  %v2311 = vsel %vm110, %v2251, -inf
  %v2312 = vsel %vm2266, %v2252, -inf
  %v2313 = vmax.f32 %v2311, %v2312
  %v2314 = vrot.slane %v2313, 4
  %v2315 = vmax.f32 %v2313, %v2314
  %v2316 = vrot.slane %v2315, 2
  %v2317 = vmax.f32 %v2315, %v2316
  %v2318 = vrot.slane %v2317, 1
  %v2319 = vmax.f32 %v2317, %v2318
  %v2320 = vsel %vm110, %v2253, -inf
  %v2321 = vsel %vm2266, %v2254, -inf
  %v2322 = vmax.f32 %v2320, %v2321
  %v2323 = vrot.slane %v2322, 4
  %v2324 = vmax.f32 %v2322, %v2323
  %v2325 = vrot.slane %v2324, 2
  %v2326 = vmax.f32 %v2324, %v2325
  %v2327 = vrot.slane %v2326, 1
  %v2328 = vmax.f32 %v2326, %v2327
  %v2329 = vsel %vm110, %v2255, -inf
  %v2330 = vsel %vm2266, %v2256, -inf
  %v2331 = vmax.f32 %v2329, %v2330
  %v2332 = vrot.slane %v2331, 4
  %v2333 = vmax.f32 %v2331, %v2332
  %v2334 = vrot.slane %v2333, 2
  %v2335 = vmax.f32 %v2333, %v2334
  %v2336 = vrot.slane %v2335, 1
  %v2337 = vmax.f32 %v2335, %v2336
  %v2338 = vsel %vm110, %v2257, -inf
  %v2339 = vsel %vm2266, %v2258, -inf
  %v2340 = vmax.f32 %v2338, %v2339
  %v2341 = vrot.slane %v2340, 4
  %v2342 = vmax.f32 %v2340, %v2341
  %v2343 = vrot.slane %v2342, 2
  %v2344 = vmax.f32 %v2342, %v2343
  %v2345 = vrot.slane %v2344, 1
  %v2346 = vmax.f32 %v2344, %v2345
  %v2347 = vsel %vm110, %v2259, -inf
  %v2348 = vsel %vm2266, %v2260, -inf
  %v2349 = vmax.f32 %v2347, %v2348
  %v2350 = vrot.slane %v2349, 4
  %v2351 = vmax.f32 %v2349, %v2350
  %v2352 = vrot.slane %v2351, 2
  %v2353 = vmax.f32 %v2351, %v2352
  %v2354 = vrot.slane %v2353, 1
  %v2355 = vmax.f32 %v2353, %v2354
  %v2356 = vsel %vm110, %v2261, -inf
  %v2357 = vsel %vm2266, %v2262, -inf
  %v2358 = vmax.f32 %v2356, %v2357
  %v2359 = vrot.slane %v2358, 4
  %v2360 = vmax.f32 %v2358, %v2359
  %v2361 = vrot.slane %v2360, 2
  %v2362 = vmax.f32 %v2360, %v2361
  %v2363 = vrot.slane %v2362, 1
  %v2364 = vmax.f32 %v2362, %v2363
  %v2365 = vsel %vm110, %v2263, -inf
  %v2366 = vsel %vm2266, %v2264, -inf
  %v2367 = vmax.f32 %v2365, %v2366
  %v2368 = vrot.slane %v2367, 4
  %v2369 = vmax.f32 %v2367, %v2368
  %v2370 = vrot.slane %v2369, 2
  %v2371 = vmax.f32 %v2369, %v2370
  %v2372 = vrot.slane %v2371, 1
  %v2373 = vmax.f32 %v2371, %v2372
  %v2374 = vmax.f32 %v2274, -1e+30
  %v2375 = vmax.f32 %v2283, -1e+30
  %v2376 = vmax.f32 %v2292, -1e+30
  %v2377 = vmax.f32 %v2301, -1e+30
  %v2378 = vmax.f32 %v2310, -1e+30
  %v2379 = vmax.f32 %v2319, -1e+30
  %v2380 = vmax.f32 %v2328, -1e+30
  %v2381 = vmax.f32 %v2337, -1e+30
  %v2382 = vmax.f32 %v2346, -1e+30
  %v2383 = vmax.f32 %v2355, -1e+30
  %v2384 = vmax.f32 %v2364, -1e+30
  %v2385 = vmax.f32 %v2373, -1e+30
  %v2386 = vsub.f32 %v2241, %v2374
  %v2387 = vsub.f32 %v2242, %v2374
  %v2388 = vsub.f32 %v2243, %v2375
  %v2389 = vsub.f32 %v2244, %v2375
  %v2390 = vsub.f32 %v2245, %v2376
  %v2391 = vsub.f32 %v2246, %v2376
  %v2392 = vsub.f32 %v2247, %v2377
  %v2393 = vsub.f32 %v2248, %v2377
  %v2394 = vsub.f32 %v2249, %v2378
  %v2395 = vsub.f32 %v2250, %v2378
  %v2396 = vsub.f32 %v2251, %v2379
  %v2397 = vsub.f32 %v2252, %v2379
  %v2398 = vsub.f32 %v2253, %v2380
  %v2399 = vsub.f32 %v2254, %v2380
  %v2400 = vsub.f32 %v2255, %v2381
  %v2401 = vsub.f32 %v2256, %v2381
  %v2402 = vsub.f32 %v2257, %v2382
  %v2403 = vsub.f32 %v2258, %v2382
  %v2404 = vsub.f32 %v2259, %v2383
  %v2405 = vsub.f32 %v2260, %v2383
  %v2406 = vsub.f32 %v2261, %v2384
  %v2407 = vsub.f32 %v2262, %v2384
  %v2408 = vsub.f32 %v2263, %v2385
  %v2409 = vsub.f32 %v2264, %v2385
  %v2410 = vmul.f32 %v2386, 1.442695
  %v2411 = vpow.pop %v2410
  %v2412 = vmul.f32 %v2387, 1.442695
  %v2413 = vpow.pop %v2412
  %v2414 = vmul.f32 %v2388, 1.442695
  %v2415 = vpow.pop %v2414
  %v2416 = vmul.f32 %v2389, 1.442695
  %v2417 = vpow.pop %v2416
  %v2418 = vmul.f32 %v2390, 1.442695
  %v2419 = vpow.pop %v2418
  %v2420 = vmul.f32 %v2391, 1.442695
  %v2421 = vpow.pop %v2420
  %v2422 = vmul.f32 %v2392, 1.442695
  %v2423 = vpow.pop %v2422
  %v2424 = vmul.f32 %v2393, 1.442695
  %v2425 = vpow.pop %v2424
  %v2426 = vmul.f32 %v2394, 1.442695
  %v2427 = vpow.pop %v2426
  %v2428 = vmul.f32 %v2395, 1.442695
  %v2429 = vpow.pop %v2428
  %v2430 = vmul.f32 %v2396, 1.442695
  %v2431 = vpow.pop %v2430
  %v2432 = vmul.f32 %v2397, 1.442695
  %v2433 = vpow.pop %v2432
  %v2434 = vmul.f32 %v2398, 1.442695
  %v2435 = vpow.pop %v2434
  %v2436 = vmul.f32 %v2399, 1.442695
  %v2437 = vpow.pop %v2436
  %v2438 = vmul.f32 %v2400, 1.442695
  %v2439 = vpow.pop %v2438
  %v2440 = vmul.f32 %v2401, 1.442695
  %v2441 = vpow.pop %v2440
  %v2442 = vmul.f32 %v2402, 1.442695
  %v2443 = vpow.pop %v2442
  %v2444 = vmul.f32 %v2403, 1.442695
  %v2445 = vpow.pop %v2444
  %v2446 = vmul.f32 %v2404, 1.442695
  %v2447 = vpow.pop %v2446
  %v2448 = vmul.f32 %v2405, 1.442695
  %v2449 = vpow.pop %v2448
  %v2450 = vmul.f32 %v2406, 1.442695
  %v2451 = vpow.pop %v2450
  %v2452 = vmul.f32 %v2407, 1.442695
  %v2453 = vpow.pop %v2452
  %v2454 = vmul.f32 %v2408, 1.442695
  %v2455 = vpow.pop %v2454
  %v2456 = vmul.f32 %v2409, 1.442695
  %v2457 = vpow.pop %v2456
  %v2458 = vsel %vm110, %v2411, 0.0
  %v2459 = vsel %vm2266, %v2413, 0.0
  %v2460 = vadd.f32 %v2458, %v2459
  %v2461 = vrot.slane %v2460, 4
  %v2462 = vadd.f32 %v2460, %v2461
  %v2463 = vrot.slane %v2462, 2
  %v2464 = vadd.f32 %v2462, %v2463
  %v2465 = vrot.slane %v2464, 1
  %v2466 = vadd.f32 %v2464, %v2465
  %v2467 = vsel %vm110, %v2415, 0.0
  %v2468 = vsel %vm2266, %v2417, 0.0
  %v2469 = vadd.f32 %v2467, %v2468
  %v2470 = vrot.slane %v2469, 4
  %v2471 = vadd.f32 %v2469, %v2470
  %v2472 = vrot.slane %v2471, 2
  %v2473 = vadd.f32 %v2471, %v2472
  %v2474 = vrot.slane %v2473, 1
  %v2475 = vadd.f32 %v2473, %v2474
  %v2476 = vsel %vm110, %v2419, 0.0
  %v2477 = vsel %vm2266, %v2421, 0.0
  %v2478 = vadd.f32 %v2476, %v2477
  %v2479 = vrot.slane %v2478, 4
  %v2480 = vadd.f32 %v2478, %v2479
  %v2481 = vrot.slane %v2480, 2
  %v2482 = vadd.f32 %v2480, %v2481
  %v2483 = vrot.slane %v2482, 1
  %v2484 = vadd.f32 %v2482, %v2483
  %v2485 = vsel %vm110, %v2423, 0.0
  %v2486 = vsel %vm2266, %v2425, 0.0
  %v2487 = vadd.f32 %v2485, %v2486
  %v2488 = vrot.slane %v2487, 4
  %v2489 = vadd.f32 %v2487, %v2488
  %v2490 = vrot.slane %v2489, 2
  %v2491 = vadd.f32 %v2489, %v2490
  %v2492 = vrot.slane %v2491, 1
  %v2493 = vadd.f32 %v2491, %v2492
  %v2494 = vsel %vm110, %v2427, 0.0
  %v2495 = vsel %vm2266, %v2429, 0.0
  %v2496 = vadd.f32 %v2494, %v2495
  %v2497 = vrot.slane %v2496, 4
  %v2498 = vadd.f32 %v2496, %v2497
  %v2499 = vrot.slane %v2498, 2
  %v2500 = vadd.f32 %v2498, %v2499
  %v2501 = vrot.slane %v2500, 1
  %v2502 = vadd.f32 %v2500, %v2501
  %v2503 = vsel %vm110, %v2431, 0.0
  %v2504 = vsel %vm2266, %v2433, 0.0
  %v2505 = vadd.f32 %v2503, %v2504
  %v2506 = vrot.slane %v2505, 4
  %v2507 = vadd.f32 %v2505, %v2506
  %v2508 = vrot.slane %v2507, 2
  %v2509 = vadd.f32 %v2507, %v2508
  %v2510 = vrot.slane %v2509, 1
  %v2511 = vadd.f32 %v2509, %v2510
  %v2512 = vsel %vm110, %v2435, 0.0
  %v2513 = vsel %vm2266, %v2437, 0.0
  %v2514 = vadd.f32 %v2512, %v2513
  %v2515 = vrot.slane %v2514, 4
  %v2516 = vadd.f32 %v2514, %v2515
  %v2517 = vrot.slane %v2516, 2
  %v2518 = vadd.f32 %v2516, %v2517
  %v2519 = vrot.slane %v2518, 1
  %v2520 = vadd.f32 %v2518, %v2519
  %v2521 = vsel %vm110, %v2439, 0.0
  %v2522 = vsel %vm2266, %v2441, 0.0
  %v2523 = vadd.f32 %v2521, %v2522
  %v2524 = vrot.slane %v2523, 4
  %v2525 = vadd.f32 %v2523, %v2524
  %v2526 = vrot.slane %v2525, 2
  %v2527 = vadd.f32 %v2525, %v2526
  %v2528 = vrot.slane %v2527, 1
  %v2529 = vadd.f32 %v2527, %v2528
  %v2530 = vsel %vm110, %v2443, 0.0
  %v2531 = vsel %vm2266, %v2445, 0.0
  %v2532 = vadd.f32 %v2530, %v2531
  %v2533 = vrot.slane %v2532, 4
  %v2534 = vadd.f32 %v2532, %v2533
  %v2535 = vrot.slane %v2534, 2
  %v2536 = vadd.f32 %v2534, %v2535
  %v2537 = vrot.slane %v2536, 1
  %v2538 = vadd.f32 %v2536, %v2537
  %v2539 = vsel %vm110, %v2447, 0.0
  %v2540 = vsel %vm2266, %v2449, 0.0
  %v2541 = vadd.f32 %v2539, %v2540
  %v2542 = vrot.slane %v2541, 4
  %v2543 = vadd.f32 %v2541, %v2542
  %v2544 = vrot.slane %v2543, 2
  %v2545 = vadd.f32 %v2543, %v2544
  %v2546 = vrot.slane %v2545, 1
  %v2547 = vadd.f32 %v2545, %v2546
  %v2548 = vsel %vm110, %v2451, 0.0
  %v2549 = vsel %vm2266, %v2453, 0.0
  %v2550 = vadd.f32 %v2548, %v2549
  %v2551 = vrot.slane %v2550, 4
  %v2552 = vadd.f32 %v2550, %v2551
  %v2553 = vrot.slane %v2552, 2
  %v2554 = vadd.f32 %v2552, %v2553
  %v2555 = vrot.slane %v2554, 1
  %v2556 = vadd.f32 %v2554, %v2555
  %v2557 = vsel %vm110, %v2455, 0.0
  %v2558 = vsel %vm2266, %v2457, 0.0
  %v2559 = vadd.f32 %v2557, %v2558
  %v2560 = vrot.slane %v2559, 4
  %v2561 = vadd.f32 %v2559, %v2560
  %v2562 = vrot.slane %v2561, 2
  %v2563 = vadd.f32 %v2561, %v2562
  %v2564 = vrot.slane %v2563, 1
  %v2565 = vadd.f32 %v2563, %v2564
  %v2566 = vmax.f32 %v2466, 1e-30
  %v2567 = vmax.f32 %v2475, 1e-30
  %v2568 = vmax.f32 %v2484, 1e-30
  %v2569 = vmax.f32 %v2493, 1e-30
  %v2570 = vmax.f32 %v2502, 1e-30
  %v2571 = vmax.f32 %v2511, 1e-30
  %v2572 = vmax.f32 %v2520, 1e-30
  %v2573 = vmax.f32 %v2529, 1e-30
  %v2574 = vmax.f32 %v2538, 1e-30
  %v2575 = vmax.f32 %v2547, 1e-30
  %v2576 = vmax.f32 %v2556, 1e-30
  %v2577 = vmax.f32 %v2565, 1e-30
  %2580 = vrot.lane.b32.xlu0 %v1942, 120
  %v2581 = vpop.permute.xlu0 %2580
  %2582 = vrot.lane.b32.xlu0 %v1947, 120
  %v2583 = vpop.permute.xlu0 %2582
  %v2586 = vmul.f32 %v2411, %v2581
  %v2587 = vmul.f32 %v2413, %v2583
  %v2588 = vmul.f32 %v2415, %v2581
  %v2589 = vmul.f32 %v2417, %v2583
  %v2590 = vmul.f32 %v2419, %v2581
  %v2591 = vmul.f32 %v2421, %v2583
  %v2592 = vmul.f32 %v2423, %v2581
  %v2593 = vmul.f32 %v2425, %v2583
  %v2594 = vmul.f32 %v2427, %v2581
  %v2595 = vmul.f32 %v2429, %v2583
  %v2596 = vmul.f32 %v2431, %v2581
  %v2597 = vmul.f32 %v2433, %v2583
  %v2598 = vmul.f32 %v2435, %v2581
  %v2599 = vmul.f32 %v2437, %v2583
  %v2600 = vmul.f32 %v2439, %v2581
  %v2601 = vmul.f32 %v2441, %v2583
  %v2602 = vmul.f32 %v2443, %v2581
  %v2603 = vmul.f32 %v2445, %v2583
  %v2604 = vmul.f32 %v2447, %v2581
  %v2605 = vmul.f32 %v2449, %v2583
  %v2606 = vmul.f32 %v2451, %v2581
  %v2607 = vmul.f32 %v2453, %v2583
  %v2608 = vmul.f32 %v2455, %v2581
  %v2609 = vmul.f32 %v2457, %v2583
  %v2610 = vsel %vm110, %v2586, 0.0
  %v2611 = vsel %vm2266, %v2587, 0.0
  %v2612 = vadd.f32 %v2610, %v2611
  %v2613 = vrot.slane %v2612, 4
  %v2614 = vadd.f32 %v2612, %v2613
  %v2615 = vrot.slane %v2614, 2
  %v2616 = vadd.f32 %v2614, %v2615
  %v2617 = vrot.slane %v2616, 1
  %v2618 = vadd.f32 %v2616, %v2617
  %v2619 = vsel %vm110, %v2588, 0.0
  %v2620 = vsel %vm2266, %v2589, 0.0
  %v2621 = vadd.f32 %v2619, %v2620
  %v2622 = vrot.slane %v2621, 4
  %v2623 = vadd.f32 %v2621, %v2622
  %v2624 = vrot.slane %v2623, 2
  %v2625 = vadd.f32 %v2623, %v2624
  %v2626 = vrot.slane %v2625, 1
  %v2627 = vadd.f32 %v2625, %v2626
  %v2628 = vsel %vm110, %v2590, 0.0
  %v2629 = vsel %vm2266, %v2591, 0.0
  %v2630 = vadd.f32 %v2628, %v2629
  %v2631 = vrot.slane %v2630, 4
  %v2632 = vadd.f32 %v2630, %v2631
  %v2633 = vrot.slane %v2632, 2
  %v2634 = vadd.f32 %v2632, %v2633
  %v2635 = vrot.slane %v2634, 1
  %v2636 = vadd.f32 %v2634, %v2635
  %v2637 = vsel %vm110, %v2592, 0.0
  %v2638 = vsel %vm2266, %v2593, 0.0
  %v2639 = vadd.f32 %v2637, %v2638
  %v2640 = vrot.slane %v2639, 4
  %v2641 = vadd.f32 %v2639, %v2640
  %v2642 = vrot.slane %v2641, 2
  %v2643 = vadd.f32 %v2641, %v2642
  %v2644 = vrot.slane %v2643, 1
  %v2645 = vadd.f32 %v2643, %v2644
  %v2646 = vsel %vm110, %v2594, 0.0
  %v2647 = vsel %vm2266, %v2595, 0.0
  %v2648 = vadd.f32 %v2646, %v2647
  %v2649 = vrot.slane %v2648, 4
  %v2650 = vadd.f32 %v2648, %v2649
  %v2651 = vrot.slane %v2650, 2
  %v2652 = vadd.f32 %v2650, %v2651
  %v2653 = vrot.slane %v2652, 1
  %v2654 = vadd.f32 %v2652, %v2653
  %v2655 = vsel %vm110, %v2596, 0.0
  %v2656 = vsel %vm2266, %v2597, 0.0
  %v2657 = vadd.f32 %v2655, %v2656
  %v2658 = vrot.slane %v2657, 4
  %v2659 = vadd.f32 %v2657, %v2658
  %v2660 = vrot.slane %v2659, 2
  %v2661 = vadd.f32 %v2659, %v2660
  %v2662 = vrot.slane %v2661, 1
  %v2663 = vadd.f32 %v2661, %v2662
  %v2664 = vsel %vm110, %v2598, 0.0
  %v2665 = vsel %vm2266, %v2599, 0.0
  %v2666 = vadd.f32 %v2664, %v2665
  %v2667 = vrot.slane %v2666, 4
  %v2668 = vadd.f32 %v2666, %v2667
  %v2669 = vrot.slane %v2668, 2
  %v2670 = vadd.f32 %v2668, %v2669
  %v2671 = vrot.slane %v2670, 1
  %v2672 = vadd.f32 %v2670, %v2671
  %v2673 = vsel %vm110, %v2600, 0.0
  %v2674 = vsel %vm2266, %v2601, 0.0
  %v2675 = vadd.f32 %v2673, %v2674
  %v2676 = vrot.slane %v2675, 4
  %v2677 = vadd.f32 %v2675, %v2676
  %v2678 = vrot.slane %v2677, 2
  %v2679 = vadd.f32 %v2677, %v2678
  %v2680 = vrot.slane %v2679, 1
  %v2681 = vadd.f32 %v2679, %v2680
  %v2682 = vsel %vm110, %v2602, 0.0
  %v2683 = vsel %vm2266, %v2603, 0.0
  %v2684 = vadd.f32 %v2682, %v2683
  %v2685 = vrot.slane %v2684, 4
  %v2686 = vadd.f32 %v2684, %v2685
  %v2687 = vrot.slane %v2686, 2
  %v2688 = vadd.f32 %v2686, %v2687
  %v2689 = vrot.slane %v2688, 1
  %v2690 = vadd.f32 %v2688, %v2689
  %v2691 = vsel %vm110, %v2604, 0.0
  %v2692 = vsel %vm2266, %v2605, 0.0
  %v2693 = vadd.f32 %v2691, %v2692
  %v2694 = vrot.slane %v2693, 4
  %v2695 = vadd.f32 %v2693, %v2694
  %v2696 = vrot.slane %v2695, 2
  %v2697 = vadd.f32 %v2695, %v2696
  %v2698 = vrot.slane %v2697, 1
  %v2699 = vadd.f32 %v2697, %v2698
  %v2700 = vsel %vm110, %v2606, 0.0
  %v2701 = vsel %vm2266, %v2607, 0.0
  %v2702 = vadd.f32 %v2700, %v2701
  %v2703 = vrot.slane %v2702, 4
  %v2704 = vadd.f32 %v2702, %v2703
  %v2705 = vrot.slane %v2704, 2
  %v2706 = vadd.f32 %v2704, %v2705
  %v2707 = vrot.slane %v2706, 1
  %v2708 = vadd.f32 %v2706, %v2707
  %v2709 = vsel %vm110, %v2608, 0.0
  %v2710 = vsel %vm2266, %v2609, 0.0
  %v2711 = vadd.f32 %v2709, %v2710
  %v2712 = vrot.slane %v2711, 4
  %v2713 = vadd.f32 %v2711, %v2712
  %v2714 = vrot.slane %v2713, 2
  %v2715 = vadd.f32 %v2713, %v2714
  %v2716 = vrot.slane %v2715, 1
  %v2717 = vadd.f32 %v2715, %v2716
  %v2718 = vrcp.pop %v2566
  %v2719 = vrcp.pop %v2567
  %v2720 = vrcp.pop %v2568
  %v2721 = vrcp.pop %v2569
  %v2722 = vrcp.pop %v2570
  %v2723 = vrcp.pop %v2571
  %v2724 = vrcp.pop %v2572
  %v2725 = vrcp.pop %v2573
  %v2726 = vrcp.pop %v2574
  %v2727 = vrcp.pop %v2575
  %v2728 = vrcp.pop %v2576
  %v2729 = vrcp.pop %v2577
  %v2730 = vmul.f32 %v2618, %v2718
  %v2731 = vmul.f32 %v2627, %v2719
  %v2732 = vmul.f32 %v2636, %v2720
  %v2733 = vmul.f32 %v2645, %v2721
  %v2734 = vmul.f32 %v2654, %v2722
  %v2735 = vmul.f32 %v2663, %v2723
  %v2736 = vmul.f32 %v2672, %v2724
  %v2737 = vmul.f32 %v2681, %v2725
  %v2738 = vmul.f32 %v2690, %v2726
  %v2739 = vmul.f32 %v2699, %v2727
  %v2740 = vmul.f32 %v2708, %v2728
  %v2741 = vmul.f32 %v2717, %v2729
  %s2742 = scalar_lea.vmem %s11, 8
  %v2743 = vld [vmem:[%s2742] sm:$0xff]
  %s2744 = scalar_lea.vmem %s12, 1
  %v2745 = vld [vmem:[%s2744] sm:$0x1]
  %v2747 = vlaneseq
  %v2748 = vshrl.u32 %v2747, 7
  %v2749 = vsub.s32 0, %v2748
  %v2750 = vrot.slane %v2745, %v2749
  %v2764 = vsel %vm1351, %v2731, %v2730
  %v2765 = vsel %vm1353, %v2732, %v2764
  %v2766 = vsel %vm1355, %v2733, %v2765
  %v2767 = vsel %vm1357, %v2734, %v2766
  %v2768 = vsel %vm1359, %v2735, %v2767
  %v2769 = vsel %vm1361, %v2736, %v2768
  %v2770 = vsel %vm1363, %v2737, %v2769
  %v2771 = vsel %vm1351, %v2739, %v2738
  %v2772 = vsel %vm1353, %v2740, %v2771
  %v2773 = vsel %vm1355, %v2741, %v2772
  %v2774 = vsel %vm110, %v2770, 0
  %v2776 = vsel %vm110, %v2773, 0
  %2778 = vmatprep.subr.mxu0 0.0
  %2779 = vmatpush1.msra.mxu0 0.0
  %2780 = vmatprep.subr.mxu0 0.0
  %2781 = vmatpush1.msra.mxu0 0.0
  %2782 = vmatprep.subr.mxu0 0.0
  %2783 = vmatpush1.msra.mxu0 0.0
  %2784 = vmatprep.subr.mxu0 0.0
  %2785 = vmatpush1.msra.mxu0 0.0
  %2786 = vmatprep.subr.mxu0 0.0
  %2787 = vmatpush1.msra.mxu0 0.0
  %2788 = vmatprep.subr.mxu0 0.0
  %2789 = vmatpush1.msra.mxu0 0.0
  %2790 = vmatprep.subr.mxu0 0.0
  %2791 = vmatpush1.msra.mxu0 0.0
  %2792 = vmatprep.subr.mxu0 0.0
  %2793 = vmatpush1.msra.mxu0 0.0
  %2794 = vmatprep.subr.mxu0 0.0
  %2795 = vmatpush1.msra.mxu0 0.0
  %2796 = vmatprep.subr.mxu0 0.0
  %2797 = vmatpush1.msra.mxu0 0.0
  %2798 = vmatprep.subr.mxu0 0.0
  %2799 = vmatpush1.msra.mxu0 0.0
  %2800 = vmatprep.subr.mxu0 0.0
  %2801 = vmatpush1.msra.mxu0 0.0
  %2802 = vmatprep.subr.mxu0 0.0
  %2803 = vmatpush1.msra.mxu0 0.0
  %2804 = vmatprep.subr.mxu0 0.0
  %2805 = vmatpush1.msra.mxu0 0.0
  %2806 = vmatprep.subr.mxu0 0.0
  %2807 = vmatpush1.msra.mxu0 0.0
  %2808 = vmatprep.subr.mxu0 0.0
  %2809 = vmatpush1.msra.mxu0 %v2743
  %2810 = vmatprep.subr.mxu0 0.0
  %2811 = vmatpush2.msra.mxu0 0.0
  %2812 = vmatprep.subr.mxu0 0.0
  %2813 = vmatpush2.msra.mxu0 0.0
  %2814 = vmatprep.subr.mxu0 0.0
  %2815 = vmatpush2.msra.mxu0 0.0
  %2816 = vmatprep.subr.mxu0 0.0
  %2817 = vmatpush2.msra.mxu0 0.0
  %2818 = vmatprep.subr.mxu0 0.0
  %2819 = vmatpush2.msra.mxu0 0.0
  %2820 = vmatprep.subr.mxu0 0.0
  %2821 = vmatpush2.msra.mxu0 0.0
  %2822 = vmatprep.subr.mxu0 0.0
  %2823 = vmatpush2.msra.mxu0 0.0
  %2824 = vmatprep.subr.mxu0 0.0
  %2825 = vmatpush2.msra.mxu0 0.0
  %2826 = vmatprep.subr.mxu0 0.0
  %2827 = vmatpush2.msra.mxu0 0.0
  %2828 = vmatprep.subr.mxu0 0.0
  %2829 = vmatpush2.msra.mxu0 0.0
  %2830 = vmatprep.subr.mxu0 0.0
  %2831 = vmatpush2.msra.mxu0 0.0
  %2832 = vmatprep.subr.mxu0 0.0
  %2833 = vmatpush2.msra.mxu0 0.0
  %2834 = vmatprep.subr.mxu0 0.0
  %2835 = vmatpush2.msra.mxu0 0.0
  %2836 = vmatprep.subr.mxu0 0.0
  %2837 = vmatpush2.msra.mxu0 0.0
  %2838 = vmatprep.subr.mxu0 0.0
  %2839 = vmatpush2.msra.mxu0 0.0
  %2840 = vmatprep.subr.mxu0 0.0
  %2841 = vmatpush2.msra.mxu0 0.0
  %2842 = vmatprep.mubr.f32.mxu0 0.0
  %2843 = vmatmul.mubr.f32.gmra.mxu0 %v2774
  %v2844 = vpop.f32.mrf.mxu0
  %v2845 = vadd.f32 %v2750, %v2844
  %v2846 = vpop.f32.mrf.mxu0
  %2847 = vmatprep.mubr.f32.mxu0 0.0
  %2848 = vmatmul.mubr.f32.gmra.mxu0 %v2776
  %v2849 = vpop.f32.mrf.mxu0
  %v2850 = vadd.f32 %v2750, %v2849
  %v2851 = vpop.f32.mrf.mxu0
  %2852 = vdwg.mxu0
  %v2853 = vadd.f32 %v98, %v2845
  %v2854 = vadd.f32 %v99, %v2850
  %s2855 = scalar_lea.vmem %s17, 3
  %v2856 = vld [vmem:[%s2855] sm:$0x1]
  %s2857 = scalar_lea.vmem %s18, 3
  %v2858 = vld [vmem:[%s2857] sm:$0x1]
  %v2859 = vsel %vm110, %v2853, 0.0
  %2860 = vadd.xlane.f32.xlu0 %v2859
  %v2861 = vpop.xlane.xlu0 %2860
  %v2862 = vsel %vm2266, %v2854, 0.0
  %2863 = vadd.xlane.f32.xlu0 %v2862
  %v2864 = vpop.xlane.xlu0 %2863
  %v2865 = vmul.f32 %v2861, %v1461
  %v2866 = vmul.f32 %v2864, %v1461
  %v2867 = vsub.f32 %v2853, %v2865
  %v2868 = vsub.f32 %v2854, %v2866
  %v2869 = vmul.f32 %v2867, %v2867
  %v2870 = vmul.f32 %v2868, %v2868
  %v2871 = vsel %vm110, %v2869, 0.0
  %2872 = vadd.xlane.f32.xlu0 %v2871
  %v2873 = vpop.xlane.xlu0 %2872
  %v2874 = vsel %vm2266, %v2870, 0.0
  %2875 = vadd.xlane.f32.xlu0 %v2874
  %v2876 = vpop.xlane.xlu0 %2875
  %v2877 = vmul.f32 %v2873, %v1461
  %v2878 = vmul.f32 %v2876, %v1461
  %v2879 = vadd.f32 %v2877, 1e-05
  %v2880 = vadd.f32 %v2878, 1e-05
  %v2881 = vrsqrt.pop %v2879
  %v2882 = vrsqrt.pop %v2880
  %v2883 = vmul.f32 %v2867, %v2881
  %v2884 = vmul.f32 %v2868, %v2882
  %v2886 = vlaneseq
  %v2887 = vshrl.u32 %v2886, 7
  %v2888 = vsub.s32 0, %v2887
  %v2889 = vrot.slane %v2856, %v2888
  %v2891 = vmul.f32 %v2883, %v2889
  %v2892 = vmul.f32 %v2884, %v2889
  %v2894 = vlaneseq
  %v2895 = vshrl.u32 %v2894, 7
  %v2896 = vsub.s32 0, %v2895
  %v2897 = vrot.slane %v2858, %v2896
  %v2899 = vadd.f32 %v2891, %v2897
  %v2900 = vadd.f32 %v2892, %v2897
  %v2901 = vld [vmem:[%s4] sm:$0xff]
  %v2902 = vld [vmem:[%s4 + $0x8] sm:$0xf]
  %s2903 = scalar_lea.vmem %s7, 16
  %v2904 = vld [vmem:[%s2903] sm:$0xff]
  %s2905 = scalar_lea.vmem %s8, 2
  %v2906 = vld [vmem:[%s2905] sm:$0x1]
  %v2908 = vlaneseq
  %v2909 = vshrl.u32 %v2908, 7
  %v2910 = vsub.s32 0, %v2909
  %v2911 = vrot.slane %v2906, %v2910
  %v2914 = vsel %vm110, %v2899, 0
  %v2917 = vsel %vm110, %v2900, 0
  %2919 = vmatprep.subr.mxu0 0.0
  %2920 = vmatpush1.msra.mxu0 0.0
  %2921 = vmatprep.subr.mxu0 0.0
  %2922 = vmatpush1.msra.mxu0 0.0
  %2923 = vmatprep.subr.mxu0 0.0
  %2924 = vmatpush1.msra.mxu0 0.0
  %2925 = vmatprep.subr.mxu0 0.0
  %2926 = vmatpush1.msra.mxu0 0.0
  %2927 = vmatprep.subr.mxu0 0.0
  %2928 = vmatpush1.msra.mxu0 0.0
  %2929 = vmatprep.subr.mxu0 0.0
  %2930 = vmatpush1.msra.mxu0 0.0
  %2931 = vmatprep.subr.mxu0 0.0
  %2932 = vmatpush1.msra.mxu0 0.0
  %2933 = vmatprep.subr.mxu0 0.0
  %2934 = vmatpush1.msra.mxu0 0.0
  %2935 = vmatprep.subr.mxu0 0.0
  %2936 = vmatpush1.msra.mxu0 0.0
  %2937 = vmatprep.subr.mxu0 0.0
  %2938 = vmatpush1.msra.mxu0 0.0
  %2939 = vmatprep.subr.mxu0 0.0
  %2940 = vmatpush1.msra.mxu0 0.0
  %2941 = vmatprep.subr.mxu0 0.0
  %2942 = vmatpush1.msra.mxu0 0.0
  %2943 = vmatprep.subr.mxu0 0.0
  %2944 = vmatpush1.msra.mxu0 0.0
  %2945 = vmatprep.subr.mxu0 0.0
  %2946 = vmatpush1.msra.mxu0 0.0
  %2947 = vmatprep.subr.mxu0 0.0
  %2948 = vmatpush1.msra.mxu0 0.0
  %2949 = vmatprep.subr.mxu0 0.0
  %2950 = vmatpush1.msra.mxu0 %v2904
  %2951 = vmatprep.subr.mxu0 0.0
  %2952 = vmatpush2.msra.mxu0 0.0
  %2953 = vmatprep.subr.mxu0 0.0
  %2954 = vmatpush2.msra.mxu0 0.0
  %2955 = vmatprep.subr.mxu0 0.0
  %2956 = vmatpush2.msra.mxu0 0.0
  %2957 = vmatprep.subr.mxu0 0.0
  %2958 = vmatpush2.msra.mxu0 0.0
  %2959 = vmatprep.subr.mxu0 0.0
  %2960 = vmatpush2.msra.mxu0 0.0
  %2961 = vmatprep.subr.mxu0 0.0
  %2962 = vmatpush2.msra.mxu0 0.0
  %2963 = vmatprep.subr.mxu0 0.0
  %2964 = vmatpush2.msra.mxu0 0.0
  %2965 = vmatprep.subr.mxu0 0.0
  %2966 = vmatpush2.msra.mxu0 0.0
  %2967 = vmatprep.subr.mxu0 0.0
  %2968 = vmatpush2.msra.mxu0 0.0
  %2969 = vmatprep.subr.mxu0 0.0
  %2970 = vmatpush2.msra.mxu0 0.0
  %2971 = vmatprep.subr.mxu0 0.0
  %2972 = vmatpush2.msra.mxu0 0.0
  %2973 = vmatprep.subr.mxu0 0.0
  %2974 = vmatpush2.msra.mxu0 0.0
  %2975 = vmatprep.subr.mxu0 0.0
  %2976 = vmatpush2.msra.mxu0 0.0
  %2977 = vmatprep.subr.mxu0 0.0
  %2978 = vmatpush2.msra.mxu0 0.0
  %2979 = vmatprep.subr.mxu0 0.0
  %2980 = vmatpush2.msra.mxu0 0.0
  %2981 = vmatprep.subr.mxu0 0.0
  %2982 = vmatpush2.msra.mxu0 0.0
  %2983 = vmatprep.mubr.f32.mxu0 0.0
  %2984 = vmatmul.mubr.f32.gmra.mxu0 %v2914
  %v2985 = vpop.f32.mrf.mxu0
  %v2986 = vadd.f32 %v2911, %v2985
  %v2987 = vpop.f32.mrf.mxu0
  %2988 = vmatprep.mubr.f32.mxu0 0.0
  %2989 = vmatmul.mubr.f32.gmra.mxu0 %v2917
  %v2990 = vpop.f32.mrf.mxu0
  %v2991 = vadd.f32 %v2911, %v2990
  %v2992 = vpop.f32.mrf.mxu0
  %2993 = vdwg.mxu0
  %s2994 = scalar_lea.vmem %s9, 16
  %v2995 = vld [vmem:[%s2994] sm:$0xff]
  %s2996 = scalar_lea.vmem %s10, 2
  %v2997 = vld [vmem:[%s2996] sm:$0x1]
  %v2999 = vlaneseq
  %v3000 = vshrl.u32 %v2999, 7
  %v3001 = vsub.s32 0, %v3000
  %v3002 = vrot.slane %v2997, %v3001
  %v3005 = vsel %vm110, %v1770, 0
  %v3008 = vsel %vm110, %v1771, 0
  %3010 = vmatprep.subr.mxu0 0.0
  %3011 = vmatpush1.msra.mxu0 0.0
  %3012 = vmatprep.subr.mxu0 0.0
  %3013 = vmatpush1.msra.mxu0 0.0
  %3014 = vmatprep.subr.mxu0 0.0
  %3015 = vmatpush1.msra.mxu0 0.0
  %3016 = vmatprep.subr.mxu0 0.0
  %3017 = vmatpush1.msra.mxu0 0.0
  %3018 = vmatprep.subr.mxu0 0.0
  %3019 = vmatpush1.msra.mxu0 0.0
  %3020 = vmatprep.subr.mxu0 0.0
  %3021 = vmatpush1.msra.mxu0 0.0
  %3022 = vmatprep.subr.mxu0 0.0
  %3023 = vmatpush1.msra.mxu0 0.0
  %3024 = vmatprep.subr.mxu0 0.0
  %3025 = vmatpush1.msra.mxu0 0.0
  %3026 = vmatprep.subr.mxu0 0.0
  %3027 = vmatpush1.msra.mxu0 0.0
  %3028 = vmatprep.subr.mxu0 0.0
  %3029 = vmatpush1.msra.mxu0 0.0
  %3030 = vmatprep.subr.mxu0 0.0
  %3031 = vmatpush1.msra.mxu0 0.0
  %3032 = vmatprep.subr.mxu0 0.0
  %3033 = vmatpush1.msra.mxu0 0.0
  %3034 = vmatprep.subr.mxu0 0.0
  %3035 = vmatpush1.msra.mxu0 0.0
  %3036 = vmatprep.subr.mxu0 0.0
  %3037 = vmatpush1.msra.mxu0 0.0
  %3038 = vmatprep.subr.mxu0 0.0
  %3039 = vmatpush1.msra.mxu0 0.0
  %3040 = vmatprep.subr.mxu0 0.0
  %3041 = vmatpush1.msra.mxu0 %v2995
  %3042 = vmatprep.subr.mxu0 0.0
  %3043 = vmatpush2.msra.mxu0 0.0
  %3044 = vmatprep.subr.mxu0 0.0
  %3045 = vmatpush2.msra.mxu0 0.0
  %3046 = vmatprep.subr.mxu0 0.0
  %3047 = vmatpush2.msra.mxu0 0.0
  %3048 = vmatprep.subr.mxu0 0.0
  %3049 = vmatpush2.msra.mxu0 0.0
  %3050 = vmatprep.subr.mxu0 0.0
  %3051 = vmatpush2.msra.mxu0 0.0
  %3052 = vmatprep.subr.mxu0 0.0
  %3053 = vmatpush2.msra.mxu0 0.0
  %3054 = vmatprep.subr.mxu0 0.0
  %3055 = vmatpush2.msra.mxu0 0.0
  %3056 = vmatprep.subr.mxu0 0.0
  %3057 = vmatpush2.msra.mxu0 0.0
  %3058 = vmatprep.subr.mxu0 0.0
  %3059 = vmatpush2.msra.mxu0 0.0
  %3060 = vmatprep.subr.mxu0 0.0
  %3061 = vmatpush2.msra.mxu0 0.0
  %3062 = vmatprep.subr.mxu0 0.0
  %3063 = vmatpush2.msra.mxu0 0.0
  %3064 = vmatprep.subr.mxu0 0.0
  %3065 = vmatpush2.msra.mxu0 0.0
  %3066 = vmatprep.subr.mxu0 0.0
  %3067 = vmatpush2.msra.mxu0 0.0
  %3068 = vmatprep.subr.mxu0 0.0
  %3069 = vmatpush2.msra.mxu0 0.0
  %3070 = vmatprep.subr.mxu0 0.0
  %3071 = vmatpush2.msra.mxu0 0.0
  %3072 = vmatprep.subr.mxu0 0.0
  %3073 = vmatpush2.msra.mxu0 0.0
  %3074 = vmatprep.mubr.f32.mxu0 0.0
  %3075 = vmatmul.mubr.f32.gmra.mxu0 %v3005
  %v3076 = vpop.f32.mrf.mxu0
  %v3077 = vadd.f32 %v3002, %v3076
  %v3078 = vpop.f32.mrf.mxu0
  %3079 = vmatprep.mubr.f32.mxu0 0.0
  %3080 = vmatmul.mubr.f32.gmra.mxu0 %v3008
  %v3081 = vpop.f32.mrf.mxu0
  %v3082 = vadd.f32 %v3002, %v3081
  %v3083 = vpop.f32.mrf.mxu0
  %3084 = vdwg.mxu0
  %v3087 = vcombine.high %v2986, %v2986
  %v3089 = vunpack.c.l.s4 1966171168
  %v3090 = vunpack.c.0.s8 %v3089
  %v3091 = vlaneseq
  %v3092 = vshrl.u32 %v3091, 7
  %v3093 = vsub.s32 %v3090, %v3092
  %v3094 = vrot.slane %v2986, %v3093
  %v3096 = vunpack.c.l.s4 1966171168
  %v3097 = vunpack.c.0.s8 %v3096
  %v3098 = vlaneseq
  %v3099 = vshrl.u32 %v3098, 7
  %v3100 = vsub.s32 %v3097, %v3099
  %v3101 = vrot.slane %v3087, %v3100
  %v3102 = vcombine.high %v3094, %v3094
  %v3103 = vcombine.high %v3101, %v3101
  %v3105 = vunpack.c.l.s4 1966171168
  %v3106 = vunpack.c.0.s8 %v3105
  %v3107 = vlaneseq
  %v3108 = vshrl.u32 %v3107, 7
  %v3109 = vsub.s32 %v3106, %v3108
  %v3110 = vrot.slane %v3094, %v3109
  %v3112 = vunpack.c.l.s4 1966171168
  %v3113 = vunpack.c.0.s8 %v3112
  %v3114 = vlaneseq
  %v3115 = vshrl.u32 %v3114, 7
  %v3116 = vsub.s32 %v3113, %v3115
  %v3117 = vrot.slane %v3101, %v3116
  %v3119 = vunpack.c.l.s4 1966171168
  %v3120 = vunpack.c.0.s8 %v3119
  %v3121 = vlaneseq
  %v3122 = vshrl.u32 %v3121, 7
  %v3123 = vsub.s32 %v3120, %v3122
  %v3124 = vrot.slane %v3102, %v3123
  %v3126 = vunpack.c.l.s4 1966171168
  %v3127 = vunpack.c.0.s8 %v3126
  %v3128 = vlaneseq
  %v3129 = vshrl.u32 %v3128, 7
  %v3130 = vsub.s32 %v3127, %v3129
  %v3131 = vrot.slane %v3103, %v3130
  %v3132 = vcombine.high %v3110, %v3110
  %v3133 = vcombine.high %v3117, %v3117
  %v3134 = vcombine.high %v3124, %v3124
  %v3135 = vcombine.high %v3131, %v3131
  %v3137 = vunpack.c.l.s4 1966171168
  %v3138 = vunpack.c.0.s8 %v3137
  %v3139 = vlaneseq
  %v3140 = vshrl.u32 %v3139, 7
  %v3141 = vsub.s32 %v3138, %v3140
  %v3142 = vrot.slane %v2991, %v3141
  %v3143 = vcombine.high %v3142, %v3142
  %v3145 = vunpack.c.l.s4 1966171168
  %v3146 = vunpack.c.0.s8 %v3145
  %v3147 = vlaneseq
  %v3148 = vshrl.u32 %v3147, 7
  %v3149 = vsub.s32 %v3146, %v3148
  %v3150 = vrot.slane %v3142, %v3149
  %v3152 = vunpack.c.l.s4 1966171168
  %v3153 = vunpack.c.0.s8 %v3152
  %v3154 = vlaneseq
  %v3155 = vshrl.u32 %v3154, 7
  %v3156 = vsub.s32 %v3153, %v3155
  %v3157 = vrot.slane %v3143, %v3156
  %v3158 = vcombine.high %v3150, %v3150
  %v3159 = vcombine.high %v3157, %v3157
  %v3160 = vlaneseq
  %v3161 = vshrl.u32 %v3160, 7
  %v3162 = vsub.s32 0, %v3161
  %v3163 = vrot.slane %v3110, %v3162
  %v3164 = vlaneseq
  %v3165 = vshrl.u32 %v3164, 7
  %v3166 = vsub.s32 0, %v3165
  %v3167 = vrot.slane %v3124, %v3166
  %v3168 = vlaneseq
  %v3169 = vshrl.u32 %v3168, 7
  %v3170 = vsub.s32 0, %v3169
  %v3171 = vrot.slane %v3132, %v3170
  %v3172 = vlaneseq
  %v3173 = vshrl.u32 %v3172, 7
  %v3174 = vsub.s32 0, %v3173
  %v3175 = vrot.slane %v3134, %v3174
  %v3176 = vlaneseq
  %v3177 = vshrl.u32 %v3176, 7
  %v3178 = vsub.s32 0, %v3177
  %v3179 = vrot.slane %v3117, %v3178
  %v3180 = vlaneseq
  %v3181 = vshrl.u32 %v3180, 7
  %v3182 = vsub.s32 0, %v3181
  %v3183 = vrot.slane %v3131, %v3182
  %v3184 = vlaneseq
  %v3185 = vshrl.u32 %v3184, 7
  %v3186 = vsub.s32 0, %v3185
  %v3187 = vrot.slane %v3133, %v3186
  %v3188 = vlaneseq
  %v3189 = vshrl.u32 %v3188, 7
  %v3190 = vsub.s32 0, %v3189
  %v3191 = vrot.slane %v3135, %v3190
  %v3192 = vlaneseq
  %v3193 = vshrl.u32 %v3192, 7
  %v3194 = vsub.s32 0, %v3193
  %v3195 = vrot.slane %v3150, %v3194
  %v3196 = vlaneseq
  %v3197 = vshrl.u32 %v3196, 7
  %v3198 = vsub.s32 0, %v3197
  %v3199 = vrot.slane %v3157, %v3198
  %v3200 = vlaneseq
  %v3201 = vshrl.u32 %v3200, 7
  %v3202 = vsub.s32 0, %v3201
  %v3203 = vrot.slane %v3158, %v3202
  %v3204 = vlaneseq
  %v3205 = vshrl.u32 %v3204, 7
  %v3206 = vsub.s32 0, %v3205
  %v3207 = vrot.slane %v3159, %v3206
  %v3220 = vmul.f32 %v3163, %v3077
  %v3221 = vmul.f32 %v3163, %v3082
  %v3222 = vmul.f32 %v3167, %v3077
  %v3223 = vmul.f32 %v3167, %v3082
  %v3224 = vmul.f32 %v3171, %v3077
  %v3225 = vmul.f32 %v3171, %v3082
  %v3226 = vmul.f32 %v3175, %v3077
  %v3227 = vmul.f32 %v3175, %v3082
  %v3228 = vmul.f32 %v3179, %v3077
  %v3229 = vmul.f32 %v3179, %v3082
  %v3230 = vmul.f32 %v3183, %v3077
  %v3231 = vmul.f32 %v3183, %v3082
  %v3232 = vmul.f32 %v3187, %v3077
  %v3233 = vmul.f32 %v3187, %v3082
  %v3234 = vmul.f32 %v3191, %v3077
  %v3235 = vmul.f32 %v3191, %v3082
  %v3236 = vmul.f32 %v3195, %v3077
  %v3237 = vmul.f32 %v3195, %v3082
  %v3238 = vmul.f32 %v3199, %v3077
  %v3239 = vmul.f32 %v3199, %v3082
  %v3240 = vmul.f32 %v3203, %v3077
  %v3241 = vmul.f32 %v3203, %v3082
  %v3242 = vmul.f32 %v3207, %v3077
  %v3243 = vmul.f32 %v3207, %v3082
  %v3244 = vlaneseq
  %v3245 = vshrl.u32 %v3244, 7
  %v3246 = vsub.s32 0, %v3245
  %v3247 = vrot.slane %v2901, %v3246
  %3249 = vbcast.lane.b32.xlu0 %v3247, 256
  %v3250 = vpop.permute.xlu0 %3249
  %s3252 = sor.u32 256, 8
  %3253 = vbcast.lane.b32.xlu0 %v3247, %s3252
  %v3254 = vpop.permute.xlu0 %3253
  %v3255 = vlaneseq
  %v3256 = vshrl.u32 %v3255, 7
  %v3257 = vsub.s32 1, %v3256
  %v3258 = vrot.slane %v2901, %v3257
  %3260 = vbcast.lane.b32.xlu0 %v3258, 256
  %v3261 = vpop.permute.xlu0 %3260
  %s3263 = sor.u32 256, 8
  %3264 = vbcast.lane.b32.xlu0 %v3258, %s3263
  %v3265 = vpop.permute.xlu0 %3264
  %v3266 = vlaneseq
  %v3267 = vshrl.u32 %v3266, 7
  %v3268 = vsub.s32 2, %v3267
  %v3269 = vrot.slane %v2901, %v3268
  %3271 = vbcast.lane.b32.xlu0 %v3269, 256
  %v3272 = vpop.permute.xlu0 %3271
  %s3274 = sor.u32 256, 8
  %3275 = vbcast.lane.b32.xlu0 %v3269, %s3274
  %v3276 = vpop.permute.xlu0 %3275
  %v3277 = vlaneseq
  %v3278 = vshrl.u32 %v3277, 7
  %v3279 = vsub.s32 3, %v3278
  %v3280 = vrot.slane %v2901, %v3279
  %3282 = vbcast.lane.b32.xlu0 %v3280, 256
  %v3283 = vpop.permute.xlu0 %3282
  %s3285 = sor.u32 256, 8
  %3286 = vbcast.lane.b32.xlu0 %v3280, %s3285
  %v3287 = vpop.permute.xlu0 %3286
  %v3288 = vlaneseq
  %v3289 = vshrl.u32 %v3288, 7
  %v3290 = vsub.s32 4, %v3289
  %v3291 = vrot.slane %v2901, %v3290
  %3293 = vbcast.lane.b32.xlu0 %v3291, 256
  %v3294 = vpop.permute.xlu0 %3293
  %s3296 = sor.u32 256, 8
  %3297 = vbcast.lane.b32.xlu0 %v3291, %s3296
  %v3298 = vpop.permute.xlu0 %3297
  %v3299 = vlaneseq
  %v3300 = vshrl.u32 %v3299, 7
  %v3301 = vsub.s32 5, %v3300
  %v3302 = vrot.slane %v2901, %v3301
  %3304 = vbcast.lane.b32.xlu0 %v3302, 256
  %v3305 = vpop.permute.xlu0 %3304
  %s3307 = sor.u32 256, 8
  %3308 = vbcast.lane.b32.xlu0 %v3302, %s3307
  %v3309 = vpop.permute.xlu0 %3308
  %v3310 = vlaneseq
  %v3311 = vshrl.u32 %v3310, 7
  %v3312 = vsub.s32 6, %v3311
  %v3313 = vrot.slane %v2901, %v3312
  %3315 = vbcast.lane.b32.xlu0 %v3313, 256
  %v3316 = vpop.permute.xlu0 %3315
  %s3318 = sor.u32 256, 8
  %3319 = vbcast.lane.b32.xlu0 %v3313, %s3318
  %v3320 = vpop.permute.xlu0 %3319
  %v3321 = vlaneseq
  %v3322 = vshrl.u32 %v3321, 7
  %v3323 = vsub.s32 7, %v3322
  %v3324 = vrot.slane %v2901, %v3323
  %3326 = vbcast.lane.b32.xlu0 %v3324, 256
  %v3327 = vpop.permute.xlu0 %3326
  %s3329 = sor.u32 256, 8
  %3330 = vbcast.lane.b32.xlu0 %v3324, %s3329
  %v3331 = vpop.permute.xlu0 %3330
  %v3332 = vlaneseq
  %v3333 = vshrl.u32 %v3332, 7
  %v3334 = vsub.s32 0, %v3333
  %v3335 = vrot.slane %v2902, %v3334
  %3337 = vbcast.lane.b32.xlu0 %v3335, 256
  %v3338 = vpop.permute.xlu0 %3337
  %s3340 = sor.u32 256, 8
  %3341 = vbcast.lane.b32.xlu0 %v3335, %s3340
  %v3342 = vpop.permute.xlu0 %3341
  %v3343 = vlaneseq
  %v3344 = vshrl.u32 %v3343, 7
  %v3345 = vsub.s32 1, %v3344
  %v3346 = vrot.slane %v2902, %v3345
  %3348 = vbcast.lane.b32.xlu0 %v3346, 256
  %v3349 = vpop.permute.xlu0 %3348
  %s3351 = sor.u32 256, 8
  %3352 = vbcast.lane.b32.xlu0 %v3346, %s3351
  %v3353 = vpop.permute.xlu0 %3352
  %v3354 = vlaneseq
  %v3355 = vshrl.u32 %v3354, 7
  %v3356 = vsub.s32 2, %v3355
  %v3357 = vrot.slane %v2902, %v3356
  %3359 = vbcast.lane.b32.xlu0 %v3357, 256
  %v3360 = vpop.permute.xlu0 %3359
  %s3362 = sor.u32 256, 8
  %3363 = vbcast.lane.b32.xlu0 %v3357, %s3362
  %v3364 = vpop.permute.xlu0 %3363
  %v3365 = vlaneseq
  %v3366 = vshrl.u32 %v3365, 7
  %v3367 = vsub.s32 3, %v3366
  %v3368 = vrot.slane %v2902, %v3367
  %3370 = vbcast.lane.b32.xlu0 %v3368, 256
  %v3371 = vpop.permute.xlu0 %3370
  %s3373 = sor.u32 256, 8
  %3374 = vbcast.lane.b32.xlu0 %v3368, %s3373
  %v3375 = vpop.permute.xlu0 %3374
  %v3376 = vadd.f32 %v3220, %v3250
  %v3377 = vadd.f32 %v3221, %v3254
  %v3378 = vadd.f32 %v3222, %v3261
  %v3379 = vadd.f32 %v3223, %v3265
  %v3380 = vadd.f32 %v3224, %v3272
  %v3381 = vadd.f32 %v3225, %v3276
  %v3382 = vadd.f32 %v3226, %v3283
  %v3383 = vadd.f32 %v3227, %v3287
  %v3384 = vadd.f32 %v3228, %v3294
  %v3385 = vadd.f32 %v3229, %v3298
  %v3386 = vadd.f32 %v3230, %v3305
  %v3387 = vadd.f32 %v3231, %v3309
  %v3388 = vadd.f32 %v3232, %v3316
  %v3389 = vadd.f32 %v3233, %v3320
  %v3390 = vadd.f32 %v3234, %v3327
  %v3391 = vadd.f32 %v3235, %v3331
  %v3392 = vadd.f32 %v3236, %v3338
  %v3393 = vadd.f32 %v3237, %v3342
  %v3394 = vadd.f32 %v3238, %v3349
  %v3395 = vadd.f32 %v3239, %v3353
  %v3396 = vadd.f32 %v3240, %v3360
  %v3397 = vadd.f32 %v3241, %v3364
  %v3398 = vadd.f32 %v3242, %v3371
  %v3399 = vadd.f32 %v3243, %v3375
  %v3400 = vsel %vm110, %v3376, -inf
  %v3401 = vsel %vm110, %v3377, -inf
  %v3402 = vmax.f32 %v3400, %v3401
  %v3403 = vrot.slane %v3402, 4
  %v3404 = vmax.f32 %v3402, %v3403
  %v3405 = vrot.slane %v3404, 2
  %v3406 = vmax.f32 %v3404, %v3405
  %v3407 = vrot.slane %v3406, 1
  %v3408 = vmax.f32 %v3406, %v3407
  %v3409 = vsel %vm110, %v3378, -inf
  %v3410 = vsel %vm110, %v3379, -inf
  %v3411 = vmax.f32 %v3409, %v3410
  %v3412 = vrot.slane %v3411, 4
  %v3413 = vmax.f32 %v3411, %v3412
  %v3414 = vrot.slane %v3413, 2
  %v3415 = vmax.f32 %v3413, %v3414
  %v3416 = vrot.slane %v3415, 1
  %v3417 = vmax.f32 %v3415, %v3416
  %v3418 = vsel %vm110, %v3380, -inf
  %v3419 = vsel %vm110, %v3381, -inf
  %v3420 = vmax.f32 %v3418, %v3419
  %v3421 = vrot.slane %v3420, 4
  %v3422 = vmax.f32 %v3420, %v3421
  %v3423 = vrot.slane %v3422, 2
  %v3424 = vmax.f32 %v3422, %v3423
  %v3425 = vrot.slane %v3424, 1
  %v3426 = vmax.f32 %v3424, %v3425
  %v3427 = vsel %vm110, %v3382, -inf
  %v3428 = vsel %vm110, %v3383, -inf
  %v3429 = vmax.f32 %v3427, %v3428
  %v3430 = vrot.slane %v3429, 4
  %v3431 = vmax.f32 %v3429, %v3430
  %v3432 = vrot.slane %v3431, 2
  %v3433 = vmax.f32 %v3431, %v3432
  %v3434 = vrot.slane %v3433, 1
  %v3435 = vmax.f32 %v3433, %v3434
  %v3436 = vsel %vm110, %v3384, -inf
  %v3437 = vsel %vm110, %v3385, -inf
  %v3438 = vmax.f32 %v3436, %v3437
  %v3439 = vrot.slane %v3438, 4
  %v3440 = vmax.f32 %v3438, %v3439
  %v3441 = vrot.slane %v3440, 2
  %v3442 = vmax.f32 %v3440, %v3441
  %v3443 = vrot.slane %v3442, 1
  %v3444 = vmax.f32 %v3442, %v3443
  %v3445 = vsel %vm110, %v3386, -inf
  %v3446 = vsel %vm110, %v3387, -inf
  %v3447 = vmax.f32 %v3445, %v3446
  %v3448 = vrot.slane %v3447, 4
  %v3449 = vmax.f32 %v3447, %v3448
  %v3450 = vrot.slane %v3449, 2
  %v3451 = vmax.f32 %v3449, %v3450
  %v3452 = vrot.slane %v3451, 1
  %v3453 = vmax.f32 %v3451, %v3452
  %v3454 = vsel %vm110, %v3388, -inf
  %v3455 = vsel %vm110, %v3389, -inf
  %v3456 = vmax.f32 %v3454, %v3455
  %v3457 = vrot.slane %v3456, 4
  %v3458 = vmax.f32 %v3456, %v3457
  %v3459 = vrot.slane %v3458, 2
  %v3460 = vmax.f32 %v3458, %v3459
  %v3461 = vrot.slane %v3460, 1
  %v3462 = vmax.f32 %v3460, %v3461
  %v3463 = vsel %vm110, %v3390, -inf
  %v3464 = vsel %vm110, %v3391, -inf
  %v3465 = vmax.f32 %v3463, %v3464
  %v3466 = vrot.slane %v3465, 4
  %v3467 = vmax.f32 %v3465, %v3466
  %v3468 = vrot.slane %v3467, 2
  %v3469 = vmax.f32 %v3467, %v3468
  %v3470 = vrot.slane %v3469, 1
  %v3471 = vmax.f32 %v3469, %v3470
  %v3472 = vsel %vm110, %v3392, -inf
  %v3473 = vsel %vm110, %v3393, -inf
  %v3474 = vmax.f32 %v3472, %v3473
  %v3475 = vrot.slane %v3474, 4
  %v3476 = vmax.f32 %v3474, %v3475
  %v3477 = vrot.slane %v3476, 2
  %v3478 = vmax.f32 %v3476, %v3477
  %v3479 = vrot.slane %v3478, 1
  %v3480 = vmax.f32 %v3478, %v3479
  %v3481 = vsel %vm110, %v3394, -inf
  %v3482 = vsel %vm110, %v3395, -inf
  %v3483 = vmax.f32 %v3481, %v3482
  %v3484 = vrot.slane %v3483, 4
  %v3485 = vmax.f32 %v3483, %v3484
  %v3486 = vrot.slane %v3485, 2
  %v3487 = vmax.f32 %v3485, %v3486
  %v3488 = vrot.slane %v3487, 1
  %v3489 = vmax.f32 %v3487, %v3488
  %v3490 = vsel %vm110, %v3396, -inf
  %v3491 = vsel %vm110, %v3397, -inf
  %v3492 = vmax.f32 %v3490, %v3491
  %v3493 = vrot.slane %v3492, 4
  %v3494 = vmax.f32 %v3492, %v3493
  %v3495 = vrot.slane %v3494, 2
  %v3496 = vmax.f32 %v3494, %v3495
  %v3497 = vrot.slane %v3496, 1
  %v3498 = vmax.f32 %v3496, %v3497
  %v3499 = vsel %vm110, %v3398, -inf
  %v3500 = vsel %vm110, %v3399, -inf
  %v3501 = vmax.f32 %v3499, %v3500
  %v3502 = vrot.slane %v3501, 4
  %v3503 = vmax.f32 %v3501, %v3502
  %v3504 = vrot.slane %v3503, 2
  %v3505 = vmax.f32 %v3503, %v3504
  %v3506 = vrot.slane %v3505, 1
  %v3507 = vmax.f32 %v3505, %v3506
  %v3508 = vmax.f32 %v3408, -1e+30
  %v3509 = vmax.f32 %v3417, -1e+30
  %v3510 = vmax.f32 %v3426, -1e+30
  %v3511 = vmax.f32 %v3435, -1e+30
  %v3512 = vmax.f32 %v3444, -1e+30
  %v3513 = vmax.f32 %v3453, -1e+30
  %v3514 = vmax.f32 %v3462, -1e+30
  %v3515 = vmax.f32 %v3471, -1e+30
  %v3516 = vmax.f32 %v3480, -1e+30
  %v3517 = vmax.f32 %v3489, -1e+30
  %v3518 = vmax.f32 %v3498, -1e+30
  %v3519 = vmax.f32 %v3507, -1e+30
  %v3520 = vsub.f32 %v3376, %v3508
  %v3521 = vsub.f32 %v3377, %v3508
  %v3522 = vsub.f32 %v3378, %v3509
  %v3523 = vsub.f32 %v3379, %v3509
  %v3524 = vsub.f32 %v3380, %v3510
  %v3525 = vsub.f32 %v3381, %v3510
  %v3526 = vsub.f32 %v3382, %v3511
  %v3527 = vsub.f32 %v3383, %v3511
  %v3528 = vsub.f32 %v3384, %v3512
  %v3529 = vsub.f32 %v3385, %v3512
  %v3530 = vsub.f32 %v3386, %v3513
  %v3531 = vsub.f32 %v3387, %v3513
  %v3532 = vsub.f32 %v3388, %v3514
  %v3533 = vsub.f32 %v3389, %v3514
  %v3534 = vsub.f32 %v3390, %v3515
  %v3535 = vsub.f32 %v3391, %v3515
  %v3536 = vsub.f32 %v3392, %v3516
  %v3537 = vsub.f32 %v3393, %v3516
  %v3538 = vsub.f32 %v3394, %v3517
  %v3539 = vsub.f32 %v3395, %v3517
  %v3540 = vsub.f32 %v3396, %v3518
  %v3541 = vsub.f32 %v3397, %v3518
  %v3542 = vsub.f32 %v3398, %v3519
  %v3543 = vsub.f32 %v3399, %v3519
  %v3544 = vmul.f32 %v3520, 1.442695
  %v3545 = vpow.pop %v3544
  %v3546 = vmul.f32 %v3521, 1.442695
  %v3547 = vpow.pop %v3546
  %v3548 = vmul.f32 %v3522, 1.442695
  %v3549 = vpow.pop %v3548
  %v3550 = vmul.f32 %v3523, 1.442695
  %v3551 = vpow.pop %v3550
  %v3552 = vmul.f32 %v3524, 1.442695
  %v3553 = vpow.pop %v3552
  %v3554 = vmul.f32 %v3525, 1.442695
  %v3555 = vpow.pop %v3554
  %v3556 = vmul.f32 %v3526, 1.442695
  %v3557 = vpow.pop %v3556
  %v3558 = vmul.f32 %v3527, 1.442695
  %v3559 = vpow.pop %v3558
  %v3560 = vmul.f32 %v3528, 1.442695
  %v3561 = vpow.pop %v3560
  %v3562 = vmul.f32 %v3529, 1.442695
  %v3563 = vpow.pop %v3562
  %v3564 = vmul.f32 %v3530, 1.442695
  %v3565 = vpow.pop %v3564
  %v3566 = vmul.f32 %v3531, 1.442695
  %v3567 = vpow.pop %v3566
  %v3568 = vmul.f32 %v3532, 1.442695
  %v3569 = vpow.pop %v3568
  %v3570 = vmul.f32 %v3533, 1.442695
  %v3571 = vpow.pop %v3570
  %v3572 = vmul.f32 %v3534, 1.442695
  %v3573 = vpow.pop %v3572
  %v3574 = vmul.f32 %v3535, 1.442695
  %v3575 = vpow.pop %v3574
  %v3576 = vmul.f32 %v3536, 1.442695
  %v3577 = vpow.pop %v3576
  %v3578 = vmul.f32 %v3537, 1.442695
  %v3579 = vpow.pop %v3578
  %v3580 = vmul.f32 %v3538, 1.442695
  %v3581 = vpow.pop %v3580
  %v3582 = vmul.f32 %v3539, 1.442695
  %v3583 = vpow.pop %v3582
  %v3584 = vmul.f32 %v3540, 1.442695
  %v3585 = vpow.pop %v3584
  %v3586 = vmul.f32 %v3541, 1.442695
  %v3587 = vpow.pop %v3586
  %v3588 = vmul.f32 %v3542, 1.442695
  %v3589 = vpow.pop %v3588
  %v3590 = vmul.f32 %v3543, 1.442695
  %v3591 = vpow.pop %v3590
  %v3592 = vsel %vm110, %v3545, 0.0
  %v3593 = vsel %vm110, %v3547, 0.0
  %v3594 = vadd.f32 %v3592, %v3593
  %v3595 = vrot.slane %v3594, 4
  %v3596 = vadd.f32 %v3594, %v3595
  %v3597 = vrot.slane %v3596, 2
  %v3598 = vadd.f32 %v3596, %v3597
  %v3599 = vrot.slane %v3598, 1
  %v3600 = vadd.f32 %v3598, %v3599
  %v3601 = vsel %vm110, %v3549, 0.0
  %v3602 = vsel %vm110, %v3551, 0.0
  %v3603 = vadd.f32 %v3601, %v3602
  %v3604 = vrot.slane %v3603, 4
  %v3605 = vadd.f32 %v3603, %v3604
  %v3606 = vrot.slane %v3605, 2
  %v3607 = vadd.f32 %v3605, %v3606
  %v3608 = vrot.slane %v3607, 1
  %v3609 = vadd.f32 %v3607, %v3608
  %v3610 = vsel %vm110, %v3553, 0.0
  %v3611 = vsel %vm110, %v3555, 0.0
  %v3612 = vadd.f32 %v3610, %v3611
  %v3613 = vrot.slane %v3612, 4
  %v3614 = vadd.f32 %v3612, %v3613
  %v3615 = vrot.slane %v3614, 2
  %v3616 = vadd.f32 %v3614, %v3615
  %v3617 = vrot.slane %v3616, 1
  %v3618 = vadd.f32 %v3616, %v3617
  %v3619 = vsel %vm110, %v3557, 0.0
  %v3620 = vsel %vm110, %v3559, 0.0
  %v3621 = vadd.f32 %v3619, %v3620
  %v3622 = vrot.slane %v3621, 4
  %v3623 = vadd.f32 %v3621, %v3622
  %v3624 = vrot.slane %v3623, 2
  %v3625 = vadd.f32 %v3623, %v3624
  %v3626 = vrot.slane %v3625, 1
  %v3627 = vadd.f32 %v3625, %v3626
  %v3628 = vsel %vm110, %v3561, 0.0
  %v3629 = vsel %vm110, %v3563, 0.0
  %v3630 = vadd.f32 %v3628, %v3629
  %v3631 = vrot.slane %v3630, 4
  %v3632 = vadd.f32 %v3630, %v3631
  %v3633 = vrot.slane %v3632, 2
  %v3634 = vadd.f32 %v3632, %v3633
  %v3635 = vrot.slane %v3634, 1
  %v3636 = vadd.f32 %v3634, %v3635
  %v3637 = vsel %vm110, %v3565, 0.0
  %v3638 = vsel %vm110, %v3567, 0.0
  %v3639 = vadd.f32 %v3637, %v3638
  %v3640 = vrot.slane %v3639, 4
  %v3641 = vadd.f32 %v3639, %v3640
  %v3642 = vrot.slane %v3641, 2
  %v3643 = vadd.f32 %v3641, %v3642
  %v3644 = vrot.slane %v3643, 1
  %v3645 = vadd.f32 %v3643, %v3644
  %v3646 = vsel %vm110, %v3569, 0.0
  %v3647 = vsel %vm110, %v3571, 0.0
  %v3648 = vadd.f32 %v3646, %v3647
  %v3649 = vrot.slane %v3648, 4
  %v3650 = vadd.f32 %v3648, %v3649
  %v3651 = vrot.slane %v3650, 2
  %v3652 = vadd.f32 %v3650, %v3651
  %v3653 = vrot.slane %v3652, 1
  %v3654 = vadd.f32 %v3652, %v3653
  %v3655 = vsel %vm110, %v3573, 0.0
  %v3656 = vsel %vm110, %v3575, 0.0
  %v3657 = vadd.f32 %v3655, %v3656
  %v3658 = vrot.slane %v3657, 4
  %v3659 = vadd.f32 %v3657, %v3658
  %v3660 = vrot.slane %v3659, 2
  %v3661 = vadd.f32 %v3659, %v3660
  %v3662 = vrot.slane %v3661, 1
  %v3663 = vadd.f32 %v3661, %v3662
  %v3664 = vsel %vm110, %v3577, 0.0
  %v3665 = vsel %vm110, %v3579, 0.0
  %v3666 = vadd.f32 %v3664, %v3665
  %v3667 = vrot.slane %v3666, 4
  %v3668 = vadd.f32 %v3666, %v3667
  %v3669 = vrot.slane %v3668, 2
  %v3670 = vadd.f32 %v3668, %v3669
  %v3671 = vrot.slane %v3670, 1
  %v3672 = vadd.f32 %v3670, %v3671
  %v3673 = vsel %vm110, %v3581, 0.0
  %v3674 = vsel %vm110, %v3583, 0.0
  %v3675 = vadd.f32 %v3673, %v3674
  %v3676 = vrot.slane %v3675, 4
  %v3677 = vadd.f32 %v3675, %v3676
  %v3678 = vrot.slane %v3677, 2
  %v3679 = vadd.f32 %v3677, %v3678
  %v3680 = vrot.slane %v3679, 1
  %v3681 = vadd.f32 %v3679, %v3680
  %v3682 = vsel %vm110, %v3585, 0.0
  %v3683 = vsel %vm110, %v3587, 0.0
  %v3684 = vadd.f32 %v3682, %v3683
  %v3685 = vrot.slane %v3684, 4
  %v3686 = vadd.f32 %v3684, %v3685
  %v3687 = vrot.slane %v3686, 2
  %v3688 = vadd.f32 %v3686, %v3687
  %v3689 = vrot.slane %v3688, 1
  %v3690 = vadd.f32 %v3688, %v3689
  %v3691 = vsel %vm110, %v3589, 0.0
  %v3692 = vsel %vm110, %v3591, 0.0
  %v3693 = vadd.f32 %v3691, %v3692
  %v3694 = vrot.slane %v3693, 4
  %v3695 = vadd.f32 %v3693, %v3694
  %v3696 = vrot.slane %v3695, 2
  %v3697 = vadd.f32 %v3695, %v3696
  %v3698 = vrot.slane %v3697, 1
  %v3699 = vadd.f32 %v3697, %v3698
  %v3700 = vmax.f32 %v3600, 1e-30
  %v3701 = vmax.f32 %v3609, 1e-30
  %v3702 = vmax.f32 %v3618, 1e-30
  %v3703 = vmax.f32 %v3627, 1e-30
  %v3704 = vmax.f32 %v3636, 1e-30
  %v3705 = vmax.f32 %v3645, 1e-30
  %v3706 = vmax.f32 %v3654, 1e-30
  %v3707 = vmax.f32 %v3663, 1e-30
  %v3708 = vmax.f32 %v3672, 1e-30
  %v3709 = vmax.f32 %v3681, 1e-30
  %v3710 = vmax.f32 %v3690, 1e-30
  %v3711 = vmax.f32 %v3699, 1e-30
  %3714 = vrot.lane.b32.xlu0 %v3077, 120
  %v3715 = vpop.permute.xlu0 %3714
  %3716 = vrot.lane.b32.xlu0 %v3082, 120
  %v3717 = vpop.permute.xlu0 %3716
  %v3720 = vmul.f32 %v3545, %v3715
  %v3721 = vmul.f32 %v3547, %v3717
  %v3722 = vmul.f32 %v3549, %v3715
  %v3723 = vmul.f32 %v3551, %v3717
  %v3724 = vmul.f32 %v3553, %v3715
  %v3725 = vmul.f32 %v3555, %v3717
  %v3726 = vmul.f32 %v3557, %v3715
  %v3727 = vmul.f32 %v3559, %v3717
  %v3728 = vmul.f32 %v3561, %v3715
  %v3729 = vmul.f32 %v3563, %v3717
  %v3730 = vmul.f32 %v3565, %v3715
  %v3731 = vmul.f32 %v3567, %v3717
  %v3732 = vmul.f32 %v3569, %v3715
  %v3733 = vmul.f32 %v3571, %v3717
  %v3734 = vmul.f32 %v3573, %v3715
  %v3735 = vmul.f32 %v3575, %v3717
  %v3736 = vmul.f32 %v3577, %v3715
  %v3737 = vmul.f32 %v3579, %v3717
  %v3738 = vmul.f32 %v3581, %v3715
  %v3739 = vmul.f32 %v3583, %v3717
  %v3740 = vmul.f32 %v3585, %v3715
  %v3741 = vmul.f32 %v3587, %v3717
  %v3742 = vmul.f32 %v3589, %v3715
  %v3743 = vmul.f32 %v3591, %v3717
  %v3744 = vsel %vm110, %v3720, 0.0
  %v3745 = vsel %vm110, %v3721, 0.0
  %v3746 = vadd.f32 %v3744, %v3745
  %v3747 = vrot.slane %v3746, 4
  %v3748 = vadd.f32 %v3746, %v3747
  %v3749 = vrot.slane %v3748, 2
  %v3750 = vadd.f32 %v3748, %v3749
  %v3751 = vrot.slane %v3750, 1
  %v3752 = vadd.f32 %v3750, %v3751
  %v3753 = vsel %vm110, %v3722, 0.0
  %v3754 = vsel %vm110, %v3723, 0.0
  %v3755 = vadd.f32 %v3753, %v3754
  %v3756 = vrot.slane %v3755, 4
  %v3757 = vadd.f32 %v3755, %v3756
  %v3758 = vrot.slane %v3757, 2
  %v3759 = vadd.f32 %v3757, %v3758
  %v3760 = vrot.slane %v3759, 1
  %v3761 = vadd.f32 %v3759, %v3760
  %v3762 = vsel %vm110, %v3724, 0.0
  %v3763 = vsel %vm110, %v3725, 0.0
  %v3764 = vadd.f32 %v3762, %v3763
  %v3765 = vrot.slane %v3764, 4
  %v3766 = vadd.f32 %v3764, %v3765
  %v3767 = vrot.slane %v3766, 2
  %v3768 = vadd.f32 %v3766, %v3767
  %v3769 = vrot.slane %v3768, 1
  %v3770 = vadd.f32 %v3768, %v3769
  %v3771 = vsel %vm110, %v3726, 0.0
  %v3772 = vsel %vm110, %v3727, 0.0
  %v3773 = vadd.f32 %v3771, %v3772
  %v3774 = vrot.slane %v3773, 4
  %v3775 = vadd.f32 %v3773, %v3774
  %v3776 = vrot.slane %v3775, 2
  %v3777 = vadd.f32 %v3775, %v3776
  %v3778 = vrot.slane %v3777, 1
  %v3779 = vadd.f32 %v3777, %v3778
  %v3780 = vsel %vm110, %v3728, 0.0
  %v3781 = vsel %vm110, %v3729, 0.0
  %v3782 = vadd.f32 %v3780, %v3781
  %v3783 = vrot.slane %v3782, 4
  %v3784 = vadd.f32 %v3782, %v3783
  %v3785 = vrot.slane %v3784, 2
  %v3786 = vadd.f32 %v3784, %v3785
  %v3787 = vrot.slane %v3786, 1
  %v3788 = vadd.f32 %v3786, %v3787
  %v3789 = vsel %vm110, %v3730, 0.0
  %v3790 = vsel %vm110, %v3731, 0.0
  %v3791 = vadd.f32 %v3789, %v3790
  %v3792 = vrot.slane %v3791, 4
  %v3793 = vadd.f32 %v3791, %v3792
  %v3794 = vrot.slane %v3793, 2
  %v3795 = vadd.f32 %v3793, %v3794
  %v3796 = vrot.slane %v3795, 1
  %v3797 = vadd.f32 %v3795, %v3796
  %v3798 = vsel %vm110, %v3732, 0.0
  %v3799 = vsel %vm110, %v3733, 0.0
  %v3800 = vadd.f32 %v3798, %v3799
  %v3801 = vrot.slane %v3800, 4
  %v3802 = vadd.f32 %v3800, %v3801
  %v3803 = vrot.slane %v3802, 2
  %v3804 = vadd.f32 %v3802, %v3803
  %v3805 = vrot.slane %v3804, 1
  %v3806 = vadd.f32 %v3804, %v3805
  %v3807 = vsel %vm110, %v3734, 0.0
  %v3808 = vsel %vm110, %v3735, 0.0
  %v3809 = vadd.f32 %v3807, %v3808
  %v3810 = vrot.slane %v3809, 4
  %v3811 = vadd.f32 %v3809, %v3810
  %v3812 = vrot.slane %v3811, 2
  %v3813 = vadd.f32 %v3811, %v3812
  %v3814 = vrot.slane %v3813, 1
  %v3815 = vadd.f32 %v3813, %v3814
  %v3816 = vsel %vm110, %v3736, 0.0
  %v3817 = vsel %vm110, %v3737, 0.0
  %v3818 = vadd.f32 %v3816, %v3817
  %v3819 = vrot.slane %v3818, 4
  %v3820 = vadd.f32 %v3818, %v3819
  %v3821 = vrot.slane %v3820, 2
  %v3822 = vadd.f32 %v3820, %v3821
  %v3823 = vrot.slane %v3822, 1
  %v3824 = vadd.f32 %v3822, %v3823
  %v3825 = vsel %vm110, %v3738, 0.0
  %v3826 = vsel %vm110, %v3739, 0.0
  %v3827 = vadd.f32 %v3825, %v3826
  %v3828 = vrot.slane %v3827, 4
  %v3829 = vadd.f32 %v3827, %v3828
  %v3830 = vrot.slane %v3829, 2
  %v3831 = vadd.f32 %v3829, %v3830
  %v3832 = vrot.slane %v3831, 1
  %v3833 = vadd.f32 %v3831, %v3832
  %v3834 = vsel %vm110, %v3740, 0.0
  %v3835 = vsel %vm110, %v3741, 0.0
  %v3836 = vadd.f32 %v3834, %v3835
  %v3837 = vrot.slane %v3836, 4
  %v3838 = vadd.f32 %v3836, %v3837
  %v3839 = vrot.slane %v3838, 2
  %v3840 = vadd.f32 %v3838, %v3839
  %v3841 = vrot.slane %v3840, 1
  %v3842 = vadd.f32 %v3840, %v3841
  %v3843 = vsel %vm110, %v3742, 0.0
  %v3844 = vsel %vm110, %v3743, 0.0
  %v3845 = vadd.f32 %v3843, %v3844
  %v3846 = vrot.slane %v3845, 4
  %v3847 = vadd.f32 %v3845, %v3846
  %v3848 = vrot.slane %v3847, 2
  %v3849 = vadd.f32 %v3847, %v3848
  %v3850 = vrot.slane %v3849, 1
  %v3851 = vadd.f32 %v3849, %v3850
  %v3852 = vrcp.pop %v3700
  %v3853 = vrcp.pop %v3701
  %v3854 = vrcp.pop %v3702
  %v3855 = vrcp.pop %v3703
  %v3856 = vrcp.pop %v3704
  %v3857 = vrcp.pop %v3705
  %v3858 = vrcp.pop %v3706
  %v3859 = vrcp.pop %v3707
  %v3860 = vrcp.pop %v3708
  %v3861 = vrcp.pop %v3709
  %v3862 = vrcp.pop %v3710
  %v3863 = vrcp.pop %v3711
  %v3864 = vmul.f32 %v3752, %v3852
  %v3865 = vmul.f32 %v3761, %v3853
  %v3866 = vmul.f32 %v3770, %v3854
  %v3867 = vmul.f32 %v3779, %v3855
  %v3868 = vmul.f32 %v3788, %v3856
  %v3869 = vmul.f32 %v3797, %v3857
  %v3870 = vmul.f32 %v3806, %v3858
  %v3871 = vmul.f32 %v3815, %v3859
  %v3872 = vmul.f32 %v3824, %v3860
  %v3873 = vmul.f32 %v3833, %v3861
  %v3874 = vmul.f32 %v3842, %v3862
  %v3875 = vmul.f32 %v3851, %v3863
  %s3876 = scalar_lea.vmem %s11, 16
  %v3877 = vld [vmem:[%s3876] sm:$0xff]
  %s3878 = scalar_lea.vmem %s12, 2
  %v3879 = vld [vmem:[%s3878] sm:$0x1]
  %v3881 = vlaneseq
  %v3882 = vshrl.u32 %v3881, 7
  %v3883 = vsub.s32 0, %v3882
  %v3884 = vrot.slane %v3879, %v3883
  %v3898 = vsel %vm1351, %v3865, %v3864
  %v3899 = vsel %vm1353, %v3866, %v3898
  %v3900 = vsel %vm1355, %v3867, %v3899
  %v3901 = vsel %vm1357, %v3868, %v3900
  %v3902 = vsel %vm1359, %v3869, %v3901
  %v3903 = vsel %vm1361, %v3870, %v3902
  %v3904 = vsel %vm1363, %v3871, %v3903
  %v3905 = vsel %vm1351, %v3873, %v3872
  %v3906 = vsel %vm1353, %v3874, %v3905
  %v3907 = vsel %vm1355, %v3875, %v3906
  %v3908 = vsel %vm110, %v3904, 0
  %v3910 = vsel %vm110, %v3907, 0
  %3912 = vmatprep.subr.mxu0 0.0
  %3913 = vmatpush1.msra.mxu0 0.0
  %3914 = vmatprep.subr.mxu0 0.0
  %3915 = vmatpush1.msra.mxu0 0.0
  %3916 = vmatprep.subr.mxu0 0.0
  %3917 = vmatpush1.msra.mxu0 0.0
  %3918 = vmatprep.subr.mxu0 0.0
  %3919 = vmatpush1.msra.mxu0 0.0
  %3920 = vmatprep.subr.mxu0 0.0
  %3921 = vmatpush1.msra.mxu0 0.0
  %3922 = vmatprep.subr.mxu0 0.0
  %3923 = vmatpush1.msra.mxu0 0.0
  %3924 = vmatprep.subr.mxu0 0.0
  %3925 = vmatpush1.msra.mxu0 0.0
  %3926 = vmatprep.subr.mxu0 0.0
  %3927 = vmatpush1.msra.mxu0 0.0
  %3928 = vmatprep.subr.mxu0 0.0
  %3929 = vmatpush1.msra.mxu0 0.0
  %3930 = vmatprep.subr.mxu0 0.0
  %3931 = vmatpush1.msra.mxu0 0.0
  %3932 = vmatprep.subr.mxu0 0.0
  %3933 = vmatpush1.msra.mxu0 0.0
  %3934 = vmatprep.subr.mxu0 0.0
  %3935 = vmatpush1.msra.mxu0 0.0
  %3936 = vmatprep.subr.mxu0 0.0
  %3937 = vmatpush1.msra.mxu0 0.0
  %3938 = vmatprep.subr.mxu0 0.0
  %3939 = vmatpush1.msra.mxu0 0.0
  %3940 = vmatprep.subr.mxu0 0.0
  %3941 = vmatpush1.msra.mxu0 0.0
  %3942 = vmatprep.subr.mxu0 0.0
  %3943 = vmatpush1.msra.mxu0 %v3877
  %3944 = vmatprep.subr.mxu0 0.0
  %3945 = vmatpush2.msra.mxu0 0.0
  %3946 = vmatprep.subr.mxu0 0.0
  %3947 = vmatpush2.msra.mxu0 0.0
  %3948 = vmatprep.subr.mxu0 0.0
  %3949 = vmatpush2.msra.mxu0 0.0
  %3950 = vmatprep.subr.mxu0 0.0
  %3951 = vmatpush2.msra.mxu0 0.0
  %3952 = vmatprep.subr.mxu0 0.0
  %3953 = vmatpush2.msra.mxu0 0.0
  %3954 = vmatprep.subr.mxu0 0.0
  %3955 = vmatpush2.msra.mxu0 0.0
  %3956 = vmatprep.subr.mxu0 0.0
  %3957 = vmatpush2.msra.mxu0 0.0
  %3958 = vmatprep.subr.mxu0 0.0
  %3959 = vmatpush2.msra.mxu0 0.0
  %3960 = vmatprep.subr.mxu0 0.0
  %3961 = vmatpush2.msra.mxu0 0.0
  %3962 = vmatprep.subr.mxu0 0.0
  %3963 = vmatpush2.msra.mxu0 0.0
  %3964 = vmatprep.subr.mxu0 0.0
  %3965 = vmatpush2.msra.mxu0 0.0
  %3966 = vmatprep.subr.mxu0 0.0
  %3967 = vmatpush2.msra.mxu0 0.0
  %3968 = vmatprep.subr.mxu0 0.0
  %3969 = vmatpush2.msra.mxu0 0.0
  %3970 = vmatprep.subr.mxu0 0.0
  %3971 = vmatpush2.msra.mxu0 0.0
  %3972 = vmatprep.subr.mxu0 0.0
  %3973 = vmatpush2.msra.mxu0 0.0
  %3974 = vmatprep.subr.mxu0 0.0
  %3975 = vmatpush2.msra.mxu0 0.0
  %3976 = vmatprep.mubr.f32.mxu0 0.0
  %3977 = vmatmul.mubr.f32.gmra.mxu0 %v3908
  %v3978 = vpop.f32.mrf.mxu0
  %v3979 = vadd.f32 %v3884, %v3978
  %v3980 = vpop.f32.mrf.mxu0
  %3981 = vmatprep.mubr.f32.mxu0 0.0
  %3982 = vmatmul.mubr.f32.gmra.mxu0 %v3910
  %v3983 = vpop.f32.mrf.mxu0
  %v3984 = vadd.f32 %v3884, %v3983
  %v3985 = vpop.f32.mrf.mxu0
  %3986 = vdwg.mxu0
  %v3987 = vadd.f32 %v2899, %v3979
  %v3988 = vadd.f32 %v2900, %v3984
  %s3989 = scalar_lea.vmem %s17, 4
  %v3990 = vld [vmem:[%s3989] sm:$0x1]
  %s3991 = scalar_lea.vmem %s18, 4
  %v3992 = vld [vmem:[%s3991] sm:$0x1]
  %v3993 = vsel %vm110, %v3987, 0.0
  %3994 = vadd.xlane.f32.xlu0 %v3993
  %v3995 = vpop.xlane.xlu0 %3994
  %v3996 = vsel %vm2266, %v3988, 0.0
  %3997 = vadd.xlane.f32.xlu0 %v3996
  %v3998 = vpop.xlane.xlu0 %3997
  %v3999 = vmul.f32 %v3995, %v1461
  %v4000 = vmul.f32 %v3998, %v1461
  %v4001 = vsub.f32 %v3987, %v3999
  %v4002 = vsub.f32 %v3988, %v4000
  %v4003 = vmul.f32 %v4001, %v4001
  %v4004 = vmul.f32 %v4002, %v4002
  %v4005 = vsel %vm110, %v4003, 0.0
  %4006 = vadd.xlane.f32.xlu0 %v4005
  %v4007 = vpop.xlane.xlu0 %4006
  %v4008 = vsel %vm2266, %v4004, 0.0
  %4009 = vadd.xlane.f32.xlu0 %v4008
  %v4010 = vpop.xlane.xlu0 %4009
  %v4011 = vmul.f32 %v4007, %v1461
  %v4012 = vmul.f32 %v4010, %v1461
  %v4013 = vadd.f32 %v4011, 1e-05
  %v4014 = vadd.f32 %v4012, 1e-05
  %v4015 = vrsqrt.pop %v4013
  %v4016 = vrsqrt.pop %v4014
  %v4017 = vmul.f32 %v4001, %v4015
  %v4018 = vmul.f32 %v4002, %v4016
  %v4020 = vlaneseq
  %v4021 = vshrl.u32 %v4020, 7
  %v4022 = vsub.s32 0, %v4021
  %v4023 = vrot.slane %v3990, %v4022
  %v4025 = vmul.f32 %v4017, %v4023
  %v4026 = vmul.f32 %v4018, %v4023
  %v4028 = vlaneseq
  %v4029 = vshrl.u32 %v4028, 7
  %v4030 = vsub.s32 0, %v4029
  %v4031 = vrot.slane %v3992, %v4030
  %v4033 = vadd.f32 %v4025, %v4031
  %v4034 = vadd.f32 %v4026, %v4031
  %s4035 = scalar_lea.vmem %s13, 8
  %v4036 = vld [vmem:[%s4035] sm:$0xff]
  %s4037 = scalar_lea.vmem %s14, 1
  %v4038 = vld [vmem:[%s4037] sm:$0x1]
  %v4040 = vlaneseq
  %v4041 = vshrl.u32 %v4040, 7
  %v4042 = vsub.s32 0, %v4041
  %v4043 = vrot.slane %v4038, %v4042
  %v4046 = vsel %vm110, %v4033, 0
  %v4049 = vsel %vm110, %v4034, 0
  %4051 = vmatprep.subr.mxu0 0.0
  %4052 = vmatpush1.msra.mxu0 0.0
  %4053 = vmatprep.subr.mxu0 0.0
  %4054 = vmatpush1.msra.mxu0 0.0
  %4055 = vmatprep.subr.mxu0 0.0
  %4056 = vmatpush1.msra.mxu0 0.0
  %4057 = vmatprep.subr.mxu0 0.0
  %4058 = vmatpush1.msra.mxu0 0.0
  %4059 = vmatprep.subr.mxu0 0.0
  %4060 = vmatpush1.msra.mxu0 0.0
  %4061 = vmatprep.subr.mxu0 0.0
  %4062 = vmatpush1.msra.mxu0 0.0
  %4063 = vmatprep.subr.mxu0 0.0
  %4064 = vmatpush1.msra.mxu0 0.0
  %4065 = vmatprep.subr.mxu0 0.0
  %4066 = vmatpush1.msra.mxu0 0.0
  %4067 = vmatprep.subr.mxu0 0.0
  %4068 = vmatpush1.msra.mxu0 0.0
  %4069 = vmatprep.subr.mxu0 0.0
  %4070 = vmatpush1.msra.mxu0 0.0
  %4071 = vmatprep.subr.mxu0 0.0
  %4072 = vmatpush1.msra.mxu0 0.0
  %4073 = vmatprep.subr.mxu0 0.0
  %4074 = vmatpush1.msra.mxu0 0.0
  %4075 = vmatprep.subr.mxu0 0.0
  %4076 = vmatpush1.msra.mxu0 0.0
  %4077 = vmatprep.subr.mxu0 0.0
  %4078 = vmatpush1.msra.mxu0 0.0
  %4079 = vmatprep.subr.mxu0 0.0
  %4080 = vmatpush1.msra.mxu0 0.0
  %4081 = vmatprep.subr.mxu0 0.0
  %4082 = vmatpush1.msra.mxu0 %v4036
  %4083 = vmatprep.subr.mxu0 0.0
  %4084 = vmatpush2.msra.mxu0 0.0
  %4085 = vmatprep.subr.mxu0 0.0
  %4086 = vmatpush2.msra.mxu0 0.0
  %4087 = vmatprep.subr.mxu0 0.0
  %4088 = vmatpush2.msra.mxu0 0.0
  %4089 = vmatprep.subr.mxu0 0.0
  %4090 = vmatpush2.msra.mxu0 0.0
  %4091 = vmatprep.subr.mxu0 0.0
  %4092 = vmatpush2.msra.mxu0 0.0
  %4093 = vmatprep.subr.mxu0 0.0
  %4094 = vmatpush2.msra.mxu0 0.0
  %4095 = vmatprep.subr.mxu0 0.0
  %4096 = vmatpush2.msra.mxu0 0.0
  %4097 = vmatprep.subr.mxu0 0.0
  %4098 = vmatpush2.msra.mxu0 0.0
  %4099 = vmatprep.subr.mxu0 0.0
  %4100 = vmatpush2.msra.mxu0 0.0
  %4101 = vmatprep.subr.mxu0 0.0
  %4102 = vmatpush2.msra.mxu0 0.0
  %4103 = vmatprep.subr.mxu0 0.0
  %4104 = vmatpush2.msra.mxu0 0.0
  %4105 = vmatprep.subr.mxu0 0.0
  %4106 = vmatpush2.msra.mxu0 0.0
  %4107 = vmatprep.subr.mxu0 0.0
  %4108 = vmatpush2.msra.mxu0 0.0
  %4109 = vmatprep.subr.mxu0 0.0
  %4110 = vmatpush2.msra.mxu0 0.0
  %4111 = vmatprep.subr.mxu0 0.0
  %4112 = vmatpush2.msra.mxu0 0.0
  %4113 = vmatprep.subr.mxu0 0.0
  %4114 = vmatpush2.msra.mxu0 0.0
  %4115 = vmatprep.mubr.f32.mxu0 0.0
  %4116 = vmatmul.mubr.f32.gmra.mxu0 %v4046
  %v4117 = vpop.f32.mrf.mxu0
  %v4118 = vadd.f32 %v4043, %v4117
  %v4119 = vpop.f32.mrf.mxu0
  %4120 = vmatprep.mubr.f32.mxu0 0.0
  %4121 = vmatmul.mubr.f32.gmra.mxu0 %v4049
  %v4122 = vpop.f32.mrf.mxu0
  %v4123 = vadd.f32 %v4043, %v4122
  %v4124 = vpop.f32.mrf.mxu0
  %4125 = vdwg.mxu0
  %v4126 = vmax.f32 %v4118, 0.0
  %v4127 = vmax.f32 %v4123, 0.0
  %s4128 = scalar_lea.vmem %s15, 8
  %v4129 = vld [vmem:[%s4128] sm:$0xff]
  %s4130 = scalar_lea.vmem %s16, 1
  %v4131 = vld [vmem:[%s4130] sm:$0x1]
  %v4133 = vlaneseq
  %v4134 = vshrl.u32 %v4133, 7
  %v4135 = vsub.s32 0, %v4134
  %v4136 = vrot.slane %v4131, %v4135
  %v4139 = vsel %vm110, %v4126, 0
  %v4142 = vsel %vm110, %v4127, 0
  %4144 = vmatprep.subr.mxu0 0.0
  %4145 = vmatpush1.msra.mxu0 0.0
  %4146 = vmatprep.subr.mxu0 0.0
  %4147 = vmatpush1.msra.mxu0 0.0
  %4148 = vmatprep.subr.mxu0 0.0
  %4149 = vmatpush1.msra.mxu0 0.0
  %4150 = vmatprep.subr.mxu0 0.0
  %4151 = vmatpush1.msra.mxu0 0.0
  %4152 = vmatprep.subr.mxu0 0.0
  %4153 = vmatpush1.msra.mxu0 0.0
  %4154 = vmatprep.subr.mxu0 0.0
  %4155 = vmatpush1.msra.mxu0 0.0
  %4156 = vmatprep.subr.mxu0 0.0
  %4157 = vmatpush1.msra.mxu0 0.0
  %4158 = vmatprep.subr.mxu0 0.0
  %4159 = vmatpush1.msra.mxu0 0.0
  %4160 = vmatprep.subr.mxu0 0.0
  %4161 = vmatpush1.msra.mxu0 0.0
  %4162 = vmatprep.subr.mxu0 0.0
  %4163 = vmatpush1.msra.mxu0 0.0
  %4164 = vmatprep.subr.mxu0 0.0
  %4165 = vmatpush1.msra.mxu0 0.0
  %4166 = vmatprep.subr.mxu0 0.0
  %4167 = vmatpush1.msra.mxu0 0.0
  %4168 = vmatprep.subr.mxu0 0.0
  %4169 = vmatpush1.msra.mxu0 0.0
  %4170 = vmatprep.subr.mxu0 0.0
  %4171 = vmatpush1.msra.mxu0 0.0
  %4172 = vmatprep.subr.mxu0 0.0
  %4173 = vmatpush1.msra.mxu0 0.0
  %4174 = vmatprep.subr.mxu0 0.0
  %4175 = vmatpush1.msra.mxu0 %v4129
  %4176 = vmatprep.subr.mxu0 0.0
  %4177 = vmatpush2.msra.mxu0 0.0
  %4178 = vmatprep.subr.mxu0 0.0
  %4179 = vmatpush2.msra.mxu0 0.0
  %4180 = vmatprep.subr.mxu0 0.0
  %4181 = vmatpush2.msra.mxu0 0.0
  %4182 = vmatprep.subr.mxu0 0.0
  %4183 = vmatpush2.msra.mxu0 0.0
  %4184 = vmatprep.subr.mxu0 0.0
  %4185 = vmatpush2.msra.mxu0 0.0
  %4186 = vmatprep.subr.mxu0 0.0
  %4187 = vmatpush2.msra.mxu0 0.0
  %4188 = vmatprep.subr.mxu0 0.0
  %4189 = vmatpush2.msra.mxu0 0.0
  %4190 = vmatprep.subr.mxu0 0.0
  %4191 = vmatpush2.msra.mxu0 0.0
  %4192 = vmatprep.subr.mxu0 0.0
  %4193 = vmatpush2.msra.mxu0 0.0
  %4194 = vmatprep.subr.mxu0 0.0
  %4195 = vmatpush2.msra.mxu0 0.0
  %4196 = vmatprep.subr.mxu0 0.0
  %4197 = vmatpush2.msra.mxu0 0.0
  %4198 = vmatprep.subr.mxu0 0.0
  %4199 = vmatpush2.msra.mxu0 0.0
  %4200 = vmatprep.subr.mxu0 0.0
  %4201 = vmatpush2.msra.mxu0 0.0
  %4202 = vmatprep.subr.mxu0 0.0
  %4203 = vmatpush2.msra.mxu0 0.0
  %4204 = vmatprep.subr.mxu0 0.0
  %4205 = vmatpush2.msra.mxu0 0.0
  %4206 = vmatprep.subr.mxu0 0.0
  %4207 = vmatpush2.msra.mxu0 0.0
  %4208 = vmatprep.mubr.f32.mxu0 0.0
  %4209 = vmatmul.mubr.f32.gmra.mxu0 %v4139
  %v4210 = vpop.f32.mrf.mxu0
  %v4211 = vadd.f32 %v4136, %v4210
  %v4212 = vpop.f32.mrf.mxu0
  %4213 = vmatprep.mubr.f32.mxu0 0.0
  %4214 = vmatmul.mubr.f32.gmra.mxu0 %v4142
  %v4215 = vpop.f32.mrf.mxu0
  %v4216 = vadd.f32 %v4136, %v4215
  %v4217 = vpop.f32.mrf.mxu0
  %4218 = vdwg.mxu0
  %v4219 = vadd.f32 %v4033, %v4211
  %v4220 = vadd.f32 %v4034, %v4216
  %s4221 = scalar_lea.vmem %s17, 5
  %v4222 = vld [vmem:[%s4221] sm:$0x1]
  %s4223 = scalar_lea.vmem %s18, 5
  %v4224 = vld [vmem:[%s4223] sm:$0x1]
  %v4225 = vsel %vm110, %v4219, 0.0
  %4226 = vadd.xlane.f32.xlu0 %v4225
  %v4227 = vpop.xlane.xlu0 %4226
  %v4228 = vsel %vm2266, %v4220, 0.0
  %4229 = vadd.xlane.f32.xlu0 %v4228
  %v4230 = vpop.xlane.xlu0 %4229
  %v4231 = vmul.f32 %v4227, %v1461
  %v4232 = vmul.f32 %v4230, %v1461
  %v4233 = vsub.f32 %v4219, %v4231
  %v4234 = vsub.f32 %v4220, %v4232
  %v4235 = vmul.f32 %v4233, %v4233
  %v4236 = vmul.f32 %v4234, %v4234
  %v4237 = vsel %vm110, %v4235, 0.0
  %4238 = vadd.xlane.f32.xlu0 %v4237
  %v4239 = vpop.xlane.xlu0 %4238
  %v4240 = vsel %vm2266, %v4236, 0.0
  %4241 = vadd.xlane.f32.xlu0 %v4240
  %v4242 = vpop.xlane.xlu0 %4241
  %v4243 = vmul.f32 %v4239, %v1461
  %v4244 = vmul.f32 %v4242, %v1461
  %v4245 = vadd.f32 %v4243, 1e-05
  %v4246 = vadd.f32 %v4244, 1e-05
  %v4247 = vrsqrt.pop %v4245
  %v4248 = vrsqrt.pop %v4246
  %v4249 = vmul.f32 %v4233, %v4247
  %v4250 = vmul.f32 %v4234, %v4248
  %v4252 = vlaneseq
  %v4253 = vshrl.u32 %v4252, 7
  %v4254 = vsub.s32 0, %v4253
  %v4255 = vrot.slane %v4222, %v4254
  %v4257 = vmul.f32 %v4249, %v4255
  %v4258 = vmul.f32 %v4250, %v4255
  %v4260 = vlaneseq
  %v4261 = vshrl.u32 %v4260, 7
  %v4262 = vsub.s32 0, %v4261
  %v4263 = vrot.slane %v4224, %v4262
  %v4265 = vadd.f32 %v4257, %v4263
  %v4266 = vadd.f32 %v4258, %v4263
  %s4267 = scalar_lea.vmem %s17, 6
  %v4268 = vld [vmem:[%s4267] sm:$0x1]
  %s4269 = scalar_lea.vmem %s18, 6
  %v4270 = vld [vmem:[%s4269] sm:$0x1]
  %v4271 = vsel %vm110, %v4265, 0.0
  %4272 = vadd.xlane.f32.xlu0 %v4271
  %v4273 = vpop.xlane.xlu0 %4272
  %v4274 = vsel %vm2266, %v4266, 0.0
  %4275 = vadd.xlane.f32.xlu0 %v4274
  %v4276 = vpop.xlane.xlu0 %4275
  %v4277 = vmul.f32 %v4273, %v1461
  %v4278 = vmul.f32 %v4276, %v1461
  %v4279 = vsub.f32 %v4265, %v4277
  %v4280 = vsub.f32 %v4266, %v4278
  %v4281 = vmul.f32 %v4279, %v4279
  %v4282 = vmul.f32 %v4280, %v4280
  %v4283 = vsel %vm110, %v4281, 0.0
  %4284 = vadd.xlane.f32.xlu0 %v4283
  %v4285 = vpop.xlane.xlu0 %4284
  %v4286 = vsel %vm2266, %v4282, 0.0
  %4287 = vadd.xlane.f32.xlu0 %v4286
  %v4288 = vpop.xlane.xlu0 %4287
  %v4289 = vmul.f32 %v4285, %v1461
  %v4290 = vmul.f32 %v4288, %v1461
  %v4291 = vadd.f32 %v4289, 1e-05
  %v4292 = vadd.f32 %v4290, 1e-05
  %v4293 = vrsqrt.pop %v4291
  %v4294 = vrsqrt.pop %v4292
  %v4295 = vmul.f32 %v4279, %v4293
  %v4296 = vmul.f32 %v4280, %v4294
  %v4298 = vlaneseq
  %v4299 = vshrl.u32 %v4298, 7
  %v4300 = vsub.s32 0, %v4299
  %v4301 = vrot.slane %v4268, %v4300
  %v4303 = vmul.f32 %v4295, %v4301
  %v4304 = vmul.f32 %v4296, %v4301
  %v4306 = vlaneseq
  %v4307 = vshrl.u32 %v4306, 7
  %v4308 = vsub.s32 0, %v4307
  %v4309 = vrot.slane %v4270, %v4308
  %v4311 = vadd.f32 %v4303, %v4309
  %v4312 = vadd.f32 %v4304, %v4309
  %v4313 = vld [vmem:[%s19] sm:$0xff]
  %v4314 = vld [vmem:[%s20] sm:$0x1]
  %v4316 = vlaneseq
  %v4317 = vshrl.u32 %v4316, 7
  %v4318 = vsub.s32 0, %v4317
  %v4319 = vrot.slane %v4314, %v4318
  %v4322 = vsel %vm110, %v4311, 0
  %v4325 = vsel %vm110, %v4312, 0
  %4327 = vmatprep.subr.mxu0 0.0
  %4328 = vmatpush1.msra.mxu0 0.0
  %4329 = vmatprep.subr.mxu0 0.0
  %4330 = vmatpush1.msra.mxu0 0.0
  %4331 = vmatprep.subr.mxu0 0.0
  %4332 = vmatpush1.msra.mxu0 0.0
  %4333 = vmatprep.subr.mxu0 0.0
  %4334 = vmatpush1.msra.mxu0 0.0
  %4335 = vmatprep.subr.mxu0 0.0
  %4336 = vmatpush1.msra.mxu0 0.0
  %4337 = vmatprep.subr.mxu0 0.0
  %4338 = vmatpush1.msra.mxu0 0.0
  %4339 = vmatprep.subr.mxu0 0.0
  %4340 = vmatpush1.msra.mxu0 0.0
  %4341 = vmatprep.subr.mxu0 0.0
  %4342 = vmatpush1.msra.mxu0 0.0
  %4343 = vmatprep.subr.mxu0 0.0
  %4344 = vmatpush1.msra.mxu0 0.0
  %4345 = vmatprep.subr.mxu0 0.0
  %4346 = vmatpush1.msra.mxu0 0.0
  %4347 = vmatprep.subr.mxu0 0.0
  %4348 = vmatpush1.msra.mxu0 0.0
  %4349 = vmatprep.subr.mxu0 0.0
  %4350 = vmatpush1.msra.mxu0 0.0
  %4351 = vmatprep.subr.mxu0 0.0
  %4352 = vmatpush1.msra.mxu0 0.0
  %4353 = vmatprep.subr.mxu0 0.0
  %4354 = vmatpush1.msra.mxu0 0.0
  %4355 = vmatprep.subr.mxu0 0.0
  %4356 = vmatpush1.msra.mxu0 0.0
  %4357 = vmatprep.subr.mxu0 0.0
  %4358 = vmatpush1.msra.mxu0 %v4313
  %4359 = vmatprep.subr.mxu0 0.0
  %4360 = vmatpush2.msra.mxu0 0.0
  %4361 = vmatprep.subr.mxu0 0.0
  %4362 = vmatpush2.msra.mxu0 0.0
  %4363 = vmatprep.subr.mxu0 0.0
  %4364 = vmatpush2.msra.mxu0 0.0
  %4365 = vmatprep.subr.mxu0 0.0
  %4366 = vmatpush2.msra.mxu0 0.0
  %4367 = vmatprep.subr.mxu0 0.0
  %4368 = vmatpush2.msra.mxu0 0.0
  %4369 = vmatprep.subr.mxu0 0.0
  %4370 = vmatpush2.msra.mxu0 0.0
  %4371 = vmatprep.subr.mxu0 0.0
  %4372 = vmatpush2.msra.mxu0 0.0
  %4373 = vmatprep.subr.mxu0 0.0
  %4374 = vmatpush2.msra.mxu0 0.0
  %4375 = vmatprep.subr.mxu0 0.0
  %4376 = vmatpush2.msra.mxu0 0.0
  %4377 = vmatprep.subr.mxu0 0.0
  %4378 = vmatpush2.msra.mxu0 0.0
  %4379 = vmatprep.subr.mxu0 0.0
  %4380 = vmatpush2.msra.mxu0 0.0
  %4381 = vmatprep.subr.mxu0 0.0
  %4382 = vmatpush2.msra.mxu0 0.0
  %4383 = vmatprep.subr.mxu0 0.0
  %4384 = vmatpush2.msra.mxu0 0.0
  %4385 = vmatprep.subr.mxu0 0.0
  %4386 = vmatpush2.msra.mxu0 0.0
  %4387 = vmatprep.subr.mxu0 0.0
  %4388 = vmatpush2.msra.mxu0 0.0
  %4389 = vmatprep.subr.mxu0 0.0
  %4390 = vmatpush2.msra.mxu0 0.0
  %4391 = vmatprep.mubr.f32.mxu0 0.0
  %4392 = vmatmul.mubr.f32.gmra.mxu0 %v4322
  %v4393 = vpop.f32.mrf.mxu0
  %v4394 = vadd.f32 %v4319, %v4393
  %v4395 = vpop.f32.mrf.mxu0
  %4396 = vmatprep.mubr.f32.mxu0 0.0
  %4397 = vmatmul.mubr.f32.gmra.mxu0 %v4325
  %v4398 = vpop.f32.mrf.mxu0
  %v4399 = vadd.f32 %v4319, %v4398
  %v4400 = vpop.f32.mrf.mxu0
  %4401 = vdwg.mxu0
  %4402 = vst [vmem:[%s21] sm:$0xff] %v4394
  %4403 = vst [vmem:[%s21 + $0x8] sm:$0xf] %v4399
  // Predicated region
  $region86: #{seq2seq_forward.1} parent=0 // pred_check
    _
  $region87: #{seq2seq_forward.1} parent=0 // pred_check_branch
    %4405 = sbr.rel (0) target = $region89
  $region88: #{seq2seq_forward.1} parent=0 // pred_region
    _
  $region89: #{seq2seq_forward.1} parent=0 // pred_fallthru
    _
  // Predicated region
  $region90: #{seq2seq_forward.1} parent=0 // pred_check
    _
  $region91: #{seq2seq_forward.1} parent=0 // pred_check_branch
    %4407 = sbr.rel (0) target = $region93
  $region92: #{seq2seq_forward.1} parent=0 // pred_region
    _
  $region93: #{seq2seq_forward.1} parent=0 // pred_fallthru
    _

</llo_original>
